<compile_context>
chip_gen: v7x
topology: tpu7x:2x2x1
jax: 0.10.0
libtpu: 0.0.40
codegen_flags: <defaults>
</compile_context>

<pallas_src>
import functools

import jax
import jax.numpy as jnp
from jax.experimental import pallas as pl
from jax.experimental.pallas import tpu as pltpu


# ----------------------------------------------------------------------------
# Tiling helpers
# ----------------------------------------------------------------------------
def _round_up(x, m):
    return (x + m - 1) // m * m


def _choose_tm(m, k, n):
    """Pick the M (row) tile.

    Small problems use one full-extent tile (exempt from the 8-sublane rule; one
    grid step minimises the ~0.35us/step fixed cost dominating these mem-bound
    layers).  Large problems use up to 1024-row tiles, shrunk to keep the
    double-buffered blocks well inside VMEM and split into >=2 tiles so both
    v7x TensorCores get work.
    """
    if m <= 512:
        return m
    tm = 1024
    while tm > 128 and 2 * tm * (k + n) * 2 > (8 << 20):   # bf16 blocks, 2 buffers
        tm //= 2
    if m < 2 * tm:
        tm = _round_up((m + 1) // 2, 8)
    return tm


# ----------------------------------------------------------------------------
# Fused, single-K-step matmul over both streams:  Y[s] = relu?(X[s] @ W[s] + b[s])
# ----------------------------------------------------------------------------
def _matmul_kernel(x_ref, w_ref, b_ref, o_ref, *, relu):
    y = jnp.dot(x_ref[0], w_ref[0], preferred_element_type=jnp.float32) + b_ref[0]
    if relu:
        y = jnp.maximum(y, 0.0)
    o_ref[0] = y.astype(o_ref.dtype)


def fused_matmul_stacked(x, w, b, *, relu, out_dtype):
    """x: [S, M, K] activations, w: [S, K, N] bf16 (BN folded), b: [S, 1, N] f32.

    Full-extent K and N blocks (single K step, direct write, no scratch); the
    weight is fully VMEM-resident.  The M axis uses a cdiv grid: the edge block
    may read rows past M, but those rows only produce output rows >= M whose
    store is clipped by the pipeline, so no M padding / slicing is needed.
    """
    s_dim, m, k = x.shape
    assert w.shape[0] == s_dim and w.shape[1] == k
    n = int(w.shape[2])
    assert b.shape == (s_dim, 1, n)

    tm = _choose_tm(m, k, n)
    grid = (s_dim, pl.cdiv(m, tm))

    return pl.pallas_call(
        functools.partial(_matmul_kernel, relu=relu),
        out_shape=jax.ShapeDtypeStruct((s_dim, m, n), out_dtype),
        grid=grid,
        in_specs=[
            pl.BlockSpec((1, tm, k), lambda s, i: (s, i, 0)),
            pl.BlockSpec((1, k, n), lambda s, i: (s, 0, 0)),
            pl.BlockSpec((1, 1, n), lambda s, i: (s, 0, 0)),
        ],
        out_specs=pl.BlockSpec((1, tm, n), lambda s, i: (s, i, 0)),
        compiler_params=pltpu.CompilerParams(
            dimension_semantics=("parallel", "parallel"),
            vmem_limit_bytes=32 * 1024 * 1024,
        ),
    )(x.astype(jnp.bfloat16), w, b)


# ----------------------------------------------------------------------------
# Fused heads kernel: concat + (x_radar + x) + three 1x1 convs in one pass
# ----------------------------------------------------------------------------
def _make_heads_kernel(n_up):
    def kernel(*refs):
        u_refs = refs[:n_up]
        w_refs = refs[n_up:2 * n_up]
        b_ref = refs[2 * n_up]
        o_ref = refs[2 * n_up + 1]
        acc = None
        for u_ref, w_ref in zip(u_refs, w_refs):
            xs = u_ref[0] + u_ref[1]                        # fused lidar + radar add
            d = jnp.dot(xs, w_ref[...], preferred_element_type=jnp.float32)
            acc = d if acc is None else acc + d
        o_ref[...] = (acc + b_ref[...]).astype(o_ref.dtype)
    return kernel


def fused_heads_matmul(flat_ups, w_list, bias):
    """flat_ups: list of [2, M, C_i] bf16 slabs (stream 0=lidar, 1=radar);
    w_list: list of [C_i, Nout] bf16; bias: [1, Nout] f32.  One kernel reads each
    slab once, adds the two streams, accumulates the per-slab dots + bias and
    writes the [M, Nout] f32 head slab (box|cls|dir)."""
    n_up = len(flat_ups)
    s_dim, m, _ = flat_ups[0].shape
    n = int(bias.shape[-1])
    tm = _choose_tm(m, sum(int(u.shape[-1]) for u in flat_ups), n)
    grid = (pl.cdiv(m, tm),)

    in_specs = []
    for u in flat_ups:
        c = int(u.shape[-1])
        in_specs.append(pl.BlockSpec((s_dim, tm, c), lambda i: (0, i, 0)))
    for w in w_list:
        in_specs.append(pl.BlockSpec(w.shape, lambda i: (0, 0)))
    in_specs.append(pl.BlockSpec((1, n), lambda i: (0, 0)))

    return pl.pallas_call(
        _make_heads_kernel(n_up),
        out_shape=jax.ShapeDtypeStruct((m, n), jnp.float32),
        grid=grid,
        in_specs=in_specs,
        out_specs=pl.BlockSpec((tm, n), lambda i: (i, 0)),
        compiler_params=pltpu.CompilerParams(
            dimension_semantics=("parallel",),
            vmem_limit_bytes=32 * 1024 * 1024,
        ),
    )(*flat_ups, *w_list, bias)


# ----------------------------------------------------------------------------
# Conv building blocks (im2col / pixel-shuffle glue in XLA, matmuls in Pallas)
# ----------------------------------------------------------------------------
def conv3x3_bn_relu(x, prep, stride):
    """ZeroPad2d(1) + Conv3x3(stride, bias=False) + BN(folded) + ReLU on both
    streams at once.  x: [S, H, W, Cin] bf16."""
    s_dim, h, w, cin = x.shape
    cout = int(prep["w"].shape[-1])
    xp = jnp.pad(x, ((0, 0), (1, 1), (1, 1), (0, 0)))
    ho = (h + 2 - 3) // stride + 1
    wo = (w + 2 - 3) // stride + 1
    # TODO(synk): im2col is still materialized by XLA; direct-conv kernel would
    # remove this extra HBM pass for production-size maps.
    patches = []
    for kh in range(3):
        for kw in range(3):
            patches.append(
                xp[:, kh:kh + stride * (ho - 1) + 1:stride,
                      kw:kw + stride * (wo - 1) + 1:stride, :])
    x2 = jnp.concatenate(patches, axis=-1).reshape(s_dim, ho * wo, 9 * cin)
    y = fused_matmul_stacked(x2, prep["w"], prep["b"], relu=True,
                             out_dtype=jnp.bfloat16)
    return y.reshape(s_dim, ho, wo, cout)


def deconv_bn_relu(x, prep, up_stride, cout):
    """ConvTranspose2d(kernel=stride=up_stride, bias=False) + BN(folded) + ReLU."""
    s_dim, h, w, cin = x.shape
    y = fused_matmul_stacked(x.reshape(s_dim, h * w, cin), prep["w"], prep["b"],
                             relu=True, out_dtype=jnp.bfloat16)
    y = y.reshape(s_dim, h, w, cout, up_stride, up_stride)
    y = jnp.transpose(y, (0, 1, 4, 2, 5, 3))          # S, H, sh, W, sw, Cout
    return y.reshape(s_dim, h * up_stride, w * up_stride, cout)


# ----------------------------------------------------------------------------
# Parameter preparation (done ONCE): reshape, fold inference-mode BN, bf16 cast,
# stack lidar/radar weights along a leading stream axis.  Arrays ONLY (no ints).
# ----------------------------------------------------------------------------
class KeyGen:
    def __init__(self, seed):
        self._key = jax.random.PRNGKey(seed)

    def __call__(self):
        self._key, k = jax.random.split(self._key)
        return k


def make_bn(kg, c, eps=1e-3):
    gamma = 1.0 + 0.1 * jax.random.normal(kg(), (c,), jnp.float32)
    beta = 0.1 * jax.random.normal(kg(), (c,), jnp.float32)
    mean = 0.1 * jax.random.normal(kg(), (c,), jnp.float32)
    var = jax.random.uniform(kg(), (c,), jnp.float32, 0.5, 1.5)
    scale = gamma / jnp.sqrt(var + eps)
    bias = beta - mean * scale
    return scale, bias


def make_conv_w(kg, cout, cin, k):
    return 0.05 * jax.random.normal(kg(), (cout, cin, k, k), jnp.float32)


def prep_conv3x3(w_oihw, scale, bias):
    """[Cout, Cin, 3, 3] -> [9*Cin, Cout], rows ordered (kh, kw, cin) = im2col order."""
    cout, cin = w_oihw.shape[:2]
    w2 = jnp.transpose(w_oihw, (2, 3, 1, 0)).reshape(9 * cin, cout)
    w2 = w2 * scale[None, :]
    return w2.astype(jnp.bfloat16), bias.astype(jnp.float32).reshape(1, cout)


def prep_deconv(w_iohw, scale, bias, s):
    """[Cin, Cout, s, s] -> [Cin, Cout*s*s], cols ordered (cout, kh, kw)."""
    cin, cout = w_iohw.shape[:2]
    w2 = w_iohw.reshape(cin, cout * s * s)
    scale_r = jnp.repeat(scale, s * s)
    bias_r = jnp.repeat(bias, s * s)
    w2 = w2 * scale_r[None, :]
    return w2.astype(jnp.bfloat16), bias_r.astype(jnp.float32).reshape(1, cout * s * s)


def build_params(kg, cfg):
    layer_nums = cfg["layer_nums"]
    num_filters = cfg["num_filters"]
    up_filters = cfg["num_upsample_filters"]
    up_strides = cfg["upsample_strides"]
    in_filters = [cfg["num_input_features"], *num_filters[:-1]]

    def make_branch():
        convs, deconvs = [], []
        for i, ln in enumerate(layer_nums):
            layer = []
            w = make_conv_w(kg, num_filters[i], in_filters[i], 3)   # strided conv
            s, b = make_bn(kg, num_filters[i])
            layer.append(prep_conv3x3(w, s, b))
            for _ in range(ln):
                w = make_conv_w(kg, num_filters[i], num_filters[i], 3)
                s, b = make_bn(kg, num_filters[i])
                layer.append(prep_conv3x3(w, s, b))
            convs.append(layer)
            us = int(up_strides[i])
            w = 0.05 * jax.random.normal(
                kg(), (num_filters[i], up_filters[i], us, us), jnp.float32)
            s, b = make_bn(kg, up_filters[i])
            deconvs.append(prep_deconv(w, s, b, us))
        return convs, deconvs

    lidar_convs, lidar_deconvs = make_branch()
    radar_convs, radar_deconvs = make_branch()

    blocks = []
    for lc, rc in zip(lidar_convs, radar_convs):
        layer = []
        for (wl, bl), (wr, br) in zip(lc, rc):
            layer.append({"w": jnp.stack([wl, wr]), "b": jnp.stack([bl, br])})
        blocks.append(layer)
    deblocks = []
    for (wl, bl), (wr, br) in zip(lidar_deconvs, radar_deconvs):
        deblocks.append({"w": jnp.stack([wl, wr]), "b": jnp.stack([bl, br])})

    final = int(sum(up_filters))
    num_cls = cfg["num_anchor_per_loc"] * cfg["num_class"]   # encode_background_as_zeros
    num_box = cfg["num_anchor_per_loc"] * cfg["box_code_size"]
    num_dir = cfg["num_anchor_per_loc"] * cfg["num_direction_bins"]

    def flat(w):  # [Cout, Cin, 1, 1] -> [Cin, Cout]
        return w.reshape(w.shape[0], w.shape[1]).T

    wb = make_conv_w(kg, num_box, final, 1)
    bb = 0.05 * jax.random.normal(kg(), (num_box,), jnp.float32)
    wc = make_conv_w(kg, num_cls, final, 1)
    bc = 0.05 * jax.random.normal(kg(), (num_cls,), jnp.float32)
    wd = make_conv_w(kg, num_dir, final, 1)
    bd = 0.05 * jax.random.normal(kg(), (num_dir,), jnp.float32)

    w_all = jnp.concatenate([flat(wb), flat(wc), flat(wd)], axis=1).astype(jnp.bfloat16)
    b_all = jnp.concatenate([bb, bc, bd]).astype(jnp.float32).reshape(1, -1)

    # Split head weight rows per upsample slab (matches torch.cat(ups, dim=1) order)
    w_split, off = [], 0
    for c in up_filters:
        w_split.append(w_all[off:off + int(c), :])
        off += int(c)

    heads = {"w": tuple(w_split), "b": b_all}
    return {"blocks": blocks, "deblocks": deblocks, "heads": heads}


# ----------------------------------------------------------------------------
# Forward pass (RPNBase.forward semantics)
# ----------------------------------------------------------------------------
def rpn_forward(x_nchw, params, cfg):
    A = cfg["num_anchor_per_loc"]
    n_box = A * cfg["box_code_size"]
    n_cls = A * cfg["num_class"]
    n_dir = A * cfg["num_direction_bins"]

    # NCHW (PyTorch) -> NHWC (lane-dense channels), bf16.
    # forward(): batch==2 -> split(1, 0): stream 0 = lidar, stream 1 = radar.
    x = jnp.transpose(x_nchw, (0, 2, 3, 1)).astype(jnp.bfloat16)

    ups = []
    for i in range(len(cfg["layer_nums"])):
        layers = params["blocks"][i]
        x = conv3x3_bn_relu(x, layers[0], int(cfg["layer_strides"][i]))
        for prep in layers[1:]:
            x = conv3x3_bn_relu(x, prep, 1)
        ups.append(deconv_bn_relu(x, params["deblocks"][i],
                                  int(cfg["upsample_strides"][i]),
                                  int(cfg["num_upsample_filters"][i])))

    # Fused: channel concat of ups + torch.add(x_radar, x) + three 1x1 heads.
    s_dim, hf, wf, _ = ups[0].shape
    m = hf * wf
    flat_ups = [u.reshape(s_dim, m, int(u.shape[-1])) for u in ups]
    y = fused_heads_matmul(flat_ups, list(params["heads"]["w"]), params["heads"]["b"])
    y = y.reshape(1, hf, wf, n_box + n_cls + n_dir)

    box = y[..., :n_box]
    cls = y[..., n_box:n_box + n_cls]
    dire = y[..., n_box + n_cls:]

    # Matches: view(-1, A, k, H, W).permute(0, 1, 3, 4, 2)
    box_preds = box.reshape(1, hf, wf, A, cfg["box_code_size"]).transpose(0, 3, 1, 2, 4)
    cls_preds = cls.reshape(1, hf, wf, A, cfg["num_class"]).transpose(0, 3, 1, 2, 4)
    dir_preds = dire.reshape(1, hf, wf, A, cfg["num_direction_bins"]).transpose(0, 3, 1, 2, 4)
    return {"box_preds": box_preds, "cls_preds": cls_preds,
            "dir_cls_preds": dir_preds}


# ----------------------------------------------------------------------------
if __name__ == "__main__":
    # Small-but-consistent config (same structure as the defaults, scaled down)
    cfg = dict(
        layer_nums=(1, 1, 1),
        layer_strides=(2, 2, 2),
        num_filters=(8, 8, 16),
        upsample_strides=(1, 2, 4),
        num_upsample_filters=(16, 16, 16),
        num_input_features=8,
        num_anchor_per_loc=2,
        num_class=2,
        box_code_size=7,
        num_direction_bins=2,
    )

    kg = KeyGen(0)
    params = build_params(kg, cfg)

    # Deterministic NCHW input like the PyTorch module: batch=2 -> lidar + radar
    x = jax.random.normal(jax.random.PRNGKey(0),
                          (2, cfg["num_input_features"], 16, 16), jnp.float32)

    fwd = jax.jit(lambda inp, p: rpn_forward(inp, p, cfg))
    out = fwd(x, params)
    jax.block_until_ready(out)

    expected = {
        "box_preds": (1, 2, 8, 8, 7),
        "cls_preds": (1, 2, 8, 8, 2),
        "dir_cls_preds": (1, 2, 8, 8, 2),
    }
    for k, shp in expected.items():
        assert out[k].shape == shp, (k, out[k].shape, shp)
        assert bool(jnp.all(jnp.isfinite(out[k]))), k

    print("KERNEL_OK")
</pallas_src>

<mosaic_0001>
module attributes {stable_mosaic.version = 11 : i64} {
  func.func @_matmul_kernel(%arg0: i32, %arg1: i32, %arg2: memref<1x64x72xbf16, #tpu.memory_space<vmem>>, %arg3: memref<1x72x8xbf16, #tpu.memory_space<vmem>>, %arg4: memref<1x1x8xf32, #tpu.memory_space<vmem>>, %arg5: memref<1x64x8xbf16, #tpu.memory_space<vmem>>) attributes {dimension_semantics = [#tpu.dimension_semantics<parallel>, #tpu.dimension_semantics<parallel>], iteration_bounds = array<i64: 2, 1>, scalar_prefetch = 0 : i64, scratch_operands = 0 : i64, tpu.core_type = #tpu.core_type<tc>, window_params = [{transform_indices = @transform_0, window_bounds = array<i64: 1, 64, 72>}, {transform_indices = @transform_1, window_bounds = array<i64: 1, 72, 8>}, {transform_indices = @transform_2, window_bounds = array<i64: 1, 1, 8>}, {transform_indices = @transform_3, window_bounds = array<i64: 1, 64, 8>}]} {
    %c0 = arith.constant 0 : index
    %c0_0 = arith.constant 0 : index
    %c0_1 = arith.constant 0 : index
    %0 = vector.load %arg2[%c0, %c0_0, %c0_1] : memref<1x64x72xbf16, #tpu.memory_space<vmem>>, vector<1x64x72xbf16>
    %1 = vector.shape_cast %0 : vector<1x64x72xbf16> to vector<64x72xbf16>
    %c0_2 = arith.constant 0 : index
    %c0_3 = arith.constant 0 : index
    %c0_4 = arith.constant 0 : index
    %2 = vector.load %arg3[%c0_2, %c0_3, %c0_4] : memref<1x72x8xbf16, #tpu.memory_space<vmem>>, vector<1x72x8xbf16>
    %3 = vector.shape_cast %2 : vector<1x72x8xbf16> to vector<72x8xbf16>
    %cst = arith.constant dense<0.000000e+00> : vector<64x8xf32>
    %4 = tpu.matmul %1, %3, %cst {dimension_numbers = #tpu.dot_dimension_numbers<[1], [0], [0], [1], [0, 0, 1, 1], [], []>} : vector<64x72xbf16>, vector<72x8xbf16>, vector<64x8xf32> -> vector<64x8xf32>
    %c0_5 = arith.constant 0 : index
    %c0_6 = arith.constant 0 : index
    %c0_7 = arith.constant 0 : index
    %5 = vector.load %arg4[%c0_5, %c0_6, %c0_7] : memref<1x1x8xf32, #tpu.memory_space<vmem>>, vector<1x1x8xf32>
    %6 = vector.shape_cast %5 : vector<1x1x8xf32> to vector<1x8xf32>
    %7 = vector.broadcast %6 : vector<1x8xf32> to vector<64x8xf32>
    %8 = arith.addf %4, %7 : vector<64x8xf32>
    %cst_8 = arith.constant 0.000000e+00 : f32
    %9 = vector.broadcast %cst_8 : f32 to vector<64x8xf32>
    %10 = arith.maximumf %8, %9 : vector<64x8xf32>
    %11 = arith.truncf %10 : vector<64x8xf32> to vector<64x8xbf16>
    %c0_9 = arith.constant 0 : index
    %c0_10 = arith.constant 0 : index
    %c0_11 = arith.constant 0 : index
    %12 = vector.load %arg5[%c0_9, %c0_10, %c0_11] : memref<1x64x8xbf16, #tpu.memory_space<vmem>>, vector<1x64x8xbf16>
    %13 = vector.shape_cast %12 : vector<1x64x8xbf16> to vector<64x8xbf16>
    %14 = vector.shape_cast %11 : vector<64x8xbf16> to vector<1x64x8xbf16>
    tpu.vector_store %arg5[%c0_9, %c0_10, %c0_11], %14 {strides = array<i32>} : memref<1x64x8xbf16, #tpu.memory_space<vmem>>, vector<1x64x8xbf16>,
    return
  }
  func.func @transform_0(%arg0: i32, %arg1: i32) -> (i32, i32, i32) {
    %c0_i32 = arith.constant 0 : i32
    %c0_i32_0 = arith.constant 0 : i32
    return %arg0, %arg1, %c0_i32 : i32, i32, i32
  }
  func.func @transform_1(%arg0: i32, %arg1: i32) -> (i32, i32, i32) {
    %c0_i32 = arith.constant 0 : i32
    %c0_i32_0 = arith.constant 0 : i32
    %c0_i32_1 = arith.constant 0 : i32
    return %arg0, %c0_i32, %c0_i32_0 : i32, i32, i32
  }
  func.func @transform_2(%arg0: i32, %arg1: i32) -> (i32, i32, i32) {
    %c0_i32 = arith.constant 0 : i32
    %c0_i32_0 = arith.constant 0 : i32
    %c0_i32_1 = arith.constant 0 : i32
    return %arg0, %c0_i32, %c0_i32_0 : i32, i32, i32
  }
  func.func @transform_3(%arg0: i32, %arg1: i32) -> (i32, i32, i32) {
    %c0_i32 = arith.constant 0 : i32
    %c0_i32_0 = arith.constant 0 : i32
    return %arg0, %arg1, %c0_i32 : i32, i32, i32
  }
}

module attributes {stable_mosaic.version = 11 : i64} {
  func.func @_matmul_kernel(%arg0: i32, %arg1: i32, %arg2: memref<1x16x72xbf16, #tpu.memory_space<vmem>>, %arg3: memref<1x72x8xbf16, #tpu.memory_space<vmem>>, %arg4: memref<1x1x8xf32, #tpu.memory_space<vmem>>, %arg5: memref<1x16x8xbf16, #tpu.memory_space<vmem>>) attributes {dimension_semantics = [#tpu.dimension_semantics<parallel>, #tpu.dimension_semantics<parallel>], iteration_bounds = array<i64: 2, 1>, scalar_prefetch = 0 : i64, scratch_operands = 0 : i64, tpu.core_type = #tpu.core_type<tc>, window_params = [{transform_indices = @transform_0, window_bounds = array<i64: 1, 16, 72>}, {transform_indices = @transform_1, window_bounds = array<i64: 1, 72, 8>}, {transform_indices = @transform_2, window_bounds = array<i64: 1, 1, 8>}, {transform_indices = @transform_3, window_bounds = array<i64: 1, 16, 8>}]} {
    %c0 = arith.constant 0 : index
    %c0_0 = arith.constant 0 : index
    %c0_1 = arith.constant 0 : index
    %0 = vector.load %arg2[%c0, %c0_0, %c0_1] : memref<1x16x72xbf16, #tpu.memory_space<vmem>>, vector<1x16x72xbf16>
    %1 = vector.shape_cast %0 : vector<1x16x72xbf16> to vector<16x72xbf16>
    %c0_2 = arith.constant 0 : index
    %c0_3 = arith.constant 0 : index
    %c0_4 = arith.constant 0 : index
    %2 = vector.load %arg3[%c0_2, %c0_3, %c0_4] : memref<1x72x8xbf16, #tpu.memory_space<vmem>>, vector<1x72x8xbf16>
    %3 = vector.shape_cast %2 : vector<1x72x8xbf16> to vector<72x8xbf16>
    %cst = arith.constant dense<0.000000e+00> : vector<16x8xf32>
    %4 = tpu.matmul %1, %3, %cst {dimension_numbers = #tpu.dot_dimension_numbers<[1], [0], [0], [1], [0, 0, 1, 1], [], []>} : vector<16x72xbf16>, vector<72x8xbf16>, vector<16x8xf32> -> vector<16x8xf32>
    %c0_5 = arith.constant 0 : index
    %c0_6 = arith.constant 0 : index
    %c0_7 = arith.constant 0 : index
    %5 = vector.load %arg4[%c0_5, %c0_6, %c0_7] : memref<1x1x8xf32, #tpu.memory_space<vmem>>, vector<1x1x8xf32>
    %6 = vector.shape_cast %5 : vector<1x1x8xf32> to vector<1x8xf32>
    %7 = vector.broadcast %6 : vector<1x8xf32> to vector<16x8xf32>
    %8 = arith.addf %4, %7 : vector<16x8xf32>
    %cst_8 = arith.constant 0.000000e+00 : f32
    %9 = vector.broadcast %cst_8 : f32 to vector<16x8xf32>
    %10 = arith.maximumf %8, %9 : vector<16x8xf32>
    %11 = arith.truncf %10 : vector<16x8xf32> to vector<16x8xbf16>
    %c0_9 = arith.constant 0 : index
    %c0_10 = arith.constant 0 : index
    %c0_11 = arith.constant 0 : index
    %12 = vector.load %arg5[%c0_9, %c0_10, %c0_11] : memref<1x16x8xbf16, #tpu.memory_space<vmem>>, vector<1x16x8xbf16>
    %13 = vector.shape_cast %12 : vector<1x16x8xbf16> to vector<16x8xbf16>
    %14 = vector.shape_cast %11 : vector<16x8xbf16> to vector<1x16x8xbf16>
    tpu.vector_store %arg5[%c0_9, %c0_10, %c0_11], %14 {strides = array<i32>} : memref<1x16x8xbf16, #tpu.memory_space<vmem>>, vector<1x16x8xbf16>,
    return
  }
  func.func @transform_0(%arg0: i32, %arg1: i32) -> (i32, i32, i32) {
    %c0_i32 = arith.constant 0 : i32
    %c0_i32_0 = arith.constant 0 : i32
    return %arg0, %arg1, %c0_i32 : i32, i32, i32
  }
  func.func @transform_1(%arg0: i32, %arg1: i32) -> (i32, i32, i32) {
    %c0_i32 = arith.constant 0 : i32
    %c0_i32_0 = arith.constant 0 : i32
    %c0_i32_1 = arith.constant 0 : i32
    return %arg0, %c0_i32, %c0_i32_0 : i32, i32, i32
  }
  func.func @transform_2(%arg0: i32, %arg1: i32) -> (i32, i32, i32) {
    %c0_i32 = arith.constant 0 : i32
    %c0_i32_0 = arith.constant 0 : i32
    %c0_i32_1 = arith.constant 0 : i32
    return %arg0, %c0_i32, %c0_i32_0 : i32, i32, i32
  }
  func.func @transform_3(%arg0: i32, %arg1: i32) -> (i32, i32, i32) {
    %c0_i32 = arith.constant 0 : i32
    %c0_i32_0 = arith.constant 0 : i32
    return %arg0, %arg1, %c0_i32 : i32, i32, i32
  }
}

module attributes {stable_mosaic.version = 11 : i64} {
  func.func @_matmul_kernel(%arg0: i32, %arg1: i32, %arg2: memref<1x4x72xbf16, #tpu.memory_space<vmem>>, %arg3: memref<1x72x16xbf16, #tpu.memory_space<vmem>>, %arg4: memref<1x1x16xf32, #tpu.memory_space<vmem>>, %arg5: memref<1x4x16xbf16, #tpu.memory_space<vmem>>) attributes {dimension_semantics = [#tpu.dimension_semantics<parallel>, #tpu.dimension_semantics<parallel>], iteration_bounds = array<i64: 2, 1>, scalar_prefetch = 0 : i64, scratch_operands = 0 : i64, tpu.core_type = #tpu.core_type<tc>, window_params = [{transform_indices = @transform_0, window_bounds = array<i64: 1, 4, 72>}, {transform_indices = @transform_1, window_bounds = array<i64: 1, 72, 16>}, {transform_indices = @transform_2, window_bounds = array<i64: 1, 1, 16>}, {transform_indices = @transform_3, window_bounds = array<i64: 1, 4, 16>}]} {
    %c0 = arith.constant 0 : index
    %c0_0 = arith.constant 0 : index
    %c0_1 = arith.constant 0 : index
    %0 = vector.load %arg2[%c0, %c0_0, %c0_1] : memref<1x4x72xbf16, #tpu.memory_space<vmem>>, vector<1x4x72xbf16>
    %1 = vector.shape_cast %0 : vector<1x4x72xbf16> to vector<4x72xbf16>
    %c0_2 = arith.constant 0 : index
    %c0_3 = arith.constant 0 : index
    %c0_4 = arith.constant 0 : index
    %2 = vector.load %arg3[%c0_2, %c0_3, %c0_4] : memref<1x72x16xbf16, #tpu.memory_space<vmem>>, vector<1x72x16xbf16>
    %3 = vector.shape_cast %2 : vector<1x72x16xbf16> to vector<72x16xbf16>
    %cst = arith.constant dense<0.000000e+00> : vector<4x16xf32>
    %4 = tpu.matmul %1, %3, %cst {dimension_numbers = #tpu.dot_dimension_numbers<[1], [0], [0], [1], [0, 0, 1, 1], [], []>} : vector<4x72xbf16>, vector<72x16xbf16>, vector<4x16xf32> -> vector<4x16xf32>
    %c0_5 = arith.constant 0 : index
    %c0_6 = arith.constant 0 : index
    %c0_7 = arith.constant 0 : index
    %5 = vector.load %arg4[%c0_5, %c0_6, %c0_7] : memref<1x1x16xf32, #tpu.memory_space<vmem>>, vector<1x1x16xf32>
    %6 = vector.shape_cast %5 : vector<1x1x16xf32> to vector<1x16xf32>
    %7 = vector.broadcast %6 : vector<1x16xf32> to vector<4x16xf32>
    %8 = arith.addf %4, %7 : vector<4x16xf32>
    %cst_8 = arith.constant 0.000000e+00 : f32
    %9 = vector.broadcast %cst_8 : f32 to vector<4x16xf32>
    %10 = arith.maximumf %8, %9 : vector<4x16xf32>
    %11 = arith.truncf %10 : vector<4x16xf32> to vector<4x16xbf16>
    %c0_9 = arith.constant 0 : index
    %c0_10 = arith.constant 0 : index
    %c0_11 = arith.constant 0 : index
    %12 = vector.load %arg5[%c0_9, %c0_10, %c0_11] : memref<1x4x16xbf16, #tpu.memory_space<vmem>>, vector<1x4x16xbf16>
    %13 = vector.shape_cast %12 : vector<1x4x16xbf16> to vector<4x16xbf16>
    %14 = vector.shape_cast %11 : vector<4x16xbf16> to vector<1x4x16xbf16>
    tpu.vector_store %arg5[%c0_9, %c0_10, %c0_11], %14 {strides = array<i32>} : memref<1x4x16xbf16, #tpu.memory_space<vmem>>, vector<1x4x16xbf16>,
    return
  }
  func.func @transform_0(%arg0: i32, %arg1: i32) -> (i32, i32, i32) {
    %c0_i32 = arith.constant 0 : i32
    %c0_i32_0 = arith.constant 0 : i32
    return %arg0, %arg1, %c0_i32 : i32, i32, i32
  }
  func.func @transform_1(%arg0: i32, %arg1: i32) -> (i32, i32, i32) {
    %c0_i32 = arith.constant 0 : i32
    %c0_i32_0 = arith.constant 0 : i32
    %c0_i32_1 = arith.constant 0 : i32
    return %arg0, %c0_i32, %c0_i32_0 : i32, i32, i32
  }
  func.func @transform_2(%arg0: i32, %arg1: i32) -> (i32, i32, i32) {
    %c0_i32 = arith.constant 0 : i32
    %c0_i32_0 = arith.constant 0 : i32
    %c0_i32_1 = arith.constant 0 : i32
    return %arg0, %c0_i32, %c0_i32_0 : i32, i32, i32
  }
  func.func @transform_3(%arg0: i32, %arg1: i32) -> (i32, i32, i32) {
    %c0_i32 = arith.constant 0 : i32
    %c0_i32_0 = arith.constant 0 : i32
    return %arg0, %arg1, %c0_i32 : i32, i32, i32
  }
}

module attributes {stable_mosaic.version = 11 : i64} {
  func.func @_matmul_kernel(%arg0: i32, %arg1: i32, %arg2: memref<1x4x16xbf16, #tpu.memory_space<vmem>>, %arg3: memref<1x16x256xbf16, #tpu.memory_space<vmem>>, %arg4: memref<1x1x256xf32, #tpu.memory_space<vmem>>, %arg5: memref<1x4x256xbf16, #tpu.memory_space<vmem>>) attributes {dimension_semantics = [#tpu.dimension_semantics<parallel>, #tpu.dimension_semantics<parallel>], iteration_bounds = array<i64: 2, 1>, scalar_prefetch = 0 : i64, scratch_operands = 0 : i64, tpu.core_type = #tpu.core_type<tc>, window_params = [{transform_indices = @transform_0, window_bounds = array<i64: 1, 4, 16>}, {transform_indices = @transform_1, window_bounds = array<i64: 1, 16, 256>}, {transform_indices = @transform_2, window_bounds = array<i64: 1, 1, 256>}, {transform_indices = @transform_3, window_bounds = array<i64: 1, 4, 256>}]} {
    %c0 = arith.constant 0 : index
    %c0_0 = arith.constant 0 : index
    %c0_1 = arith.constant 0 : index
    %0 = vector.load %arg2[%c0, %c0_0, %c0_1] : memref<1x4x16xbf16, #tpu.memory_space<vmem>>, vector<1x4x16xbf16>
    %1 = vector.shape_cast %0 : vector<1x4x16xbf16> to vector<4x16xbf16>
    %c0_2 = arith.constant 0 : index
    %c0_3 = arith.constant 0 : index
    %c0_4 = arith.constant 0 : index
    %2 = vector.load %arg3[%c0_2, %c0_3, %c0_4] : memref<1x16x256xbf16, #tpu.memory_space<vmem>>, vector<1x16x256xbf16>
    %3 = vector.shape_cast %2 : vector<1x16x256xbf16> to vector<16x256xbf16>
    %cst = arith.constant dense<0.000000e+00> : vector<4x256xf32>
    %4 = tpu.matmul %1, %3, %cst {dimension_numbers = #tpu.dot_dimension_numbers<[1], [0], [0], [1], [0, 0, 1, 1], [], []>} : vector<4x16xbf16>, vector<16x256xbf16>, vector<4x256xf32> -> vector<4x256xf32>
    %c0_5 = arith.constant 0 : index
    %c0_6 = arith.constant 0 : index
    %c0_7 = arith.constant 0 : index
    %5 = vector.load %arg4[%c0_5, %c0_6, %c0_7] : memref<1x1x256xf32, #tpu.memory_space<vmem>>, vector<1x1x256xf32>
    %6 = vector.shape_cast %5 : vector<1x1x256xf32> to vector<1x256xf32>
    %7 = vector.broadcast %6 : vector<1x256xf32> to vector<4x256xf32>
    %8 = arith.addf %4, %7 : vector<4x256xf32>
    %cst_8 = arith.constant 0.000000e+00 : f32
    %9 = vector.broadcast %cst_8 : f32 to vector<4x256xf32>
    %10 = arith.maximumf %8, %9 : vector<4x256xf32>
    %11 = arith.truncf %10 : vector<4x256xf32> to vector<4x256xbf16>
    %c0_9 = arith.constant 0 : index
    %c0_10 = arith.constant 0 : index
    %c0_11 = arith.constant 0 : index
    %12 = vector.load %arg5[%c0_9, %c0_10, %c0_11] : memref<1x4x256xbf16, #tpu.memory_space<vmem>>, vector<1x4x256xbf16>
    %13 = vector.shape_cast %12 : vector<1x4x256xbf16> to vector<4x256xbf16>
    %14 = vector.shape_cast %11 : vector<4x256xbf16> to vector<1x4x256xbf16>
    tpu.vector_store %arg5[%c0_9, %c0_10, %c0_11], %14 {strides = array<i32>} : memref<1x4x256xbf16, #tpu.memory_space<vmem>>, vector<1x4x256xbf16>,
    return
  }
  func.func @transform_0(%arg0: i32, %arg1: i32) -> (i32, i32, i32) {
    %c0_i32 = arith.constant 0 : i32
    %c0_i32_0 = arith.constant 0 : i32
    return %arg0, %arg1, %c0_i32 : i32, i32, i32
  }
  func.func @transform_1(%arg0: i32, %arg1: i32) -> (i32, i32, i32) {
    %c0_i32 = arith.constant 0 : i32
    %c0_i32_0 = arith.constant 0 : i32
    %c0_i32_1 = arith.constant 0 : i32
    return %arg0, %c0_i32, %c0_i32_0 : i32, i32, i32
  }
  func.func @transform_2(%arg0: i32, %arg1: i32) -> (i32, i32, i32) {
    %c0_i32 = arith.constant 0 : i32
    %c0_i32_0 = arith.constant 0 : i32
    %c0_i32_1 = arith.constant 0 : i32
    return %arg0, %c0_i32, %c0_i32_0 : i32, i32, i32
  }
  func.func @transform_3(%arg0: i32, %arg1: i32) -> (i32, i32, i32) {
    %c0_i32 = arith.constant 0 : i32
    %c0_i32_0 = arith.constant 0 : i32
    return %arg0, %arg1, %c0_i32 : i32, i32, i32
  }
}

module attributes {stable_mosaic.version = 11 : i64} {
  func.func @_matmul_kernel(%arg0: i32, %arg1: i32, %arg2: memref<1x4x144xbf16, #tpu.memory_space<vmem>>, %arg3: memref<1x144x16xbf16, #tpu.memory_space<vmem>>, %arg4: memref<1x1x16xf32, #tpu.memory_space<vmem>>, %arg5: memref<1x4x16xbf16, #tpu.memory_space<vmem>>) attributes {dimension_semantics = [#tpu.dimension_semantics<parallel>, #tpu.dimension_semantics<parallel>], iteration_bounds = array<i64: 2, 1>, scalar_prefetch = 0 : i64, scratch_operands = 0 : i64, tpu.core_type = #tpu.core_type<tc>, window_params = [{transform_indices = @transform_0, window_bounds = array<i64: 1, 4, 144>}, {transform_indices = @transform_1, window_bounds = array<i64: 1, 144, 16>}, {transform_indices = @transform_2, window_bounds = array<i64: 1, 1, 16>}, {transform_indices = @transform_3, window_bounds = array<i64: 1, 4, 16>}]} {
    %c0 = arith.constant 0 : index
    %c0_0 = arith.constant 0 : index
    %c0_1 = arith.constant 0 : index
    %0 = vector.load %arg2[%c0, %c0_0, %c0_1] : memref<1x4x144xbf16, #tpu.memory_space<vmem>>, vector<1x4x144xbf16>
    %1 = vector.shape_cast %0 : vector<1x4x144xbf16> to vector<4x144xbf16>
    %c0_2 = arith.constant 0 : index
    %c0_3 = arith.constant 0 : index
    %c0_4 = arith.constant 0 : index
    %2 = vector.load %arg3[%c0_2, %c0_3, %c0_4] : memref<1x144x16xbf16, #tpu.memory_space<vmem>>, vector<1x144x16xbf16>
    %3 = vector.shape_cast %2 : vector<1x144x16xbf16> to vector<144x16xbf16>
    %cst = arith.constant dense<0.000000e+00> : vector<4x16xf32>
    %4 = tpu.matmul %1, %3, %cst {dimension_numbers = #tpu.dot_dimension_numbers<[1], [0], [0], [1], [0, 0, 1, 1], [], []>} : vector<4x144xbf16>, vector<144x16xbf16>, vector<4x16xf32> -> vector<4x16xf32>
    %c0_5 = arith.constant 0 : index
    %c0_6 = arith.constant 0 : index
    %c0_7 = arith.constant 0 : index
    %5 = vector.load %arg4[%c0_5, %c0_6, %c0_7] : memref<1x1x16xf32, #tpu.memory_space<vmem>>, vector<1x1x16xf32>
    %6 = vector.shape_cast %5 : vector<1x1x16xf32> to vector<1x16xf32>
    %7 = vector.broadcast %6 : vector<1x16xf32> to vector<4x16xf32>
    %8 = arith.addf %4, %7 : vector<4x16xf32>
    %cst_8 = arith.constant 0.000000e+00 : f32
    %9 = vector.broadcast %cst_8 : f32 to vector<4x16xf32>
    %10 = arith.maximumf %8, %9 : vector<4x16xf32>
    %11 = arith.truncf %10 : vector<4x16xf32> to vector<4x16xbf16>
    %c0_9 = arith.constant 0 : index
    %c0_10 = arith.constant 0 : index
    %c0_11 = arith.constant 0 : index
    %12 = vector.load %arg5[%c0_9, %c0_10, %c0_11] : memref<1x4x16xbf16, #tpu.memory_space<vmem>>, vector<1x4x16xbf16>
    %13 = vector.shape_cast %12 : vector<1x4x16xbf16> to vector<4x16xbf16>
    %14 = vector.shape_cast %11 : vector<4x16xbf16> to vector<1x4x16xbf16>
    tpu.vector_store %arg5[%c0_9, %c0_10, %c0_11], %14 {strides = array<i32>} : memref<1x4x16xbf16, #tpu.memory_space<vmem>>, vector<1x4x16xbf16>,
    return
  }
  func.func @transform_0(%arg0: i32, %arg1: i32) -> (i32, i32, i32) {
    %c0_i32 = arith.constant 0 : i32
    %c0_i32_0 = arith.constant 0 : i32
    return %arg0, %arg1, %c0_i32 : i32, i32, i32
  }
  func.func @transform_1(%arg0: i32, %arg1: i32) -> (i32, i32, i32) {
    %c0_i32 = arith.constant 0 : i32
    %c0_i32_0 = arith.constant 0 : i32
    %c0_i32_1 = arith.constant 0 : i32
    return %arg0, %c0_i32, %c0_i32_0 : i32, i32, i32
  }
  func.func @transform_2(%arg0: i32, %arg1: i32) -> (i32, i32, i32) {
    %c0_i32 = arith.constant 0 : i32
    %c0_i32_0 = arith.constant 0 : i32
    %c0_i32_1 = arith.constant 0 : i32
    return %arg0, %c0_i32, %c0_i32_0 : i32, i32, i32
  }
  func.func @transform_3(%arg0: i32, %arg1: i32) -> (i32, i32, i32) {
    %c0_i32 = arith.constant 0 : i32
    %c0_i32_0 = arith.constant 0 : i32
    return %arg0, %arg1, %c0_i32 : i32, i32, i32
  }
}

module attributes {stable_mosaic.version = 11 : i64} {
  func.func @_matmul_kernel(%arg0: i32, %arg1: i32, %arg2: memref<1x16x8xbf16, #tpu.memory_space<vmem>>, %arg3: memref<1x8x64xbf16, #tpu.memory_space<vmem>>, %arg4: memref<1x1x64xf32, #tpu.memory_space<vmem>>, %arg5: memref<1x16x64xbf16, #tpu.memory_space<vmem>>) attributes {dimension_semantics = [#tpu.dimension_semantics<parallel>, #tpu.dimension_semantics<parallel>], iteration_bounds = array<i64: 2, 1>, scalar_prefetch = 0 : i64, scratch_operands = 0 : i64, tpu.core_type = #tpu.core_type<tc>, window_params = [{transform_indices = @transform_0, window_bounds = array<i64: 1, 16, 8>}, {transform_indices = @transform_1, window_bounds = array<i64: 1, 8, 64>}, {transform_indices = @transform_2, window_bounds = array<i64: 1, 1, 64>}, {transform_indices = @transform_3, window_bounds = array<i64: 1, 16, 64>}]} {
    %c0 = arith.constant 0 : index
    %c0_0 = arith.constant 0 : index
    %c0_1 = arith.constant 0 : index
    %0 = vector.load %arg2[%c0, %c0_0, %c0_1] : memref<1x16x8xbf16, #tpu.memory_space<vmem>>, vector<1x16x8xbf16>
    %1 = vector.shape_cast %0 : vector<1x16x8xbf16> to vector<16x8xbf16>
    %c0_2 = arith.constant 0 : index
    %c0_3 = arith.constant 0 : index
    %c0_4 = arith.constant 0 : index
    %2 = vector.load %arg3[%c0_2, %c0_3, %c0_4] : memref<1x8x64xbf16, #tpu.memory_space<vmem>>, vector<1x8x64xbf16>
    %3 = vector.shape_cast %2 : vector<1x8x64xbf16> to vector<8x64xbf16>
    %cst = arith.constant dense<0.000000e+00> : vector<16x64xf32>
    %4 = tpu.matmul %1, %3, %cst {dimension_numbers = #tpu.dot_dimension_numbers<[1], [0], [0], [1], [0, 0, 1, 1], [], []>} : vector<16x8xbf16>, vector<8x64xbf16>, vector<16x64xf32> -> vector<16x64xf32>
    %c0_5 = arith.constant 0 : index
    %c0_6 = arith.constant 0 : index
    %c0_7 = arith.constant 0 : index
    %5 = vector.load %arg4[%c0_5, %c0_6, %c0_7] : memref<1x1x64xf32, #tpu.memory_space<vmem>>, vector<1x1x64xf32>
    %6 = vector.shape_cast %5 : vector<1x1x64xf32> to vector<1x64xf32>
    %7 = vector.broadcast %6 : vector<1x64xf32> to vector<16x64xf32>
    %8 = arith.addf %4, %7 : vector<16x64xf32>
    %cst_8 = arith.constant 0.000000e+00 : f32
    %9 = vector.broadcast %cst_8 : f32 to vector<16x64xf32>
    %10 = arith.maximumf %8, %9 : vector<16x64xf32>
    %11 = arith.truncf %10 : vector<16x64xf32> to vector<16x64xbf16>
    %c0_9 = arith.constant 0 : index
    %c0_10 = arith.constant 0 : index
    %c0_11 = arith.constant 0 : index
    %12 = vector.load %arg5[%c0_9, %c0_10, %c0_11] : memref<1x16x64xbf16, #tpu.memory_space<vmem>>, vector<1x16x64xbf16>
    %13 = vector.shape_cast %12 : vector<1x16x64xbf16> to vector<16x64xbf16>
    %14 = vector.shape_cast %11 : vector<16x64xbf16> to vector<1x16x64xbf16>
    tpu.vector_store %arg5[%c0_9, %c0_10, %c0_11], %14 {strides = array<i32>} : memref<1x16x64xbf16, #tpu.memory_space<vmem>>, vector<1x16x64xbf16>,
    return
  }
  func.func @transform_0(%arg0: i32, %arg1: i32) -> (i32, i32, i32) {
    %c0_i32 = arith.constant 0 : i32
    %c0_i32_0 = arith.constant 0 : i32
    return %arg0, %arg1, %c0_i32 : i32, i32, i32
  }
  func.func @transform_1(%arg0: i32, %arg1: i32) -> (i32, i32, i32) {
    %c0_i32 = arith.constant 0 : i32
    %c0_i32_0 = arith.constant 0 : i32
    %c0_i32_1 = arith.constant 0 : i32
    return %arg0, %c0_i32, %c0_i32_0 : i32, i32, i32
  }
  func.func @transform_2(%arg0: i32, %arg1: i32) -> (i32, i32, i32) {
    %c0_i32 = arith.constant 0 : i32
    %c0_i32_0 = arith.constant 0 : i32
    %c0_i32_1 = arith.constant 0 : i32
    return %arg0, %c0_i32, %c0_i32_0 : i32, i32, i32
  }
  func.func @transform_3(%arg0: i32, %arg1: i32) -> (i32, i32, i32) {
    %c0_i32 = arith.constant 0 : i32
    %c0_i32_0 = arith.constant 0 : i32
    return %arg0, %arg1, %c0_i32 : i32, i32, i32
  }
}

module attributes {stable_mosaic.version = 11 : i64} {
  func.func @_matmul_kernel(%arg0: i32, %arg1: i32, %arg2: memref<1x64x8xbf16, #tpu.memory_space<vmem>>, %arg3: memref<1x8x16xbf16, #tpu.memory_space<vmem>>, %arg4: memref<1x1x16xf32, #tpu.memory_space<vmem>>, %arg5: memref<1x64x16xbf16, #tpu.memory_space<vmem>>) attributes {dimension_semantics = [#tpu.dimension_semantics<parallel>, #tpu.dimension_semantics<parallel>], iteration_bounds = array<i64: 2, 1>, scalar_prefetch = 0 : i64, scratch_operands = 0 : i64, tpu.core_type = #tpu.core_type<tc>, window_params = [{transform_indices = @transform_0, window_bounds = array<i64: 1, 64, 8>}, {transform_indices = @transform_1, window_bounds = array<i64: 1, 8, 16>}, {transform_indices = @transform_2, window_bounds = array<i64: 1, 1, 16>}, {transform_indices = @transform_3, window_bounds = array<i64: 1, 64, 16>}]} {
    %c0 = arith.constant 0 : index
    %c0_0 = arith.constant 0 : index
    %c0_1 = arith.constant 0 : index
    %0 = vector.load %arg2[%c0, %c0_0, %c0_1] : memref<1x64x8xbf16, #tpu.memory_space<vmem>>, vector<1x64x8xbf16>
    %1 = vector.shape_cast %0 : vector<1x64x8xbf16> to vector<64x8xbf16>
    %c0_2 = arith.constant 0 : index
    %c0_3 = arith.constant 0 : index
    %c0_4 = arith.constant 0 : index
    %2 = vector.load %arg3[%c0_2, %c0_3, %c0_4] : memref<1x8x16xbf16, #tpu.memory_space<vmem>>, vector<1x8x16xbf16>
    %3 = vector.shape_cast %2 : vector<1x8x16xbf16> to vector<8x16xbf16>
    %cst = arith.constant dense<0.000000e+00> : vector<64x16xf32>
    %4 = tpu.matmul %1, %3, %cst {dimension_numbers = #tpu.dot_dimension_numbers<[1], [0], [0], [1], [0, 0, 1, 1], [], []>} : vector<64x8xbf16>, vector<8x16xbf16>, vector<64x16xf32> -> vector<64x16xf32>
    %c0_5 = arith.constant 0 : index
    %c0_6 = arith.constant 0 : index
    %c0_7 = arith.constant 0 : index
    %5 = vector.load %arg4[%c0_5, %c0_6, %c0_7] : memref<1x1x16xf32, #tpu.memory_space<vmem>>, vector<1x1x16xf32>
    %6 = vector.shape_cast %5 : vector<1x1x16xf32> to vector<1x16xf32>
    %7 = vector.broadcast %6 : vector<1x16xf32> to vector<64x16xf32>
    %8 = arith.addf %4, %7 : vector<64x16xf32>
    %cst_8 = arith.constant 0.000000e+00 : f32
    %9 = vector.broadcast %cst_8 : f32 to vector<64x16xf32>
    %10 = arith.maximumf %8, %9 : vector<64x16xf32>
    %11 = arith.truncf %10 : vector<64x16xf32> to vector<64x16xbf16>
    %c0_9 = arith.constant 0 : index
    %c0_10 = arith.constant 0 : index
    %c0_11 = arith.constant 0 : index
    %12 = vector.load %arg5[%c0_9, %c0_10, %c0_11] : memref<1x64x16xbf16, #tpu.memory_space<vmem>>, vector<1x64x16xbf16>
    %13 = vector.shape_cast %12 : vector<1x64x16xbf16> to vector<64x16xbf16>
    %14 = vector.shape_cast %11 : vector<64x16xbf16> to vector<1x64x16xbf16>
    tpu.vector_store %arg5[%c0_9, %c0_10, %c0_11], %14 {strides = array<i32>} : memref<1x64x16xbf16, #tpu.memory_space<vmem>>, vector<1x64x16xbf16>,
    return
  }
  func.func @transform_0(%arg0: i32, %arg1: i32) -> (i32, i32, i32) {
    %c0_i32 = arith.constant 0 : i32
    %c0_i32_0 = arith.constant 0 : i32
    return %arg0, %arg1, %c0_i32 : i32, i32, i32
  }
  func.func @transform_1(%arg0: i32, %arg1: i32) -> (i32, i32, i32) {
    %c0_i32 = arith.constant 0 : i32
    %c0_i32_0 = arith.constant 0 : i32
    %c0_i32_1 = arith.constant 0 : i32
    return %arg0, %c0_i32, %c0_i32_0 : i32, i32, i32
  }
  func.func @transform_2(%arg0: i32, %arg1: i32) -> (i32, i32, i32) {
    %c0_i32 = arith.constant 0 : i32
    %c0_i32_0 = arith.constant 0 : i32
    %c0_i32_1 = arith.constant 0 : i32
    return %arg0, %c0_i32, %c0_i32_0 : i32, i32, i32
  }
  func.func @transform_3(%arg0: i32, %arg1: i32) -> (i32, i32, i32) {
    %c0_i32 = arith.constant 0 : i32
    %c0_i32_0 = arith.constant 0 : i32
    return %arg0, %arg1, %c0_i32 : i32, i32, i32
  }
}

module attributes {stable_mosaic.version = 11 : i64} {
  func.func @kernel(%arg0: i32, %arg1: memref<2x64x16xbf16, #tpu.memory_space<vmem>>, %arg2: memref<2x64x16xbf16, #tpu.memory_space<vmem>>, %arg3: memref<2x64x16xbf16, #tpu.memory_space<vmem>>, %arg4: memref<16x22xbf16, #tpu.memory_space<vmem>>, %arg5: memref<16x22xbf16, #tpu.memory_space<vmem>>, %arg6: memref<16x22xbf16, #tpu.memory_space<vmem>>, %arg7: memref<1x22xf32, #tpu.memory_space<vmem>>, %arg8: memref<64x22xf32, #tpu.memory_space<vmem>>) attributes {dimension_semantics = [#tpu.dimension_semantics<parallel>], iteration_bounds = array<i64: 1>, scalar_prefetch = 0 : i64, scratch_operands = 0 : i64, tpu.core_type = #tpu.core_type<tc>, window_params = [{transform_indices = @transform_0, window_bounds = array<i64: 2, 64, 16>}, {transform_indices = @transform_1, window_bounds = array<i64: 2, 64, 16>}, {transform_indices = @transform_2, window_bounds = array<i64: 2, 64, 16>}, {pipeline_mode = #tpu.pipeline_mode<synchronous>, transform_indices = @transform_3, window_bounds = array<i64: 16, 22>}, {pipeline_mode = #tpu.pipeline_mode<synchronous>, transform_indices = @transform_4, window_bounds = array<i64: 16, 22>}, {pipeline_mode = #tpu.pipeline_mode<synchronous>, transform_indices = @transform_5, window_bounds = array<i64: 16, 22>}, {pipeline_mode = #tpu.pipeline_mode<synchronous>, transform_indices = @transform_6, window_bounds = array<i64: 1, 22>}, {transform_indices = @transform_7, window_bounds = array<i64: 64, 22>}]} {
    %c0 = arith.constant 0 : index
    %c0_0 = arith.constant 0 : index
    %c0_1 = arith.constant 0 : index
    %0 = vector.load %arg1[%c0, %c0_0, %c0_1] : memref<2x64x16xbf16, #tpu.memory_space<vmem>>, vector<1x64x16xbf16>
    %1 = vector.shape_cast %0 : vector<1x64x16xbf16> to vector<64x16xbf16>
    %c1 = arith.constant 1 : index
    %c0_2 = arith.constant 0 : index
    %c0_3 = arith.constant 0 : index
    %2 = vector.load %arg1[%c1, %c0_2, %c0_3] : memref<2x64x16xbf16, #tpu.memory_space<vmem>>, vector<1x64x16xbf16>
    %3 = vector.shape_cast %2 : vector<1x64x16xbf16> to vector<64x16xbf16>
    %4 = arith.addf %1, %3 : vector<64x16xbf16>
    %c0_4 = arith.constant 0 : index
    %c0_5 = arith.constant 0 : index
    %5 = vector.load %arg4[%c0_4, %c0_5] : memref<16x22xbf16, #tpu.memory_space<vmem>>, vector<16x22xbf16>
    %cst = arith.constant dense<0.000000e+00> : vector<64x22xf32>
    %6 = tpu.matmul %4, %5, %cst {dimension_numbers = #tpu.dot_dimension_numbers<[1], [0], [0], [1], [0, 0, 1, 1], [], []>} : vector<64x16xbf16>, vector<16x22xbf16>, vector<64x22xf32> -> vector<64x22xf32>
    %c0_6 = arith.constant 0 : index
    %c0_7 = arith.constant 0 : index
    %c0_8 = arith.constant 0 : index
    %7 = vector.load %arg2[%c0_6, %c0_7, %c0_8] : memref<2x64x16xbf16, #tpu.memory_space<vmem>>, vector<1x64x16xbf16>
    %8 = vector.shape_cast %7 : vector<1x64x16xbf16> to vector<64x16xbf16>
    %c1_9 = arith.constant 1 : index
    %c0_10 = arith.constant 0 : index
    %c0_11 = arith.constant 0 : index
    %9 = vector.load %arg2[%c1_9, %c0_10, %c0_11] : memref<2x64x16xbf16, #tpu.memory_space<vmem>>, vector<1x64x16xbf16>
    %10 = vector.shape_cast %9 : vector<1x64x16xbf16> to vector<64x16xbf16>
    %11 = arith.addf %8, %10 : vector<64x16xbf16>
    %c0_12 = arith.constant 0 : index
    %c0_13 = arith.constant 0 : index
    %12 = vector.load %arg5[%c0_12, %c0_13] : memref<16x22xbf16, #tpu.memory_space<vmem>>, vector<16x22xbf16>
    %cst_14 = arith.constant dense<0.000000e+00> : vector<64x22xf32>
    %13 = tpu.matmul %11, %12, %cst_14 {dimension_numbers = #tpu.dot_dimension_numbers<[1], [0], [0], [1], [0, 0, 1, 1], [], []>} : vector<64x16xbf16>, vector<16x22xbf16>, vector<64x22xf32> -> vector<64x22xf32>
    %14 = arith.addf %6, %13 : vector<64x22xf32>
    %c0_15 = arith.constant 0 : index
    %c0_16 = arith.constant 0 : index
    %c0_17 = arith.constant 0 : index
    %15 = vector.load %arg3[%c0_15, %c0_16, %c0_17] : memref<2x64x16xbf16, #tpu.memory_space<vmem>>, vector<1x64x16xbf16>
    %16 = vector.shape_cast %15 : vector<1x64x16xbf16> to vector<64x16xbf16>
    %c1_18 = arith.constant 1 : index
    %c0_19 = arith.constant 0 : index
    %c0_20 = arith.constant 0 : index
    %17 = vector.load %arg3[%c1_18, %c0_19, %c0_20] : memref<2x64x16xbf16, #tpu.memory_space<vmem>>, vector<1x64x16xbf16>
    %18 = vector.shape_cast %17 : vector<1x64x16xbf16> to vector<64x16xbf16>
    %19 = arith.addf %16, %18 : vector<64x16xbf16>
    %c0_21 = arith.constant 0 : index
    %c0_22 = arith.constant 0 : index
    %20 = vector.load %arg6[%c0_21, %c0_22] : memref<16x22xbf16, #tpu.memory_space<vmem>>, vector<16x22xbf16>
    %cst_23 = arith.constant dense<0.000000e+00> : vector<64x22xf32>
    %21 = tpu.matmul %19, %20, %cst_23 {dimension_numbers = #tpu.dot_dimension_numbers<[1], [0], [0], [1], [0, 0, 1, 1], [], []>} : vector<64x16xbf16>, vector<16x22xbf16>, vector<64x22xf32> -> vector<64x22xf32>
    %22 = arith.addf %14, %21 : vector<64x22xf32>
    %c0_24 = arith.constant 0 : index
    %c0_25 = arith.constant 0 : index
    %23 = vector.load %arg7[%c0_24, %c0_25] : memref<1x22xf32, #tpu.memory_space<vmem>>, vector<1x22xf32>
    %24 = vector.broadcast %23 : vector<1x22xf32> to vector<64x22xf32>
    %25 = arith.addf %22, %24 : vector<64x22xf32>
    %c0_26 = arith.constant 0 : index
    %c0_27 = arith.constant 0 : index
    %26 = vector.load %arg8[%c0_26, %c0_27] : memref<64x22xf32, #tpu.memory_space<vmem>>, vector<64x22xf32>
    tpu.vector_store %arg8[%c0_26, %c0_27], %25 {strides = array<i32>} : memref<64x22xf32, #tpu.memory_space<vmem>>, vector<64x22xf32>,
    return
  }
  func.func @transform_0(%arg0: i32) -> (i32, i32, i32) {
    %c0_i32 = arith.constant 0 : i32
    %c0_i32_0 = arith.constant 0 : i32
    %c0_i32_1 = arith.constant 0 : i32
    return %c0_i32, %arg0, %c0_i32_0 : i32, i32, i32
  }
  func.func @transform_1(%arg0: i32) -> (i32, i32, i32) {
    %c0_i32 = arith.constant 0 : i32
    %c0_i32_0 = arith.constant 0 : i32
    %c0_i32_1 = arith.constant 0 : i32
    return %c0_i32, %arg0, %c0_i32_0 : i32, i32, i32
  }
  func.func @transform_2(%arg0: i32) -> (i32, i32, i32) {
    %c0_i32 = arith.constant 0 : i32
    %c0_i32_0 = arith.constant 0 : i32
    %c0_i32_1 = arith.constant 0 : i32
    return %c0_i32, %arg0, %c0_i32_0 : i32, i32, i32
  }
  func.func @transform_3(%arg0: i32) -> (i32, i32) {
    %c0_i32 = arith.constant 0 : i32
    %c0_i32_0 = arith.constant 0 : i32
    %c0_i32_1 = arith.constant 0 : i32
    return %c0_i32, %c0_i32_0 : i32, i32
  }
  func.func @transform_4(%arg0: i32) -> (i32, i32) {
    %c0_i32 = arith.constant 0 : i32
    %c0_i32_0 = arith.constant 0 : i32
    %c0_i32_1 = arith.constant 0 : i32
    return %c0_i32, %c0_i32_0 : i32, i32
  }
  func.func @transform_5(%arg0: i32) -> (i32, i32) {
    %c0_i32 = arith.constant 0 : i32
    %c0_i32_0 = arith.constant 0 : i32
    %c0_i32_1 = arith.constant 0 : i32
    return %c0_i32, %c0_i32_0 : i32, i32
  }
  func.func @transform_6(%arg0: i32) -> (i32, i32) {
    %c0_i32 = arith.constant 0 : i32
    %c0_i32_0 = arith.constant 0 : i32
    %c0_i32_1 = arith.constant 0 : i32
    return %c0_i32, %c0_i32_0 : i32, i32
  }
  func.func @transform_7(%arg0: i32) -> (i32, i32) {
    %c0_i32 = arith.constant 0 : i32
    %c0_i32_0 = arith.constant 0 : i32
    return %arg0, %c0_i32 : i32, i32
  }
}

</mosaic_0001>

<llo_original>
// kernel: _lambda_.10
$region0: #{_lambda_.10}
  #allocation0 [shape = 'u32[]', space=smem, size = 0x4, offset = 0x4, fixed_abs, tag = 'smem constant byte address 0x4 - core index']
  #allocation1 [shape = 'u32[144,128]{1,0:T(1,128)}', space=vmem, size = 0x12000, scoped, tag = 'internal scratch']
  %s0 = inlined_call_operand.vmem [shape: bf16[2,64,72], index: 0, kind: input, shape index: {}]
  %s1 = inlined_call_operand.vmem [shape: bf16[2,72,8], index: 1, kind: input, shape index: {}]
  %s2 = inlined_call_operand.vmem [shape: f32[2,1,8], index: 2, kind: input, shape index: {}]
  %s3 = inlined_call_operand.vmem [shape: bf16[2,64,8], index: 3, kind: output, shape index: {}]
  %s4 = sld [smem:[#allocation0]]
  $region45: #{_lambda_.10} parent=0
    _
  %s6 = ssub.s32 1, %s4
  %s7 = scalar_select 0, %s6, %s4
  loop: start=0, step=1, limit=4
  $region2: #{_lambda_.10} parent=0 // loop_pre_header
    _
  $region3: #{_lambda_.10} parent=0 // loop_header
    %s9 = sphi 0, %s13
    %p10 = scmp.ge.s32.totalorder %s9, 4
    %s16 = sphi 0, %s28
    %s17 = sphi 0, %s24
    %s18 = sphi 0, %s16
    %s19 = sphi 0, %s17
    %s20 = sphi 0, %s18
    %s21 = sphi 0, %s19
    %s33 = sphi 0, %s35
    %s36 = sphi 0, %s33
    %s37 = sphi 0, %s36
    %s53 = sphi 0, %s37
    %s59 = sphi 0, %s61
    %s62 = sphi 0, %s59
    %s63 = sphi 0, %s62
    %s79 = sphi 0, %s63
    %s85 = sphi 0, %s87
    %s88 = sphi 0, %s85
    %s89 = sphi 0, %s88
    %s105 = sphi 0, %s89
    %s113 = sphi 0, %s115
    %s116 = sphi 0, %s113
    %s117 = sphi 0, %s116
    %s133 = sphi 0, %s117
  $region4: #{_lambda_.10} parent=0 // loop_header_branch
    %12 = sbr.rel (%p10) target = $region8
  $region5: #{_lambda_.10} parent=0 // loop_body
    %s14 = ssub.s32 %s9, 1
    %s15 = ssub.s32 %s9, 2
    %s22 = sadd.s32 1, %s17
    %p23 = scmp.ge.s32.totalorder %s22, 1
    %s24 = scalar_select %p23, 0, %s22
    %s25 = sadd.s32 1, %s16
    %s26 = scalar_select %p23, %s25, %s16
    %p27 = scmp.ge.s32.totalorder %s26, 2
    %s28 = scalar_select %p27, 0, %s26
    %s29 = ssub.s32 %s16, %s28
    %s30 = ssub.s32 %s17, %s24
    %s31 = sor.u32 %s29, %s30
    %p32 = scmp.eq.s32.totalorder %s31, 0
    %s34 = sadd.s32 %s33, 1
    %s35 = scalar_select %p32, %s33, %s34
    %p38 = pneg %p32
    %p39 = scmp.eq.s32.totalorder %s9, 1
    %p40 = por %p38, %p39
    %p41 = scmp.ne.s32.totalorder %s33, %s36
    %p42 = scmp.eq.s32.totalorder %s9, 0
    %p43 = por %p41, %p42
    %p44 = scmp.ne.s32.totalorder %s33, %s36
    %p45 = scmp.eq.s32.totalorder %s14, 1
    %p46 = por %p44, %p45
    %p47 = scmp.ne.s32.totalorder %s36, %s37
    %p48 = scmp.eq.s32.totalorder %s14, 0
    %p49 = por %p47, %p48
    %p50 = scmp.ne.s32.totalorder %s36, %s37
    %p51 = scmp.eq.s32.totalorder %s15, 1
    %p52 = por %p50, %p51
    %p54 = scmp.ne.s32.totalorder %s37, %s53
    %p55 = scmp.eq.s32.totalorder %s15, 0
    %p56 = por %p54, %p55
    %s57 = ssub.s32 %s16, %s28
    %p58 = scmp.eq.s32.totalorder %s57, 0
    %s60 = sadd.s32 %s59, 1
    %s61 = scalar_select %p58, %s59, %s60
    %p64 = pneg %p58
    %p65 = scmp.eq.s32.totalorder %s9, 1
    %p66 = por %p64, %p65
    %p67 = scmp.ne.s32.totalorder %s59, %s62
    %p68 = scmp.eq.s32.totalorder %s9, 0
    %p69 = por %p67, %p68
    %p70 = scmp.ne.s32.totalorder %s59, %s62
    %p71 = scmp.eq.s32.totalorder %s14, 1
    %p72 = por %p70, %p71
    %p73 = scmp.ne.s32.totalorder %s62, %s63
    %p74 = scmp.eq.s32.totalorder %s14, 0
    %p75 = por %p73, %p74
    %p76 = scmp.ne.s32.totalorder %s62, %s63
    %p77 = scmp.eq.s32.totalorder %s15, 1
    %p78 = por %p76, %p77
    %p80 = scmp.ne.s32.totalorder %s63, %s79
    %p81 = scmp.eq.s32.totalorder %s15, 0
    %p82 = por %p80, %p81
    %s83 = ssub.s32 %s16, %s28
    %p84 = scmp.eq.s32.totalorder %s83, 0
    %s86 = sadd.s32 %s85, 1
    %s87 = scalar_select %p84, %s85, %s86
    %p90 = pneg %p84
    %p91 = scmp.eq.s32.totalorder %s9, 1
    %p92 = por %p90, %p91
    %p93 = scmp.ne.s32.totalorder %s85, %s88
    %p94 = scmp.eq.s32.totalorder %s9, 0
    %p95 = por %p93, %p94
    %p96 = scmp.ne.s32.totalorder %s85, %s88
    %p97 = scmp.eq.s32.totalorder %s14, 1
    %p98 = por %p96, %p97
    %p99 = scmp.ne.s32.totalorder %s88, %s89
    %p100 = scmp.eq.s32.totalorder %s14, 0
    %p101 = por %p99, %p100
    %p102 = scmp.ne.s32.totalorder %s88, %s89
    %p103 = scmp.eq.s32.totalorder %s15, 1
    %p104 = por %p102, %p103
    %p106 = scmp.ne.s32.totalorder %s89, %s105
    %p107 = scmp.eq.s32.totalorder %s15, 0
    %p108 = por %p106, %p107
    %s109 = ssub.s32 %s16, %s28
    %s110 = ssub.s32 %s17, %s24
    %s111 = sor.u32 %s109, %s110
    %p112 = scmp.eq.s32.totalorder %s111, 0
    %s114 = sadd.s32 %s113, 1
    %s115 = scalar_select %p112, %s113, %s114
    %p118 = pneg %p112
    %p119 = scmp.eq.s32.totalorder %s9, 1
    %p120 = por %p118, %p119
    %p121 = scmp.ne.s32.totalorder %s113, %s116
    %p122 = scmp.eq.s32.totalorder %s9, 0
    %p123 = por %p121, %p122
    %p124 = scmp.ne.s32.totalorder %s113, %s116
    %p125 = scmp.eq.s32.totalorder %s14, 1
    %p126 = por %p124, %p125
    %p127 = scmp.ne.s32.totalorder %s116, %s117
    %p128 = scmp.eq.s32.totalorder %s14, 0
    %p129 = por %p127, %p128
    %p130 = scmp.ne.s32.totalorder %s116, %s117
    %p131 = scmp.eq.s32.totalorder %s15, 1
    %p132 = por %p130, %p131
    %p134 = scmp.ne.s32.totalorder %s117, %s133
    %p135 = scmp.eq.s32.totalorder %s15, 0
    %p136 = por %p134, %p135
    %p137 = scmp.le.s32.totalorder 1, %s9
    %p138 = scmp.lt.s32.totalorder %s9, 3
    %p139 = pnand %p137, %p138
    %p140 = pneg %p139
    // Predicated region
    $region9: #{_lambda_.10} parent=5 // pred_check
      _
    $region10: #{_lambda_.10} parent=5 // pred_check_branch
      %142 = sbr.rel (%p139) target = $region12
    $region11: #{_lambda_.10} parent=5 // pred_region
      %s143 = ssub.s32 %s9, 1
    $region12: #{_lambda_.10} parent=5 // pred_fallthru
      _
    %p144 = scmp.lt.s32.totalorder %s9, 2
    // Predicated region
    $region13: #{_lambda_.10} parent=5 // pred_check
      %p145 = pneg %p144
    $region14: #{_lambda_.10} parent=5 // pred_check_branch
      %147 = sbr.rel (%p145) target = $region16
    $region15: #{_lambda_.10} parent=5 // pred_region
      // Predicated region
      $region17: #{_lambda_.10} parent=15 // pred_check
        %p148 = pneg %p43
      $region18: #{_lambda_.10} parent=15 // pred_check_branch
        %150 = sbr.rel (%p148) target = $region20
      $region19: #{_lambda_.10} parent=15 // pred_region
        %s151 = smul.u32 8, %s17
        %p152 = scmp.lt.s32.totalorder %s16, 1
        %s153 = scalar_select %p152, %s16, 1
        %p154 = scmp.lt.s32.totalorder %s151, 7
        %s155 = scalar_select %p154, %s151, 7
        %s156 = smul.addr %s153, 8
        %s157 = sadd.s32 %s155, %s156
        %s158 = smul.addr %s157, 4
        %s159 = scalar_lea.vmem %s0, %s158
        %s160 = smul.u32 8, %s17
      $region20: #{_lambda_.10} parent=15 // pred_fallthru
        _
      // Predicated region
      $region21: #{_lambda_.10} parent=15 // pred_check
        %p161 = pneg %p69
      $region22: #{_lambda_.10} parent=15 // pred_check_branch
        %163 = sbr.rel (%p161) target = $region24
      $region23: #{_lambda_.10} parent=15 // pred_region
        %p164 = scmp.lt.s32.totalorder %s16, 1
        %s165 = scalar_select %p164, %s16, 1
        %s166 = smul.addr %s165, 9
        %s167 = smul.addr %s166, 4
        %s168 = scalar_lea.vmem %s1, %s167
      $region24: #{_lambda_.10} parent=15 // pred_fallthru
        _
      // Predicated region
      $region25: #{_lambda_.10} parent=15 // pred_check
        %p169 = pneg %p95
      $region26: #{_lambda_.10} parent=15 // pred_check_branch
        %171 = sbr.rel (%p169) target = $region28
      $region27: #{_lambda_.10} parent=15 // pred_region
        %p172 = scmp.lt.s32.totalorder %s16, 1
        %s173 = scalar_select %p172, %s16, 1
        %s174 = scalar_lea.vmem %s2, %s173
      $region28: #{_lambda_.10} parent=15 // pred_fallthru
        _
    $region16: #{_lambda_.10} parent=5 // pred_fallthru
      _
    %p175 = scmp.le.s32.totalorder 1, %s9
    %p176 = scmp.lt.s32.totalorder %s9, 3
    %p177 = pnand %p175, %p176
    %p178 = pneg %p177
    // Predicated region
    $region29: #{_lambda_.10} parent=5 // pred_check
      _
    $region30: #{_lambda_.10} parent=5 // pred_check_branch
      %180 = sbr.rel (%p177) target = $region32
    $region31: #{_lambda_.10} parent=5 // pred_region
      %s181 = ssub.s32 %s9, 1
      %s182 = smul.u32 8, %s19
      %p183 = scmp.lt.s32.totalorder %s18, 1
      %s184 = scalar_select %p183, %s18, 1
      %p185 = scmp.lt.s32.totalorder %s182, 7
      %s186 = scalar_select %p185, %s182, 7
      %s187 = smul.addr %s184, 8
      %s188 = sadd.s32 %s186, %s187
      %s189 = smul.addr %s188, 4
      %s190 = scalar_lea.vmem %s0, %s189
      %p191 = pneg %p49
      %p192 = pneg %p46
      %p193 = scmp.lt.s32.totalorder %s18, 1
      %s194 = scalar_select %p193, %s18, 1
      %s195 = smul.addr %s194, 9
      %s196 = smul.addr %s195, 4
      %s197 = scalar_lea.vmem %s1, %s196
      %p198 = pneg %p75
      %p199 = pneg %p72
      %p200 = scmp.lt.s32.totalorder %s18, 1
      %s201 = scalar_select %p200, %s18, 1
      %s202 = scalar_lea.vmem %s2, %s201
      %p203 = pneg %p101
      %p204 = pneg %p98
      %p205 = pneg %p129
      %p206 = pneg %p126
      %s207 = smul.u32 8, %s19
      %p208 = scmp.lt.s32.totalorder %s18, 1
      %s209 = scalar_select %p208, %s18, 1
      %p210 = scmp.lt.s32.totalorder %s207, 7
      %s211 = scalar_select %p210, %s207, 7
      %s212 = smul.addr %s209, 8
      %s213 = sadd.s32 %s211, %s212
      %s214 = smul.addr %s213, 4
      %s215 = scalar_lea.vmem %s3, %s214
      %s216 = smul.u32 8, %s19
      %p217 = scmp.lt.s32.totalorder %s18, 1
      %s218 = scalar_select %p217, %s18, 1
      %p219 = scmp.lt.s32.totalorder %s216, 7
      %s220 = scalar_select %p219, %s216, 7
      %s221 = smul.addr %s218, 8
      %s222 = sadd.s32 %s220, %s221
      %s223 = smul.addr %s222, 4
      %s224 = scalar_lea.vmem %s0, %s223
      %s225 = smul.u32 8, %s19
      %p226 = scmp.lt.s32.totalorder %s18, 1
      %s227 = scalar_select %p226, %s18, 1
      %s228 = smul.addr %s227, 9
      %s229 = smul.addr %s228, 4
      %s230 = scalar_lea.vmem %s1, %s229
      %p231 = scmp.lt.s32.totalorder %s18, 1
      %s232 = scalar_select %p231, %s18, 1
      %s233 = scalar_lea.vmem %s2, %s232
      %s234 = smul.u32 8, %s19
      %p235 = scmp.lt.s32.totalorder %s18, 1
      %s236 = scalar_select %p235, %s18, 1
      %p237 = scmp.lt.s32.totalorder %s234, 7
      %s238 = scalar_select %p237, %s234, 7
      %s239 = smul.addr %s236, 8
      %s240 = sadd.s32 %s238, %s239
      %s241 = smul.addr %s240, 4
      %s242 = scalar_lea.vmem %s3, %s241
      %s243 = smul.u32 8, %s19
      %v245 = vld [vmem:[%s224] sm:$0xf]
      %v246 = vld [vmem:[%s224 + $0x4] sm:$0xf]
      %v247 = vld [vmem:[%s224 + $0x8] sm:$0xf]
      %v248 = vld [vmem:[%s224 + $0xc] sm:$0xf]
      %v249 = vld [vmem:[%s224 + $0x10] sm:$0xf]
      %v250 = vld [vmem:[%s224 + $0x14] sm:$0xf]
      %v251 = vld [vmem:[%s224 + $0x18] sm:$0xf]
      %v252 = vld [vmem:[%s224 + $0x1c] sm:$0xf]
      %v253 = vld [vmem:[%s230] sm:$0xf]
      %v254 = vld [vmem:[%s230 + $0x4] sm:$0xf]
      %v255 = vld [vmem:[%s230 + $0x8] sm:$0xf]
      %v256 = vld [vmem:[%s230 + $0xc] sm:$0xf]
      %v257 = vld [vmem:[%s230 + $0x10] sm:$0xf]
      %v258 = vld [vmem:[%s230 + $0x14] sm:$0xf]
      %v259 = vld [vmem:[%s230 + $0x18] sm:$0xf]
      %v260 = vld [vmem:[%s230 + $0x1c] sm:$0xf]
      %v261 = vld [vmem:[%s230 + $0x20] sm:$0xf]
      %v262 = vld [vmem:[%s233] sm:$0x1]
      %v264 = vlaneseq
      %v265 = vshrl.u32 %v264, 7
      %v266 = vsub.s32 0, %v265
      %v267 = vrot.slane %v262, %v266
      %v277 = vunpack.c.l.b16 %v245
      %v278 = vunpack.c.l.b16 %v246
      %v279 = vunpack.c.l.b16 %v247
      %v280 = vunpack.c.l.b16 %v248
      %v281 = vunpack.c.l.b16 %v249
      %v282 = vunpack.c.l.b16 %v250
      %v283 = vunpack.c.l.b16 %v251
      %v284 = vunpack.c.l.b16 %v252
      %v285 = vpack.c.b16 %v278, %v277
      %v286 = vpack.c.b16 %v280, %v279
      %v287 = vpack.c.b16 %v282, %v281
      %v288 = vpack.c.b16 %v284, %v283
      %v298 = vunpack.c.l.b16 %v253
      %v299 = vunpack.c.l.b16 %v254
      %v300 = vunpack.c.l.b16 %v255
      %v301 = vunpack.c.l.b16 %v256
      %v302 = vunpack.c.l.b16 %v257
      %v303 = vunpack.c.l.b16 %v258
      %v304 = vunpack.c.l.b16 %v259
      %v305 = vunpack.c.l.b16 %v260
      %v306 = vunpack.c.l.b16 %v261
      %v307 = vpack.c.b16 %v299, %v298
      %v308 = vpack.c.b16 %v301, %v300
      %v309 = vpack.c.b16 %v303, %v302
      %v310 = vpack.c.b16 %v305, %v304
      %v311 = vpack.c.b16 %v306, %v306
      %vm316 = vcmask 588800
      %v318 = vsel %vm316, %v285, 0
      %v321 = vsel %vm316, %v286, 0
      %v324 = vsel %vm316, %v287, 0
      %v327 = vsel %vm316, %v288, 0
      %vm329 = vcmask 1043456
      %v331 = vsel %vm329, %v311, 0
      %333 = vmatprep.subr.bf16.mxu0 0
      %334 = vmatpush1.bf16.msra.mxu0 %v307
      %335 = vmatprep.subr.bf16.mxu0 0
      %336 = vmatpush1.bf16.msra.mxu0 %v308
      %337 = vmatprep.subr.bf16.mxu0 0
      %338 = vmatpush1.bf16.msra.mxu0 %v309
      %339 = vmatprep.subr.bf16.mxu0 0
      %340 = vmatpush1.bf16.msra.mxu0 %v310
      %341 = vmatprep.subr.bf16.mxu0 0
      %342 = vmatpush1.bf16.msra.mxu0 %v331
      %343 = vmatprep.subr.bf16.mxu0 0
      %344 = vmatpush1.bf16.msra.mxu0 0
      %345 = vmatprep.subr.bf16.mxu0 0
      %346 = vmatpush1.bf16.msra.mxu0 0
      %347 = vmatprep.subr.bf16.mxu0 0
      %348 = vmatpush1.bf16.msra.mxu0 0
      %349 = vmatprep.subr.bf16.mxu0 0
      %350 = vmatpush1.bf16.msra.mxu0 0
      %351 = vmatprep.subr.bf16.mxu0 0
      %352 = vmatpush1.bf16.msra.mxu0 0
      %353 = vmatprep.subr.bf16.mxu0 0
      %354 = vmatpush1.bf16.msra.mxu0 0
      %355 = vmatprep.subr.bf16.mxu0 0
      %356 = vmatpush1.bf16.msra.mxu0 0
      %357 = vmatprep.subr.bf16.mxu0 0
      %358 = vmatpush1.bf16.msra.mxu0 0
      %359 = vmatprep.subr.bf16.mxu0 0
      %360 = vmatpush1.bf16.msra.mxu0 0
      %361 = vmatprep.subr.bf16.mxu0 0
      %362 = vmatpush1.bf16.msra.mxu0 0
      %363 = vmatprep.subr.bf16.mxu0 0
      %364 = vmatpush1.bf16.msra.mxu0 0
      %365 = vmatprep.mubr.bf16.mxu0 0
      %366 = vmatmul.mubr.bf16.gmra.mrb[0].mxu0 %v318
      %v367 = vpop.f32.mrb[0].mxu0
      %v368 = vadd.f32 %v267, %v367
      %v369 = vpop.f32.mrb[0].mxu0
      %v370 = vpop.f32.mrb[0].mxu0
      %v371 = vadd.f32 %v267, %v370
      %v372 = vpop.f32.mrb[0].mxu0
      %373 = vmatprep.mubr.bf16.mxu0 0
      %374 = vmatmul.mubr.bf16.gmra.mrb[0].mxu0 %v321
      %v375 = vpop.f32.mrb[0].mxu0
      %v376 = vadd.f32 %v267, %v375
      %v377 = vpop.f32.mrb[0].mxu0
      %v378 = vpop.f32.mrb[0].mxu0
      %v379 = vadd.f32 %v267, %v378
      %v380 = vpop.f32.mrb[0].mxu0
      %381 = vmatprep.mubr.bf16.mxu0 0
      %382 = vmatmul.mubr.bf16.gmra.mrb[0].mxu0 %v324
      %v383 = vpop.f32.mrb[0].mxu0
      %v384 = vadd.f32 %v267, %v383
      %v385 = vpop.f32.mrb[0].mxu0
      %v386 = vpop.f32.mrb[0].mxu0
      %v387 = vadd.f32 %v267, %v386
      %v388 = vpop.f32.mrb[0].mxu0
      %389 = vmatprep.mubr.bf16.mxu0 0
      %390 = vmatmul.mubr.bf16.gmra.mrb[0].mxu0 %v327
      %v391 = vpop.f32.mrb[0].mxu0
      %v392 = vadd.f32 %v267, %v391
      %v393 = vpop.f32.mrb[0].mxu0
      %v394 = vpop.f32.mrb[0].mxu0
      %v395 = vadd.f32 %v267, %v394
      %v396 = vpop.f32.mrb[0].mxu0
      %397 = vdwg.mxu0
      %v398 = vmax.f32 %v368, 0.0
      %v399 = vmax.f32 %v371, 0.0
      %v400 = vmax.f32 %v376, 0.0
      %v401 = vmax.f32 %v379, 0.0
      %v402 = vmax.f32 %v384, 0.0
      %v403 = vmax.f32 %v387, 0.0
      %v404 = vmax.f32 %v392, 0.0
      %v405 = vmax.f32 %v395, 0.0
      %v406 = vpack.c.bf16 %v399, %v398
      %v407 = vpack.c.bf16 %v401, %v400
      %v408 = vpack.c.bf16 %v403, %v402
      %v409 = vpack.c.bf16 %v405, %v404
      %v414 = vunpack.c.l.b16 %v406
      %v415 = vunpack.c.h.b16 %v406
      %v416 = vunpack.c.l.b16 %v407
      %v417 = vunpack.c.h.b16 %v407
      %v418 = vunpack.c.l.b16 %v408
      %v419 = vunpack.c.h.b16 %v408
      %v420 = vunpack.c.l.b16 %v409
      %v421 = vunpack.c.h.b16 %v409
      %v422 = vpack.c.b16 %v414, %v414
      %v423 = vpack.c.b16 %v415, %v415
      %v424 = vpack.c.b16 %v416, %v416
      %v425 = vpack.c.b16 %v417, %v417
      %v426 = vpack.c.b16 %v418, %v418
      %v427 = vpack.c.b16 %v419, %v419
      %v428 = vpack.c.b16 %v420, %v420
      %v429 = vpack.c.b16 %v421, %v421
      %vm438 = vcmask 60416
      %439 = vst.msk [vmem:[%s242] sm:$0xf] %vm438, %v422
      %440 = vst.msk [vmem:[%s242 + $0x4] sm:$0xf] %vm438, %v423
      %441 = vst.msk [vmem:[%s242 + $0x8] sm:$0xf] %vm438, %v424
      %442 = vst.msk [vmem:[%s242 + $0xc] sm:$0xf] %vm438, %v425
      %443 = vst.msk [vmem:[%s242 + $0x10] sm:$0xf] %vm438, %v426
      %444 = vst.msk [vmem:[%s242 + $0x14] sm:$0xf] %vm438, %v427
      %445 = vst.msk [vmem:[%s242 + $0x18] sm:$0xf] %vm438, %v428
      %446 = vst.msk [vmem:[%s242 + $0x1c] sm:$0xf] %vm438, %v429
      %s447 = smul.u32 8, %s19
      %p448 = scmp.lt.s32.totalorder %s18, 1
      %s449 = scalar_select %p448, %s18, 1
      %p450 = scmp.lt.s32.totalorder %s447, 7
      %s451 = scalar_select %p450, %s447, 7
      %s452 = smul.addr %s449, 8
      %s453 = sadd.s32 %s451, %s452
      %s454 = smul.addr %s453, 4
      %s455 = scalar_lea.vmem %s3, %s454
      // Predicated region
      $region33: #{_lambda_.10} parent=31 // pred_check
        %p456 = pneg %p126
      $region34: #{_lambda_.10} parent=31 // pred_check_branch
        %458 = sbr.rel (%p456) target = $region36
      $region35: #{_lambda_.10} parent=31 // pred_region
        %s459 = smul.u32 8, %s19
      $region36: #{_lambda_.10} parent=31 // pred_fallthru
        _
    $region32: #{_lambda_.10} parent=5 // pred_fallthru
      _
    %p460 = scmp.le.s32.totalorder 2, %s9
    // Predicated region
    $region37: #{_lambda_.10} parent=5 // pred_check
      %p461 = pneg %p460
    $region38: #{_lambda_.10} parent=5 // pred_check_branch
      %463 = sbr.rel (%p461) target = $region40
    $region39: #{_lambda_.10} parent=5 // pred_region
      %s464 = ssub.s32 %s9, 2
      // Predicated region
      $region41: #{_lambda_.10} parent=39 // pred_check
        %p465 = pneg %p132
      $region42: #{_lambda_.10} parent=39 // pred_check_branch
        %467 = sbr.rel (%p465) target = $region44
      $region43: #{_lambda_.10} parent=39 // pred_region
        %s468 = smul.u32 8, %s21
        %p469 = scmp.lt.s32.totalorder %s20, 1
        %s470 = scalar_select %p469, %s20, 1
        %p471 = scmp.lt.s32.totalorder %s468, 7
        %s472 = scalar_select %p471, %s468, 7
        %s473 = smul.addr %s470, 8
        %s474 = sadd.s32 %s472, %s473
        %s475 = smul.addr %s474, 4
        %s476 = scalar_lea.vmem %s3, %s475
      $region44: #{_lambda_.10} parent=39 // pred_fallthru
        _
    $region40: #{_lambda_.10} parent=5 // pred_fallthru
      _
  $region6: #{_lambda_.10} parent=0 // loop_footer
    %s13 = sadd.s32 1, %s9
  $region7: #{_lambda_.10} parent=0 // loop_footer_branch
    %8 = sbr.rel target = $region3
  $region8: #{_lambda_.10} parent=0 // loop_exit
    _

// kernel: _lambda_.13
$region0: #{_lambda_.13}
  #allocation0 [shape = 'u32[]', space=smem, size = 0x4, offset = 0x4, fixed_abs, tag = 'smem constant byte address 0x4 - core index']
  #allocation1 [shape = 'u32[144,128]{1,0:T(1,128)}', space=vmem, size = 0x12000, scoped, tag = 'internal scratch']
  %s0 = inlined_call_operand.vmem [shape: bf16[2,16,72], index: 0, kind: input, shape index: {}]
  %s1 = inlined_call_operand.vmem [shape: bf16[2,72,8], index: 1, kind: input, shape index: {}]
  %s2 = inlined_call_operand.vmem [shape: f32[2,1,8], index: 2, kind: input, shape index: {}]
  %s3 = inlined_call_operand.vmem [shape: bf16[2,16,8], index: 3, kind: output, shape index: {}]
  %s4 = sld [smem:[#allocation0]]
  $region45: #{_lambda_.13} parent=0
    _
  %s6 = ssub.s32 1, %s4
  %s7 = scalar_select 0, %s6, %s4
  loop: start=0, step=1, limit=4
  $region2: #{_lambda_.13} parent=0 // loop_pre_header
    _
  $region3: #{_lambda_.13} parent=0 // loop_header
    %s9 = sphi 0, %s13
    %p10 = scmp.ge.s32.totalorder %s9, 4
    %s16 = sphi 0, %s28
    %s17 = sphi 0, %s24
    %s18 = sphi 0, %s16
    %s19 = sphi 0, %s17
    %s20 = sphi 0, %s18
    %s21 = sphi 0, %s19
    %s33 = sphi 0, %s35
    %s36 = sphi 0, %s33
    %s37 = sphi 0, %s36
    %s53 = sphi 0, %s37
    %s59 = sphi 0, %s61
    %s62 = sphi 0, %s59
    %s63 = sphi 0, %s62
    %s79 = sphi 0, %s63
    %s85 = sphi 0, %s87
    %s88 = sphi 0, %s85
    %s89 = sphi 0, %s88
    %s105 = sphi 0, %s89
    %s113 = sphi 0, %s115
    %s116 = sphi 0, %s113
    %s117 = sphi 0, %s116
    %s133 = sphi 0, %s117
  $region4: #{_lambda_.13} parent=0 // loop_header_branch
    %12 = sbr.rel (%p10) target = $region8
  $region5: #{_lambda_.13} parent=0 // loop_body
    %s14 = ssub.s32 %s9, 1
    %s15 = ssub.s32 %s9, 2
    %s22 = sadd.s32 1, %s17
    %p23 = scmp.ge.s32.totalorder %s22, 1
    %s24 = scalar_select %p23, 0, %s22
    %s25 = sadd.s32 1, %s16
    %s26 = scalar_select %p23, %s25, %s16
    %p27 = scmp.ge.s32.totalorder %s26, 2
    %s28 = scalar_select %p27, 0, %s26
    %s29 = ssub.s32 %s16, %s28
    %s30 = ssub.s32 %s17, %s24
    %s31 = sor.u32 %s29, %s30
    %p32 = scmp.eq.s32.totalorder %s31, 0
    %s34 = sadd.s32 %s33, 1
    %s35 = scalar_select %p32, %s33, %s34
    %p38 = pneg %p32
    %p39 = scmp.eq.s32.totalorder %s9, 1
    %p40 = por %p38, %p39
    %p41 = scmp.ne.s32.totalorder %s33, %s36
    %p42 = scmp.eq.s32.totalorder %s9, 0
    %p43 = por %p41, %p42
    %p44 = scmp.ne.s32.totalorder %s33, %s36
    %p45 = scmp.eq.s32.totalorder %s14, 1
    %p46 = por %p44, %p45
    %p47 = scmp.ne.s32.totalorder %s36, %s37
    %p48 = scmp.eq.s32.totalorder %s14, 0
    %p49 = por %p47, %p48
    %p50 = scmp.ne.s32.totalorder %s36, %s37
    %p51 = scmp.eq.s32.totalorder %s15, 1
    %p52 = por %p50, %p51
    %p54 = scmp.ne.s32.totalorder %s37, %s53
    %p55 = scmp.eq.s32.totalorder %s15, 0
    %p56 = por %p54, %p55
    %s57 = ssub.s32 %s16, %s28
    %p58 = scmp.eq.s32.totalorder %s57, 0
    %s60 = sadd.s32 %s59, 1
    %s61 = scalar_select %p58, %s59, %s60
    %p64 = pneg %p58
    %p65 = scmp.eq.s32.totalorder %s9, 1
    %p66 = por %p64, %p65
    %p67 = scmp.ne.s32.totalorder %s59, %s62
    %p68 = scmp.eq.s32.totalorder %s9, 0
    %p69 = por %p67, %p68
    %p70 = scmp.ne.s32.totalorder %s59, %s62
    %p71 = scmp.eq.s32.totalorder %s14, 1
    %p72 = por %p70, %p71
    %p73 = scmp.ne.s32.totalorder %s62, %s63
    %p74 = scmp.eq.s32.totalorder %s14, 0
    %p75 = por %p73, %p74
    %p76 = scmp.ne.s32.totalorder %s62, %s63
    %p77 = scmp.eq.s32.totalorder %s15, 1
    %p78 = por %p76, %p77
    %p80 = scmp.ne.s32.totalorder %s63, %s79
    %p81 = scmp.eq.s32.totalorder %s15, 0
    %p82 = por %p80, %p81
    %s83 = ssub.s32 %s16, %s28
    %p84 = scmp.eq.s32.totalorder %s83, 0
    %s86 = sadd.s32 %s85, 1
    %s87 = scalar_select %p84, %s85, %s86
    %p90 = pneg %p84
    %p91 = scmp.eq.s32.totalorder %s9, 1
    %p92 = por %p90, %p91
    %p93 = scmp.ne.s32.totalorder %s85, %s88
    %p94 = scmp.eq.s32.totalorder %s9, 0
    %p95 = por %p93, %p94
    %p96 = scmp.ne.s32.totalorder %s85, %s88
    %p97 = scmp.eq.s32.totalorder %s14, 1
    %p98 = por %p96, %p97
    %p99 = scmp.ne.s32.totalorder %s88, %s89
    %p100 = scmp.eq.s32.totalorder %s14, 0
    %p101 = por %p99, %p100
    %p102 = scmp.ne.s32.totalorder %s88, %s89
    %p103 = scmp.eq.s32.totalorder %s15, 1
    %p104 = por %p102, %p103
    %p106 = scmp.ne.s32.totalorder %s89, %s105
    %p107 = scmp.eq.s32.totalorder %s15, 0
    %p108 = por %p106, %p107
    %s109 = ssub.s32 %s16, %s28
    %s110 = ssub.s32 %s17, %s24
    %s111 = sor.u32 %s109, %s110
    %p112 = scmp.eq.s32.totalorder %s111, 0
    %s114 = sadd.s32 %s113, 1
    %s115 = scalar_select %p112, %s113, %s114
    %p118 = pneg %p112
    %p119 = scmp.eq.s32.totalorder %s9, 1
    %p120 = por %p118, %p119
    %p121 = scmp.ne.s32.totalorder %s113, %s116
    %p122 = scmp.eq.s32.totalorder %s9, 0
    %p123 = por %p121, %p122
    %p124 = scmp.ne.s32.totalorder %s113, %s116
    %p125 = scmp.eq.s32.totalorder %s14, 1
    %p126 = por %p124, %p125
    %p127 = scmp.ne.s32.totalorder %s116, %s117
    %p128 = scmp.eq.s32.totalorder %s14, 0
    %p129 = por %p127, %p128
    %p130 = scmp.ne.s32.totalorder %s116, %s117
    %p131 = scmp.eq.s32.totalorder %s15, 1
    %p132 = por %p130, %p131
    %p134 = scmp.ne.s32.totalorder %s117, %s133
    %p135 = scmp.eq.s32.totalorder %s15, 0
    %p136 = por %p134, %p135
    %p137 = scmp.le.s32.totalorder 1, %s9
    %p138 = scmp.lt.s32.totalorder %s9, 3
    %p139 = pnand %p137, %p138
    %p140 = pneg %p139
    // Predicated region
    $region9: #{_lambda_.13} parent=5 // pred_check
      _
    $region10: #{_lambda_.13} parent=5 // pred_check_branch
      %142 = sbr.rel (%p139) target = $region12
    $region11: #{_lambda_.13} parent=5 // pred_region
      %s143 = ssub.s32 %s9, 1
    $region12: #{_lambda_.13} parent=5 // pred_fallthru
      _
    %p144 = scmp.lt.s32.totalorder %s9, 2
    // Predicated region
    $region13: #{_lambda_.13} parent=5 // pred_check
      %p145 = pneg %p144
    $region14: #{_lambda_.13} parent=5 // pred_check_branch
      %147 = sbr.rel (%p145) target = $region16
    $region15: #{_lambda_.13} parent=5 // pred_region
      // Predicated region
      $region17: #{_lambda_.13} parent=15 // pred_check
        %p148 = pneg %p43
      $region18: #{_lambda_.13} parent=15 // pred_check_branch
        %150 = sbr.rel (%p148) target = $region20
      $region19: #{_lambda_.13} parent=15 // pred_region
        %s151 = smul.u32 2, %s17
        %p152 = scmp.lt.s32.totalorder %s16, 1
        %s153 = scalar_select %p152, %s16, 1
        %p154 = scmp.lt.s32.totalorder %s151, 1
        %s155 = scalar_select %p154, %s151, 1
        %s156 = smul.addr %s153, 2
        %s157 = sadd.s32 %s155, %s156
        %s158 = smul.addr %s157, 4
        %s159 = scalar_lea.vmem %s0, %s158
        %s160 = smul.u32 2, %s17
      $region20: #{_lambda_.13} parent=15 // pred_fallthru
        _
      // Predicated region
      $region21: #{_lambda_.13} parent=15 // pred_check
        %p161 = pneg %p69
      $region22: #{_lambda_.13} parent=15 // pred_check_branch
        %163 = sbr.rel (%p161) target = $region24
      $region23: #{_lambda_.13} parent=15 // pred_region
        %p164 = scmp.lt.s32.totalorder %s16, 1
        %s165 = scalar_select %p164, %s16, 1
        %s166 = smul.addr %s165, 9
        %s167 = smul.addr %s166, 4
        %s168 = scalar_lea.vmem %s1, %s167
      $region24: #{_lambda_.13} parent=15 // pred_fallthru
        _
      // Predicated region
      $region25: #{_lambda_.13} parent=15 // pred_check
        %p169 = pneg %p95
      $region26: #{_lambda_.13} parent=15 // pred_check_branch
        %171 = sbr.rel (%p169) target = $region28
      $region27: #{_lambda_.13} parent=15 // pred_region
        %p172 = scmp.lt.s32.totalorder %s16, 1
        %s173 = scalar_select %p172, %s16, 1
        %s174 = scalar_lea.vmem %s2, %s173
      $region28: #{_lambda_.13} parent=15 // pred_fallthru
        _
    $region16: #{_lambda_.13} parent=5 // pred_fallthru
      _
    %p175 = scmp.le.s32.totalorder 1, %s9
    %p176 = scmp.lt.s32.totalorder %s9, 3
    %p177 = pnand %p175, %p176
    %p178 = pneg %p177
    // Predicated region
    $region29: #{_lambda_.13} parent=5 // pred_check
      _
    $region30: #{_lambda_.13} parent=5 // pred_check_branch
      %180 = sbr.rel (%p177) target = $region32
    $region31: #{_lambda_.13} parent=5 // pred_region
      %s181 = ssub.s32 %s9, 1
      %s182 = smul.u32 2, %s19
      %p183 = scmp.lt.s32.totalorder %s18, 1
      %s184 = scalar_select %p183, %s18, 1
      %p185 = scmp.lt.s32.totalorder %s182, 1
      %s186 = scalar_select %p185, %s182, 1
      %s187 = smul.addr %s184, 2
      %s188 = sadd.s32 %s186, %s187
      %s189 = smul.addr %s188, 4
      %s190 = scalar_lea.vmem %s0, %s189
      %p191 = pneg %p49
      %p192 = pneg %p46
      %p193 = scmp.lt.s32.totalorder %s18, 1
      %s194 = scalar_select %p193, %s18, 1
      %s195 = smul.addr %s194, 9
      %s196 = smul.addr %s195, 4
      %s197 = scalar_lea.vmem %s1, %s196
      %p198 = pneg %p75
      %p199 = pneg %p72
      %p200 = scmp.lt.s32.totalorder %s18, 1
      %s201 = scalar_select %p200, %s18, 1
      %s202 = scalar_lea.vmem %s2, %s201
      %p203 = pneg %p101
      %p204 = pneg %p98
      %p205 = pneg %p129
      %p206 = pneg %p126
      %s207 = smul.u32 2, %s19
      %p208 = scmp.lt.s32.totalorder %s18, 1
      %s209 = scalar_select %p208, %s18, 1
      %p210 = scmp.lt.s32.totalorder %s207, 1
      %s211 = scalar_select %p210, %s207, 1
      %s212 = smul.addr %s209, 2
      %s213 = sadd.s32 %s211, %s212
      %s214 = smul.addr %s213, 4
      %s215 = scalar_lea.vmem %s3, %s214
      %s216 = smul.u32 2, %s19
      %p217 = scmp.lt.s32.totalorder %s18, 1
      %s218 = scalar_select %p217, %s18, 1
      %p219 = scmp.lt.s32.totalorder %s216, 1
      %s220 = scalar_select %p219, %s216, 1
      %s221 = smul.addr %s218, 2
      %s222 = sadd.s32 %s220, %s221
      %s223 = smul.addr %s222, 4
      %s224 = scalar_lea.vmem %s0, %s223
      %s225 = smul.u32 2, %s19
      %p226 = scmp.lt.s32.totalorder %s18, 1
      %s227 = scalar_select %p226, %s18, 1
      %s228 = smul.addr %s227, 9
      %s229 = smul.addr %s228, 4
      %s230 = scalar_lea.vmem %s1, %s229
      %p231 = scmp.lt.s32.totalorder %s18, 1
      %s232 = scalar_select %p231, %s18, 1
      %s233 = scalar_lea.vmem %s2, %s232
      %s234 = smul.u32 2, %s19
      %p235 = scmp.lt.s32.totalorder %s18, 1
      %s236 = scalar_select %p235, %s18, 1
      %p237 = scmp.lt.s32.totalorder %s234, 1
      %s238 = scalar_select %p237, %s234, 1
      %s239 = smul.addr %s236, 2
      %s240 = sadd.s32 %s238, %s239
      %s241 = smul.addr %s240, 4
      %s242 = scalar_lea.vmem %s3, %s241
      %s243 = smul.u32 2, %s19
      %v245 = vld [vmem:[%s224] sm:$0xf]
      %v246 = vld [vmem:[%s224 + $0x4] sm:$0xf]
      %v247 = vld [vmem:[%s230] sm:$0xf]
      %v248 = vld [vmem:[%s230 + $0x4] sm:$0xf]
      %v249 = vld [vmem:[%s230 + $0x8] sm:$0xf]
      %v250 = vld [vmem:[%s230 + $0xc] sm:$0xf]
      %v251 = vld [vmem:[%s230 + $0x10] sm:$0xf]
      %v252 = vld [vmem:[%s230 + $0x14] sm:$0xf]
      %v253 = vld [vmem:[%s230 + $0x18] sm:$0xf]
      %v254 = vld [vmem:[%s230 + $0x1c] sm:$0xf]
      %v255 = vld [vmem:[%s230 + $0x20] sm:$0xf]
      %v256 = vld [vmem:[%s233] sm:$0x1]
      %v258 = vlaneseq
      %v259 = vshrl.u32 %v258, 7
      %v260 = vsub.s32 0, %v259
      %v261 = vrot.slane %v256, %v260
      %v265 = vunpack.c.l.b16 %v245
      %v266 = vunpack.c.l.b16 %v246
      %v267 = vpack.c.b16 %v266, %v265
      %v277 = vunpack.c.l.b16 %v247
      %v278 = vunpack.c.l.b16 %v248
      %v279 = vunpack.c.l.b16 %v249
      %v280 = vunpack.c.l.b16 %v250
      %v281 = vunpack.c.l.b16 %v251
      %v282 = vunpack.c.l.b16 %v252
      %v283 = vunpack.c.l.b16 %v253
      %v284 = vunpack.c.l.b16 %v254
      %v285 = vunpack.c.l.b16 %v255
      %v286 = vpack.c.b16 %v278, %v277
      %v287 = vpack.c.b16 %v280, %v279
      %v288 = vpack.c.b16 %v282, %v281
      %v289 = vpack.c.b16 %v284, %v283
      %v290 = vpack.c.b16 %v285, %v285
      %vm295 = vcmask 588800
      %v297 = vsel %vm295, %v267, 0
      %vm299 = vcmask 1043456
      %v301 = vsel %vm299, %v290, 0
      %303 = vmatprep.subr.bf16.mxu0 0
      %304 = vmatpush1.bf16.msra.mxu0 %v286
      %305 = vmatprep.subr.bf16.mxu0 0
      %306 = vmatpush1.bf16.msra.mxu0 %v287
      %307 = vmatprep.subr.bf16.mxu0 0
      %308 = vmatpush1.bf16.msra.mxu0 %v288
      %309 = vmatprep.subr.bf16.mxu0 0
      %310 = vmatpush1.bf16.msra.mxu0 %v289
      %311 = vmatprep.subr.bf16.mxu0 0
      %312 = vmatpush1.bf16.msra.mxu0 %v301
      %313 = vmatprep.subr.bf16.mxu0 0
      %314 = vmatpush1.bf16.msra.mxu0 0
      %315 = vmatprep.subr.bf16.mxu0 0
      %316 = vmatpush1.bf16.msra.mxu0 0
      %317 = vmatprep.subr.bf16.mxu0 0
      %318 = vmatpush1.bf16.msra.mxu0 0
      %319 = vmatprep.subr.bf16.mxu0 0
      %320 = vmatpush1.bf16.msra.mxu0 0
      %321 = vmatprep.subr.bf16.mxu0 0
      %322 = vmatpush1.bf16.msra.mxu0 0
      %323 = vmatprep.subr.bf16.mxu0 0
      %324 = vmatpush1.bf16.msra.mxu0 0
      %325 = vmatprep.subr.bf16.mxu0 0
      %326 = vmatpush1.bf16.msra.mxu0 0
      %327 = vmatprep.subr.bf16.mxu0 0
      %328 = vmatpush1.bf16.msra.mxu0 0
      %329 = vmatprep.subr.bf16.mxu0 0
      %330 = vmatpush1.bf16.msra.mxu0 0
      %331 = vmatprep.subr.bf16.mxu0 0
      %332 = vmatpush1.bf16.msra.mxu0 0
      %333 = vmatprep.subr.bf16.mxu0 0
      %334 = vmatpush1.bf16.msra.mxu0 0
      %335 = vmatprep.mubr.bf16.mxu0 0
      %336 = vmatmul.mubr.bf16.gmra.mrb[0].mxu0 %v297
      %v337 = vpop.f32.mrb[0].mxu0
      %v338 = vadd.f32 %v261, %v337
      %v339 = vpop.f32.mrb[0].mxu0
      %v340 = vpop.f32.mrb[0].mxu0
      %v341 = vadd.f32 %v261, %v340
      %v342 = vpop.f32.mrb[0].mxu0
      %343 = vdwg.mxu0
      %v344 = vmax.f32 %v338, 0.0
      %v345 = vmax.f32 %v341, 0.0
      %v346 = vpack.c.bf16 %v345, %v344
      %v348 = vunpack.c.l.b16 %v346
      %v349 = vunpack.c.h.b16 %v346
      %v350 = vpack.c.b16 %v348, %v348
      %v351 = vpack.c.b16 %v349, %v349
      %vm354 = vcmask 60416
      %355 = vst.msk [vmem:[%s242] sm:$0xf] %vm354, %v350
      %356 = vst.msk [vmem:[%s242 + $0x4] sm:$0xf] %vm354, %v351
      %s357 = smul.u32 2, %s19
      %p358 = scmp.lt.s32.totalorder %s18, 1
      %s359 = scalar_select %p358, %s18, 1
      %p360 = scmp.lt.s32.totalorder %s357, 1
      %s361 = scalar_select %p360, %s357, 1
      %s362 = smul.addr %s359, 2
      %s363 = sadd.s32 %s361, %s362
      %s364 = smul.addr %s363, 4
      %s365 = scalar_lea.vmem %s3, %s364
      // Predicated region
      $region33: #{_lambda_.13} parent=31 // pred_check
        %p366 = pneg %p126
      $region34: #{_lambda_.13} parent=31 // pred_check_branch
        %368 = sbr.rel (%p366) target = $region36
      $region35: #{_lambda_.13} parent=31 // pred_region
        %s369 = smul.u32 2, %s19
      $region36: #{_lambda_.13} parent=31 // pred_fallthru
        _
    $region32: #{_lambda_.13} parent=5 // pred_fallthru
      _
    %p370 = scmp.le.s32.totalorder 2, %s9
    // Predicated region
    $region37: #{_lambda_.13} parent=5 // pred_check
      %p371 = pneg %p370
    $region38: #{_lambda_.13} parent=5 // pred_check_branch
      %373 = sbr.rel (%p371) target = $region40
    $region39: #{_lambda_.13} parent=5 // pred_region
      %s374 = ssub.s32 %s9, 2
      // Predicated region
      $region41: #{_lambda_.13} parent=39 // pred_check
        %p375 = pneg %p132
      $region42: #{_lambda_.13} parent=39 // pred_check_branch
        %377 = sbr.rel (%p375) target = $region44
      $region43: #{_lambda_.13} parent=39 // pred_region
        %s378 = smul.u32 2, %s21
        %p379 = scmp.lt.s32.totalorder %s20, 1
        %s380 = scalar_select %p379, %s20, 1
        %p381 = scmp.lt.s32.totalorder %s378, 1
        %s382 = scalar_select %p381, %s378, 1
        %s383 = smul.addr %s380, 2
        %s384 = sadd.s32 %s382, %s383
        %s385 = smul.addr %s384, 4
        %s386 = scalar_lea.vmem %s3, %s385
      $region44: #{_lambda_.13} parent=39 // pred_fallthru
        _
    $region40: #{_lambda_.13} parent=5 // pred_fallthru
      _
  $region6: #{_lambda_.13} parent=0 // loop_footer
    %s13 = sadd.s32 1, %s9
  $region7: #{_lambda_.13} parent=0 // loop_footer_branch
    %8 = sbr.rel target = $region3
  $region8: #{_lambda_.13} parent=0 // loop_exit
    _

// kernel: _lambda_.16
$region0: #{_lambda_.16}
  #allocation0 [shape = 'u32[]', space=smem, size = 0x4, offset = 0x4, fixed_abs, tag = 'smem constant byte address 0x4 - core index']
  #allocation1 [shape = 'u32[144,128]{1,0:T(1,128)}', space=vmem, size = 0x12000, scoped, tag = 'internal scratch']
  %s0 = inlined_call_operand.vmem [shape: bf16[2,4,72], index: 0, kind: input, shape index: {}]
  %s1 = inlined_call_operand.vmem [shape: bf16[2,72,16], index: 1, kind: input, shape index: {}]
  %s2 = inlined_call_operand.vmem [shape: f32[2,1,16], index: 2, kind: input, shape index: {}]
  %s3 = inlined_call_operand.vmem [shape: bf16[2,4,16], index: 3, kind: output, shape index: {}]
  %s4 = sld [smem:[#allocation0]]
  $region45: #{_lambda_.16} parent=0
    _
  %s6 = ssub.s32 1, %s4
  %s7 = scalar_select 0, %s6, %s4
  loop: start=0, step=1, limit=4
  $region2: #{_lambda_.16} parent=0 // loop_pre_header
    _
  $region3: #{_lambda_.16} parent=0 // loop_header
    %s9 = sphi 0, %s13
    %p10 = scmp.ge.s32.totalorder %s9, 4
    %s16 = sphi 0, %s28
    %s17 = sphi 0, %s24
    %s18 = sphi 0, %s16
    %s19 = sphi 0, %s17
    %s20 = sphi 0, %s18
    %s21 = sphi 0, %s19
    %s33 = sphi 0, %s35
    %s36 = sphi 0, %s33
    %s37 = sphi 0, %s36
    %s53 = sphi 0, %s37
    %s59 = sphi 0, %s61
    %s62 = sphi 0, %s59
    %s63 = sphi 0, %s62
    %s79 = sphi 0, %s63
    %s85 = sphi 0, %s87
    %s88 = sphi 0, %s85
    %s89 = sphi 0, %s88
    %s105 = sphi 0, %s89
    %s113 = sphi 0, %s115
    %s116 = sphi 0, %s113
    %s117 = sphi 0, %s116
    %s133 = sphi 0, %s117
  $region4: #{_lambda_.16} parent=0 // loop_header_branch
    %12 = sbr.rel (%p10) target = $region8
  $region5: #{_lambda_.16} parent=0 // loop_body
    %s14 = ssub.s32 %s9, 1
    %s15 = ssub.s32 %s9, 2
    %s22 = sadd.s32 1, %s17
    %p23 = scmp.ge.s32.totalorder %s22, 1
    %s24 = scalar_select %p23, 0, %s22
    %s25 = sadd.s32 1, %s16
    %s26 = scalar_select %p23, %s25, %s16
    %p27 = scmp.ge.s32.totalorder %s26, 2
    %s28 = scalar_select %p27, 0, %s26
    %s29 = ssub.s32 %s16, %s28
    %s30 = ssub.s32 %s17, %s24
    %s31 = sor.u32 %s29, %s30
    %p32 = scmp.eq.s32.totalorder %s31, 0
    %s34 = sadd.s32 %s33, 1
    %s35 = scalar_select %p32, %s33, %s34
    %p38 = pneg %p32
    %p39 = scmp.eq.s32.totalorder %s9, 1
    %p40 = por %p38, %p39
    %p41 = scmp.ne.s32.totalorder %s33, %s36
    %p42 = scmp.eq.s32.totalorder %s9, 0
    %p43 = por %p41, %p42
    %p44 = scmp.ne.s32.totalorder %s33, %s36
    %p45 = scmp.eq.s32.totalorder %s14, 1
    %p46 = por %p44, %p45
    %p47 = scmp.ne.s32.totalorder %s36, %s37
    %p48 = scmp.eq.s32.totalorder %s14, 0
    %p49 = por %p47, %p48
    %p50 = scmp.ne.s32.totalorder %s36, %s37
    %p51 = scmp.eq.s32.totalorder %s15, 1
    %p52 = por %p50, %p51
    %p54 = scmp.ne.s32.totalorder %s37, %s53
    %p55 = scmp.eq.s32.totalorder %s15, 0
    %p56 = por %p54, %p55
    %s57 = ssub.s32 %s16, %s28
    %p58 = scmp.eq.s32.totalorder %s57, 0
    %s60 = sadd.s32 %s59, 1
    %s61 = scalar_select %p58, %s59, %s60
    %p64 = pneg %p58
    %p65 = scmp.eq.s32.totalorder %s9, 1
    %p66 = por %p64, %p65
    %p67 = scmp.ne.s32.totalorder %s59, %s62
    %p68 = scmp.eq.s32.totalorder %s9, 0
    %p69 = por %p67, %p68
    %p70 = scmp.ne.s32.totalorder %s59, %s62
    %p71 = scmp.eq.s32.totalorder %s14, 1
    %p72 = por %p70, %p71
    %p73 = scmp.ne.s32.totalorder %s62, %s63
    %p74 = scmp.eq.s32.totalorder %s14, 0
    %p75 = por %p73, %p74
    %p76 = scmp.ne.s32.totalorder %s62, %s63
    %p77 = scmp.eq.s32.totalorder %s15, 1
    %p78 = por %p76, %p77
    %p80 = scmp.ne.s32.totalorder %s63, %s79
    %p81 = scmp.eq.s32.totalorder %s15, 0
    %p82 = por %p80, %p81
    %s83 = ssub.s32 %s16, %s28
    %p84 = scmp.eq.s32.totalorder %s83, 0
    %s86 = sadd.s32 %s85, 1
    %s87 = scalar_select %p84, %s85, %s86
    %p90 = pneg %p84
    %p91 = scmp.eq.s32.totalorder %s9, 1
    %p92 = por %p90, %p91
    %p93 = scmp.ne.s32.totalorder %s85, %s88
    %p94 = scmp.eq.s32.totalorder %s9, 0
    %p95 = por %p93, %p94
    %p96 = scmp.ne.s32.totalorder %s85, %s88
    %p97 = scmp.eq.s32.totalorder %s14, 1
    %p98 = por %p96, %p97
    %p99 = scmp.ne.s32.totalorder %s88, %s89
    %p100 = scmp.eq.s32.totalorder %s14, 0
    %p101 = por %p99, %p100
    %p102 = scmp.ne.s32.totalorder %s88, %s89
    %p103 = scmp.eq.s32.totalorder %s15, 1
    %p104 = por %p102, %p103
    %p106 = scmp.ne.s32.totalorder %s89, %s105
    %p107 = scmp.eq.s32.totalorder %s15, 0
    %p108 = por %p106, %p107
    %s109 = ssub.s32 %s16, %s28
    %s110 = ssub.s32 %s17, %s24
    %s111 = sor.u32 %s109, %s110
    %p112 = scmp.eq.s32.totalorder %s111, 0
    %s114 = sadd.s32 %s113, 1
    %s115 = scalar_select %p112, %s113, %s114
    %p118 = pneg %p112
    %p119 = scmp.eq.s32.totalorder %s9, 1
    %p120 = por %p118, %p119
    %p121 = scmp.ne.s32.totalorder %s113, %s116
    %p122 = scmp.eq.s32.totalorder %s9, 0
    %p123 = por %p121, %p122
    %p124 = scmp.ne.s32.totalorder %s113, %s116
    %p125 = scmp.eq.s32.totalorder %s14, 1
    %p126 = por %p124, %p125
    %p127 = scmp.ne.s32.totalorder %s116, %s117
    %p128 = scmp.eq.s32.totalorder %s14, 0
    %p129 = por %p127, %p128
    %p130 = scmp.ne.s32.totalorder %s116, %s117
    %p131 = scmp.eq.s32.totalorder %s15, 1
    %p132 = por %p130, %p131
    %p134 = scmp.ne.s32.totalorder %s117, %s133
    %p135 = scmp.eq.s32.totalorder %s15, 0
    %p136 = por %p134, %p135
    %p137 = scmp.le.s32.totalorder 1, %s9
    %p138 = scmp.lt.s32.totalorder %s9, 3
    %p139 = pnand %p137, %p138
    %p140 = pneg %p139
    // Predicated region
    $region9: #{_lambda_.16} parent=5 // pred_check
      _
    $region10: #{_lambda_.16} parent=5 // pred_check_branch
      %142 = sbr.rel (%p139) target = $region12
    $region11: #{_lambda_.16} parent=5 // pred_region
      %s143 = ssub.s32 %s9, 1
    $region12: #{_lambda_.16} parent=5 // pred_fallthru
      _
    %p144 = scmp.lt.s32.totalorder %s9, 2
    // Predicated region
    $region13: #{_lambda_.16} parent=5 // pred_check
      %p145 = pneg %p144
    $region14: #{_lambda_.16} parent=5 // pred_check_branch
      %147 = sbr.rel (%p145) target = $region16
    $region15: #{_lambda_.16} parent=5 // pred_region
      // Predicated region
      $region17: #{_lambda_.16} parent=15 // pred_check
        %p148 = pneg %p43
      $region18: #{_lambda_.16} parent=15 // pred_check_branch
        %150 = sbr.rel (%p148) target = $region20
      $region19: #{_lambda_.16} parent=15 // pred_region
        %p151 = scmp.lt.s32.totalorder %s16, 1
        %s152 = scalar_select %p151, %s16, 1
        %p153 = scmp.lt.s32.totalorder %s17, 0
        %s154 = scalar_select %p153, %s17, 0
        %s155 = sadd.s32 %s154, %s152
        %s156 = smul.addr %s155, 2
        %s157 = scalar_lea.vmem %s0, %s156
      $region20: #{_lambda_.16} parent=15 // pred_fallthru
        _
      // Predicated region
      $region21: #{_lambda_.16} parent=15 // pred_check
        %p158 = pneg %p69
      $region22: #{_lambda_.16} parent=15 // pred_check_branch
        %160 = sbr.rel (%p158) target = $region24
      $region23: #{_lambda_.16} parent=15 // pred_region
        %p161 = scmp.lt.s32.totalorder %s16, 1
        %s162 = scalar_select %p161, %s16, 1
        %s163 = smul.addr %s162, 9
        %s164 = smul.addr %s163, 4
        %s165 = scalar_lea.vmem %s1, %s164
      $region24: #{_lambda_.16} parent=15 // pred_fallthru
        _
      // Predicated region
      $region25: #{_lambda_.16} parent=15 // pred_check
        %p166 = pneg %p95
      $region26: #{_lambda_.16} parent=15 // pred_check_branch
        %168 = sbr.rel (%p166) target = $region28
      $region27: #{_lambda_.16} parent=15 // pred_region
        %p169 = scmp.lt.s32.totalorder %s16, 1
        %s170 = scalar_select %p169, %s16, 1
        %s171 = scalar_lea.vmem %s2, %s170
      $region28: #{_lambda_.16} parent=15 // pred_fallthru
        _
    $region16: #{_lambda_.16} parent=5 // pred_fallthru
      _
    %p172 = scmp.le.s32.totalorder 1, %s9
    %p173 = scmp.lt.s32.totalorder %s9, 3
    %p174 = pnand %p172, %p173
    %p175 = pneg %p174
    // Predicated region
    $region29: #{_lambda_.16} parent=5 // pred_check
      _
    $region30: #{_lambda_.16} parent=5 // pred_check_branch
      %177 = sbr.rel (%p174) target = $region32
    $region31: #{_lambda_.16} parent=5 // pred_region
      %s178 = ssub.s32 %s9, 1
      %p179 = scmp.lt.s32.totalorder %s18, 1
      %s180 = scalar_select %p179, %s18, 1
      %p181 = scmp.lt.s32.totalorder %s19, 0
      %s182 = scalar_select %p181, %s19, 0
      %s183 = sadd.s32 %s182, %s180
      %s184 = smul.addr %s183, 2
      %s185 = scalar_lea.vmem %s0, %s184
      %p186 = pneg %p49
      %p187 = pneg %p46
      %p188 = scmp.lt.s32.totalorder %s18, 1
      %s189 = scalar_select %p188, %s18, 1
      %s190 = smul.addr %s189, 9
      %s191 = smul.addr %s190, 4
      %s192 = scalar_lea.vmem %s1, %s191
      %p193 = pneg %p75
      %p194 = pneg %p72
      %p195 = scmp.lt.s32.totalorder %s18, 1
      %s196 = scalar_select %p195, %s18, 1
      %s197 = scalar_lea.vmem %s2, %s196
      %p198 = pneg %p101
      %p199 = pneg %p98
      %p200 = pneg %p129
      %p201 = pneg %p126
      %p202 = scmp.lt.s32.totalorder %s18, 1
      %s203 = scalar_select %p202, %s18, 1
      %p204 = scmp.lt.s32.totalorder %s19, 0
      %s205 = scalar_select %p204, %s19, 0
      %s206 = sadd.s32 %s205, %s203
      %s207 = smul.addr %s206, 2
      %s208 = scalar_lea.vmem %s3, %s207
      %p209 = scmp.lt.s32.totalorder %s18, 1
      %s210 = scalar_select %p209, %s18, 1
      %p211 = scmp.lt.s32.totalorder %s19, 0
      %s212 = scalar_select %p211, %s19, 0
      %s213 = sadd.s32 %s212, %s210
      %s214 = smul.addr %s213, 2
      %s215 = scalar_lea.vmem %s0, %s214
      %p216 = scmp.lt.s32.totalorder %s18, 1
      %s217 = scalar_select %p216, %s18, 1
      %s218 = smul.addr %s217, 9
      %s219 = smul.addr %s218, 4
      %s220 = scalar_lea.vmem %s1, %s219
      %p221 = scmp.lt.s32.totalorder %s18, 1
      %s222 = scalar_select %p221, %s18, 1
      %s223 = scalar_lea.vmem %s2, %s222
      %p224 = scmp.lt.s32.totalorder %s18, 1
      %s225 = scalar_select %p224, %s18, 1
      %p226 = scmp.lt.s32.totalorder %s19, 0
      %s227 = scalar_select %p226, %s19, 0
      %s228 = sadd.s32 %s227, %s225
      %s229 = smul.addr %s228, 2
      %s230 = scalar_lea.vmem %s3, %s229
      %v232 = vld [vmem:[%s215] sm:$0x3]
      %v233 = vld [vmem:[%s220] sm:$0xf]
      %v234 = vld [vmem:[%s220 + $0x4] sm:$0xf]
      %v235 = vld [vmem:[%s220 + $0x8] sm:$0xf]
      %v236 = vld [vmem:[%s220 + $0xc] sm:$0xf]
      %v237 = vld [vmem:[%s220 + $0x10] sm:$0xf]
      %v238 = vld [vmem:[%s220 + $0x14] sm:$0xf]
      %v239 = vld [vmem:[%s220 + $0x18] sm:$0xf]
      %v240 = vld [vmem:[%s220 + $0x1c] sm:$0xf]
      %v241 = vld [vmem:[%s220 + $0x20] sm:$0xf]
      %v242 = vld [vmem:[%s223] sm:$0x1]
      %v244 = vlaneseq
      %v245 = vshrl.u32 %v244, 7
      %v246 = vsub.s32 0, %v245
      %v247 = vrot.slane %v242, %v246
      %v258 = vunpack.c.l.b16 %v233
      %v259 = vunpack.c.l.b16 %v234
      %v260 = vunpack.c.l.b16 %v235
      %v261 = vunpack.c.l.b16 %v236
      %v262 = vunpack.c.l.b16 %v237
      %v263 = vunpack.c.l.b16 %v238
      %v264 = vunpack.c.l.b16 %v239
      %v265 = vunpack.c.l.b16 %v240
      %v266 = vunpack.c.l.b16 %v241
      %v267 = vpack.c.b16 %v259, %v258
      %v268 = vpack.c.b16 %v261, %v260
      %v269 = vpack.c.b16 %v263, %v262
      %v270 = vpack.c.b16 %v265, %v264
      %v271 = vpack.c.b16 %v266, %v266
      %vm276 = vcmask 588800
      %v278 = vsel %vm276, %v232, 0
      %vm280 = vcmask 1043456
      %v282 = vsel %vm280, %v271, 0
      %284 = vmatprep.subr.bf16.mxu0 0
      %285 = vmatpush1.bf16.msra.mxu0 %v267
      %286 = vmatprep.subr.bf16.mxu0 0
      %287 = vmatpush1.bf16.msra.mxu0 %v268
      %288 = vmatprep.subr.bf16.mxu0 0
      %289 = vmatpush1.bf16.msra.mxu0 %v269
      %290 = vmatprep.subr.bf16.mxu0 0
      %291 = vmatpush1.bf16.msra.mxu0 %v270
      %292 = vmatprep.subr.bf16.mxu0 0
      %293 = vmatpush1.bf16.msra.mxu0 %v282
      %294 = vmatprep.subr.bf16.mxu0 0
      %295 = vmatpush1.bf16.msra.mxu0 0
      %296 = vmatprep.subr.bf16.mxu0 0
      %297 = vmatpush1.bf16.msra.mxu0 0
      %298 = vmatprep.subr.bf16.mxu0 0
      %299 = vmatpush1.bf16.msra.mxu0 0
      %300 = vmatprep.subr.bf16.mxu0 0
      %301 = vmatpush1.bf16.msra.mxu0 0
      %302 = vmatprep.subr.bf16.mxu0 0
      %303 = vmatpush1.bf16.msra.mxu0 0
      %304 = vmatprep.subr.bf16.mxu0 0
      %305 = vmatpush1.bf16.msra.mxu0 0
      %306 = vmatprep.subr.bf16.mxu0 0
      %307 = vmatpush1.bf16.msra.mxu0 0
      %308 = vmatprep.subr.bf16.mxu0 0
      %309 = vmatpush1.bf16.msra.mxu0 0
      %310 = vmatprep.subr.bf16.mxu0 0
      %311 = vmatpush1.bf16.msra.mxu0 0
      %312 = vmatprep.subr.bf16.mxu0 0
      %313 = vmatpush1.bf16.msra.mxu0 0
      %314 = vmatprep.subr.bf16.mxu0 0
      %315 = vmatpush1.bf16.msra.mxu0 0
      %316 = vmatprep.mubr.bf16.mxu0 0
      %317 = vmatmul.mubr.bf16.gmra.mrb[0].mxu0 %v278
      %v318 = vpop.f32.mrb[0].mxu0
      %v319 = vadd.f32 %v247, %v318
      %v320 = vpop.f32.mrb[0].mxu0
      %v321 = vpop.f32.mrb[0].mxu0
      %v322 = vpop.f32.mrb[0].mxu0
      %323 = vdwg.mxu0
      %v324 = vmax.f32 %v319, 0.0
      %v325 = vpack.c.bf16 %v324, %v324
      %vm326 = vcmask 123904
      %327 = vst.msk [vmem:[%s230] sm:$0x3] %vm326, %v325
      %p328 = scmp.lt.s32.totalorder %s18, 1
      %s329 = scalar_select %p328, %s18, 1
      %p330 = scmp.lt.s32.totalorder %s19, 0
      %s331 = scalar_select %p330, %s19, 0
      %s332 = sadd.s32 %s331, %s329
      %s333 = smul.addr %s332, 2
      %s334 = scalar_lea.vmem %s3, %s333
      // Predicated region
      $region33: #{_lambda_.16} parent=31 // pred_check
        %p335 = pneg %p126
      $region34: #{_lambda_.16} parent=31 // pred_check_branch
        %337 = sbr.rel (%p335) target = $region36
      $region35: #{_lambda_.16} parent=31 // pred_region
        _
      $region36: #{_lambda_.16} parent=31 // pred_fallthru
        _
    $region32: #{_lambda_.16} parent=5 // pred_fallthru
      _
    %p338 = scmp.le.s32.totalorder 2, %s9
    // Predicated region
    $region37: #{_lambda_.16} parent=5 // pred_check
      %p339 = pneg %p338
    $region38: #{_lambda_.16} parent=5 // pred_check_branch
      %341 = sbr.rel (%p339) target = $region40
    $region39: #{_lambda_.16} parent=5 // pred_region
      %s342 = ssub.s32 %s9, 2
      // Predicated region
      $region41: #{_lambda_.16} parent=39 // pred_check
        %p343 = pneg %p132
      $region42: #{_lambda_.16} parent=39 // pred_check_branch
        %345 = sbr.rel (%p343) target = $region44
      $region43: #{_lambda_.16} parent=39 // pred_region
        %p346 = scmp.lt.s32.totalorder %s20, 1
        %s347 = scalar_select %p346, %s20, 1
        %p348 = scmp.lt.s32.totalorder %s21, 0
        %s349 = scalar_select %p348, %s21, 0
        %s350 = sadd.s32 %s349, %s347
        %s351 = smul.addr %s350, 2
        %s352 = scalar_lea.vmem %s3, %s351
      $region44: #{_lambda_.16} parent=39 // pred_fallthru
        _
    $region40: #{_lambda_.16} parent=5 // pred_fallthru
      _
  $region6: #{_lambda_.16} parent=0 // loop_footer
    %s13 = sadd.s32 1, %s9
  $region7: #{_lambda_.16} parent=0 // loop_footer_branch
    %8 = sbr.rel target = $region3
  $region8: #{_lambda_.16} parent=0 // loop_exit
    _

// kernel: _lambda_.18
$region0: #{_lambda_.18}
  #allocation0 [shape = 'u32[]', space=smem, size = 0x4, offset = 0x4, fixed_abs, tag = 'smem constant byte address 0x4 - core index']
  #allocation1 [shape = 'u32[144,128]{1,0:T(1,128)}', space=vmem, size = 0x12000, scoped, tag = 'internal scratch']
  %s0 = inlined_call_operand.vmem [shape: bf16[2,4,16], index: 0, kind: input, shape index: {}]
  %s1 = inlined_call_operand.vmem [shape: bf16[2,16,256], index: 1, kind: input, shape index: {}]
  %s2 = inlined_call_operand.vmem [shape: f32[2,1,256], index: 2, kind: input, shape index: {}]
  %s3 = inlined_call_operand.vmem [shape: bf16[2,4,256], index: 3, kind: output, shape index: {}]
  %s4 = sld [smem:[#allocation0]]
  $region45: #{_lambda_.18} parent=0
    _
  %s6 = ssub.s32 1, %s4
  %s7 = scalar_select 0, %s6, %s4
  loop: start=0, step=1, limit=4
  $region2: #{_lambda_.18} parent=0 // loop_pre_header
    _
  $region3: #{_lambda_.18} parent=0 // loop_header
    %s9 = sphi 0, %s13
    %p10 = scmp.ge.s32.totalorder %s9, 4
    %s16 = sphi 0, %s28
    %s17 = sphi 0, %s24
    %s18 = sphi 0, %s16
    %s19 = sphi 0, %s17
    %s20 = sphi 0, %s18
    %s21 = sphi 0, %s19
    %s33 = sphi 0, %s35
    %s36 = sphi 0, %s33
    %s37 = sphi 0, %s36
    %s53 = sphi 0, %s37
    %s59 = sphi 0, %s61
    %s62 = sphi 0, %s59
    %s63 = sphi 0, %s62
    %s79 = sphi 0, %s63
    %s85 = sphi 0, %s87
    %s88 = sphi 0, %s85
    %s89 = sphi 0, %s88
    %s105 = sphi 0, %s89
    %s113 = sphi 0, %s115
    %s116 = sphi 0, %s113
    %s117 = sphi 0, %s116
    %s133 = sphi 0, %s117
  $region4: #{_lambda_.18} parent=0 // loop_header_branch
    %12 = sbr.rel (%p10) target = $region8
  $region5: #{_lambda_.18} parent=0 // loop_body
    %s14 = ssub.s32 %s9, 1
    %s15 = ssub.s32 %s9, 2
    %s22 = sadd.s32 1, %s17
    %p23 = scmp.ge.s32.totalorder %s22, 1
    %s24 = scalar_select %p23, 0, %s22
    %s25 = sadd.s32 1, %s16
    %s26 = scalar_select %p23, %s25, %s16
    %p27 = scmp.ge.s32.totalorder %s26, 2
    %s28 = scalar_select %p27, 0, %s26
    %s29 = ssub.s32 %s16, %s28
    %s30 = ssub.s32 %s17, %s24
    %s31 = sor.u32 %s29, %s30
    %p32 = scmp.eq.s32.totalorder %s31, 0
    %s34 = sadd.s32 %s33, 1
    %s35 = scalar_select %p32, %s33, %s34
    %p38 = pneg %p32
    %p39 = scmp.eq.s32.totalorder %s9, 1
    %p40 = por %p38, %p39
    %p41 = scmp.ne.s32.totalorder %s33, %s36
    %p42 = scmp.eq.s32.totalorder %s9, 0
    %p43 = por %p41, %p42
    %p44 = scmp.ne.s32.totalorder %s33, %s36
    %p45 = scmp.eq.s32.totalorder %s14, 1
    %p46 = por %p44, %p45
    %p47 = scmp.ne.s32.totalorder %s36, %s37
    %p48 = scmp.eq.s32.totalorder %s14, 0
    %p49 = por %p47, %p48
    %p50 = scmp.ne.s32.totalorder %s36, %s37
    %p51 = scmp.eq.s32.totalorder %s15, 1
    %p52 = por %p50, %p51
    %p54 = scmp.ne.s32.totalorder %s37, %s53
    %p55 = scmp.eq.s32.totalorder %s15, 0
    %p56 = por %p54, %p55
    %s57 = ssub.s32 %s16, %s28
    %p58 = scmp.eq.s32.totalorder %s57, 0
    %s60 = sadd.s32 %s59, 1
    %s61 = scalar_select %p58, %s59, %s60
    %p64 = pneg %p58
    %p65 = scmp.eq.s32.totalorder %s9, 1
    %p66 = por %p64, %p65
    %p67 = scmp.ne.s32.totalorder %s59, %s62
    %p68 = scmp.eq.s32.totalorder %s9, 0
    %p69 = por %p67, %p68
    %p70 = scmp.ne.s32.totalorder %s59, %s62
    %p71 = scmp.eq.s32.totalorder %s14, 1
    %p72 = por %p70, %p71
    %p73 = scmp.ne.s32.totalorder %s62, %s63
    %p74 = scmp.eq.s32.totalorder %s14, 0
    %p75 = por %p73, %p74
    %p76 = scmp.ne.s32.totalorder %s62, %s63
    %p77 = scmp.eq.s32.totalorder %s15, 1
    %p78 = por %p76, %p77
    %p80 = scmp.ne.s32.totalorder %s63, %s79
    %p81 = scmp.eq.s32.totalorder %s15, 0
    %p82 = por %p80, %p81
    %s83 = ssub.s32 %s16, %s28
    %p84 = scmp.eq.s32.totalorder %s83, 0
    %s86 = sadd.s32 %s85, 1
    %s87 = scalar_select %p84, %s85, %s86
    %p90 = pneg %p84
    %p91 = scmp.eq.s32.totalorder %s9, 1
    %p92 = por %p90, %p91
    %p93 = scmp.ne.s32.totalorder %s85, %s88
    %p94 = scmp.eq.s32.totalorder %s9, 0
    %p95 = por %p93, %p94
    %p96 = scmp.ne.s32.totalorder %s85, %s88
    %p97 = scmp.eq.s32.totalorder %s14, 1
    %p98 = por %p96, %p97
    %p99 = scmp.ne.s32.totalorder %s88, %s89
    %p100 = scmp.eq.s32.totalorder %s14, 0
    %p101 = por %p99, %p100
    %p102 = scmp.ne.s32.totalorder %s88, %s89
    %p103 = scmp.eq.s32.totalorder %s15, 1
    %p104 = por %p102, %p103
    %p106 = scmp.ne.s32.totalorder %s89, %s105
    %p107 = scmp.eq.s32.totalorder %s15, 0
    %p108 = por %p106, %p107
    %s109 = ssub.s32 %s16, %s28
    %s110 = ssub.s32 %s17, %s24
    %s111 = sor.u32 %s109, %s110
    %p112 = scmp.eq.s32.totalorder %s111, 0
    %s114 = sadd.s32 %s113, 1
    %s115 = scalar_select %p112, %s113, %s114
    %p118 = pneg %p112
    %p119 = scmp.eq.s32.totalorder %s9, 1
    %p120 = por %p118, %p119
    %p121 = scmp.ne.s32.totalorder %s113, %s116
    %p122 = scmp.eq.s32.totalorder %s9, 0
    %p123 = por %p121, %p122
    %p124 = scmp.ne.s32.totalorder %s113, %s116
    %p125 = scmp.eq.s32.totalorder %s14, 1
    %p126 = por %p124, %p125
    %p127 = scmp.ne.s32.totalorder %s116, %s117
    %p128 = scmp.eq.s32.totalorder %s14, 0
    %p129 = por %p127, %p128
    %p130 = scmp.ne.s32.totalorder %s116, %s117
    %p131 = scmp.eq.s32.totalorder %s15, 1
    %p132 = por %p130, %p131
    %p134 = scmp.ne.s32.totalorder %s117, %s133
    %p135 = scmp.eq.s32.totalorder %s15, 0
    %p136 = por %p134, %p135
    %p137 = scmp.le.s32.totalorder 1, %s9
    %p138 = scmp.lt.s32.totalorder %s9, 3
    %p139 = pnand %p137, %p138
    %p140 = pneg %p139
    // Predicated region
    $region9: #{_lambda_.18} parent=5 // pred_check
      _
    $region10: #{_lambda_.18} parent=5 // pred_check_branch
      %142 = sbr.rel (%p139) target = $region12
    $region11: #{_lambda_.18} parent=5 // pred_region
      %s143 = ssub.s32 %s9, 1
    $region12: #{_lambda_.18} parent=5 // pred_fallthru
      _
    %p144 = scmp.lt.s32.totalorder %s9, 2
    // Predicated region
    $region13: #{_lambda_.18} parent=5 // pred_check
      %p145 = pneg %p144
    $region14: #{_lambda_.18} parent=5 // pred_check_branch
      %147 = sbr.rel (%p145) target = $region16
    $region15: #{_lambda_.18} parent=5 // pred_region
      // Predicated region
      $region17: #{_lambda_.18} parent=15 // pred_check
        %p148 = pneg %p43
      $region18: #{_lambda_.18} parent=15 // pred_check_branch
        %150 = sbr.rel (%p148) target = $region20
      $region19: #{_lambda_.18} parent=15 // pred_region
        %p151 = scmp.lt.s32.totalorder %s16, 1
        %s152 = scalar_select %p151, %s16, 1
        %p153 = scmp.lt.s32.totalorder %s17, 0
        %s154 = scalar_select %p153, %s17, 0
        %s155 = sadd.s32 %s154, %s152
        %s156 = smul.addr %s155, 2
        %s157 = scalar_lea.vmem %s0, %s156
      $region20: #{_lambda_.18} parent=15 // pred_fallthru
        _
      // Predicated region
      $region21: #{_lambda_.18} parent=15 // pred_check
        %p158 = pneg %p69
      $region22: #{_lambda_.18} parent=15 // pred_check_branch
        %160 = sbr.rel (%p158) target = $region24
      $region23: #{_lambda_.18} parent=15 // pred_region
        %p161 = scmp.lt.s32.totalorder %s16, 1
        %s162 = scalar_select %p161, %s16, 1
        %s163 = smul.addr %s162, 4
        %s164 = smul.addr %s163, 4
        %s165 = scalar_lea.vmem %s1, %s164
      $region24: #{_lambda_.18} parent=15 // pred_fallthru
        _
      // Predicated region
      $region25: #{_lambda_.18} parent=15 // pred_check
        %p166 = pneg %p95
      $region26: #{_lambda_.18} parent=15 // pred_check_branch
        %168 = sbr.rel (%p166) target = $region28
      $region27: #{_lambda_.18} parent=15 // pred_region
        %p169 = scmp.lt.s32.totalorder %s16, 1
        %s170 = scalar_select %p169, %s16, 1
        %s171 = smul.addr %s170, 2
        %s172 = scalar_lea.vmem %s2, %s171
      $region28: #{_lambda_.18} parent=15 // pred_fallthru
        _
    $region16: #{_lambda_.18} parent=5 // pred_fallthru
      _
    %p173 = scmp.le.s32.totalorder 1, %s9
    %p174 = scmp.lt.s32.totalorder %s9, 3
    %p175 = pnand %p173, %p174
    %p176 = pneg %p175
    // Predicated region
    $region29: #{_lambda_.18} parent=5 // pred_check
      _
    $region30: #{_lambda_.18} parent=5 // pred_check_branch
      %178 = sbr.rel (%p175) target = $region32
    $region31: #{_lambda_.18} parent=5 // pred_region
      %s179 = ssub.s32 %s9, 1
      %p180 = scmp.lt.s32.totalorder %s18, 1
      %s181 = scalar_select %p180, %s18, 1
      %p182 = scmp.lt.s32.totalorder %s19, 0
      %s183 = scalar_select %p182, %s19, 0
      %s184 = sadd.s32 %s183, %s181
      %s185 = smul.addr %s184, 2
      %s186 = scalar_lea.vmem %s0, %s185
      %p187 = pneg %p49
      %p188 = pneg %p46
      %p189 = scmp.lt.s32.totalorder %s18, 1
      %s190 = scalar_select %p189, %s18, 1
      %s191 = smul.addr %s190, 4
      %s192 = smul.addr %s191, 4
      %s193 = scalar_lea.vmem %s1, %s192
      %p194 = pneg %p75
      %p195 = pneg %p72
      %p196 = scmp.lt.s32.totalorder %s18, 1
      %s197 = scalar_select %p196, %s18, 1
      %s198 = smul.addr %s197, 2
      %s199 = scalar_lea.vmem %s2, %s198
      %p200 = pneg %p101
      %p201 = pneg %p98
      %p202 = pneg %p129
      %p203 = pneg %p126
      %p204 = scmp.lt.s32.totalorder %s18, 1
      %s205 = scalar_select %p204, %s18, 1
      %p206 = scmp.lt.s32.totalorder %s19, 0
      %s207 = scalar_select %p206, %s19, 0
      %s208 = smul.addr %s207, 2
      %s209 = smul.addr %s205, 2
      %s210 = sadd.s32 %s208, %s209
      %s211 = smul.addr %s210, 2
      %s212 = scalar_lea.vmem %s3, %s211
      %p213 = scmp.lt.s32.totalorder %s18, 1
      %s214 = scalar_select %p213, %s18, 1
      %p215 = scmp.lt.s32.totalorder %s19, 0
      %s216 = scalar_select %p215, %s19, 0
      %s217 = sadd.s32 %s216, %s214
      %s218 = smul.addr %s217, 2
      %s219 = scalar_lea.vmem %s0, %s218
      %p220 = scmp.lt.s32.totalorder %s18, 1
      %s221 = scalar_select %p220, %s18, 1
      %s222 = smul.addr %s221, 4
      %s223 = smul.addr %s222, 4
      %s224 = scalar_lea.vmem %s1, %s223
      %p225 = scmp.lt.s32.totalorder %s18, 1
      %s226 = scalar_select %p225, %s18, 1
      %s227 = smul.addr %s226, 2
      %s228 = scalar_lea.vmem %s2, %s227
      %p229 = scmp.lt.s32.totalorder %s18, 1
      %s230 = scalar_select %p229, %s18, 1
      %p231 = scmp.lt.s32.totalorder %s19, 0
      %s232 = scalar_select %p231, %s19, 0
      %s233 = smul.addr %s232, 2
      %s234 = smul.addr %s230, 2
      %s235 = sadd.s32 %s233, %s234
      %s236 = smul.addr %s235, 2
      %s237 = scalar_lea.vmem %s3, %s236
      %v239 = vld [vmem:[%s219] sm:$0x3]
      %v240 = vld [vmem:[%s224] sm:$0xff]
      %v241 = vld [vmem:[%s224 + $0x8] sm:$0xff]
      %v242 = vld [vmem:[%s228] sm:$0x3]
      %v244 = vlaneseq
      %v245 = vshrl.u32 %v244, 7
      %v246 = vsub.s32 0, %v245
      %v247 = vrot.slane %v242, %v246
      %v248 = vlaneseq
      %v249 = vshrl.u32 %v248, 7
      %v250 = vsub.s32 1, %v249
      %v251 = vrot.slane %v242, %v250
      %v256 = vunpack.c.l.b16 %v240
      %v257 = vunpack.c.h.b16 %v240
      %v258 = vunpack.c.l.b16 %v241
      %v259 = vunpack.c.h.b16 %v241
      %v260 = vpack.c.b16 %v258, %v256
      %v261 = vpack.c.b16 %v259, %v257
      %vm264 = vcmask 130048
      %v266 = vsel %vm264, %v239, 0
      %268 = vmatprep.subr.bf16.mxu0 %v261
      %269 = vmatpush1.bf16.msra.mxu0 %v260
      %270 = vmatprep.subr.bf16.mxu0 0
      %271 = vmatpush1.bf16.msra.mxu0 0
      %272 = vmatprep.subr.bf16.mxu0 0
      %273 = vmatpush1.bf16.msra.mxu0 0
      %274 = vmatprep.subr.bf16.mxu0 0
      %275 = vmatpush1.bf16.msra.mxu0 0
      %276 = vmatprep.subr.bf16.mxu0 0
      %277 = vmatpush1.bf16.msra.mxu0 0
      %278 = vmatprep.subr.bf16.mxu0 0
      %279 = vmatpush1.bf16.msra.mxu0 0
      %280 = vmatprep.subr.bf16.mxu0 0
      %281 = vmatpush1.bf16.msra.mxu0 0
      %282 = vmatprep.subr.bf16.mxu0 0
      %283 = vmatpush1.bf16.msra.mxu0 0
      %284 = vmatprep.subr.bf16.mxu0 0
      %285 = vmatpush1.bf16.msra.mxu0 0
      %286 = vmatprep.subr.bf16.mxu0 0
      %287 = vmatpush1.bf16.msra.mxu0 0
      %288 = vmatprep.subr.bf16.mxu0 0
      %289 = vmatpush1.bf16.msra.mxu0 0
      %290 = vmatprep.subr.bf16.mxu0 0
      %291 = vmatpush1.bf16.msra.mxu0 0
      %292 = vmatprep.subr.bf16.mxu0 0
      %293 = vmatpush1.bf16.msra.mxu0 0
      %294 = vmatprep.subr.bf16.mxu0 0
      %295 = vmatpush1.bf16.msra.mxu0 0
      %296 = vmatprep.subr.bf16.mxu0 0
      %297 = vmatpush1.bf16.msra.mxu0 0
      %298 = vmatprep.subr.bf16.mxu0 0
      %299 = vmatpush1.bf16.msra.mxu0 0
      %300 = vmatprep.mubr.bf16.mxu0 0
      %301 = vmatmul.mubr.bf16.gmra.mrb[0].mxu0 %v266
      %v302 = vpop.f32.mrb[0].mxu0
      %v303 = vadd.f32 %v247, %v302
      %v304 = vpop.f32.mrb[0].mxu0
      %v305 = vadd.f32 %v251, %v304
      %v306 = vpop.f32.mrb[0].mxu0
      %v307 = vpop.f32.mrb[0].mxu0
      %308 = vdwg.mxu0
      %v309 = vmax.f32 %v303, 0.0
      %v310 = vmax.f32 %v305, 0.0
      %v311 = vpack.c.bf16 %v309, %v309
      %v312 = vpack.c.bf16 %v310, %v310
      %v315 = vcombine.low %v311, %v312
      %v317 = vunpack.c.l.s4 1983009808
      %v318 = vunpack.c.0.s8 %v317
      %v319 = vlaneseq
      %v320 = vshrl.u32 %v319, 7
      %v321 = vsub.s32 %v318, %v320
      %v322 = vrot.slane %v315, %v321
      %324 = vst [vmem:[%s237] sm:$0xf] %v322
      %p325 = scmp.lt.s32.totalorder %s18, 1
      %s326 = scalar_select %p325, %s18, 1
      %p327 = scmp.lt.s32.totalorder %s19, 0
      %s328 = scalar_select %p327, %s19, 0
      %s329 = smul.addr %s328, 2
      %s330 = smul.addr %s326, 2
      %s331 = sadd.s32 %s329, %s330
      %s332 = smul.addr %s331, 2
      %s333 = scalar_lea.vmem %s3, %s332
      // Predicated region
      $region33: #{_lambda_.18} parent=31 // pred_check
        %p334 = pneg %p126
      $region34: #{_lambda_.18} parent=31 // pred_check_branch
        %336 = sbr.rel (%p334) target = $region36
      $region35: #{_lambda_.18} parent=31 // pred_region
        _
      $region36: #{_lambda_.18} parent=31 // pred_fallthru
        _
    $region32: #{_lambda_.18} parent=5 // pred_fallthru
      _
    %p337 = scmp.le.s32.totalorder 2, %s9
    // Predicated region
    $region37: #{_lambda_.18} parent=5 // pred_check
      %p338 = pneg %p337
    $region38: #{_lambda_.18} parent=5 // pred_check_branch
      %340 = sbr.rel (%p338) target = $region40
    $region39: #{_lambda_.18} parent=5 // pred_region
      %s341 = ssub.s32 %s9, 2
      // Predicated region
      $region41: #{_lambda_.18} parent=39 // pred_check
        %p342 = pneg %p132
      $region42: #{_lambda_.18} parent=39 // pred_check_branch
        %344 = sbr.rel (%p342) target = $region44
      $region43: #{_lambda_.18} parent=39 // pred_region
        %p345 = scmp.lt.s32.totalorder %s20, 1
        %s346 = scalar_select %p345, %s20, 1
        %p347 = scmp.lt.s32.totalorder %s21, 0
        %s348 = scalar_select %p347, %s21, 0
        %s349 = smul.addr %s348, 2
        %s350 = smul.addr %s346, 2
        %s351 = sadd.s32 %s349, %s350
        %s352 = smul.addr %s351, 2
        %s353 = scalar_lea.vmem %s3, %s352
      $region44: #{_lambda_.18} parent=39 // pred_fallthru
        _
    $region40: #{_lambda_.18} parent=5 // pred_fallthru
      _
  $region6: #{_lambda_.18} parent=0 // loop_footer
    %s13 = sadd.s32 1, %s9
  $region7: #{_lambda_.18} parent=0 // loop_footer_branch
    %8 = sbr.rel target = $region3
  $region8: #{_lambda_.18} parent=0 // loop_exit
    _

// kernel: _lambda_.17
$region0: #{_lambda_.17}
  #allocation0 [shape = 'u32[]', space=smem, size = 0x4, offset = 0x4, fixed_abs, tag = 'smem constant byte address 0x4 - core index']
  #allocation1 [shape = 'u32[144,128]{1,0:T(1,128)}', space=vmem, size = 0x12000, scoped, tag = 'internal scratch']
  %s0 = inlined_call_operand.vmem [shape: bf16[2,4,144], index: 0, kind: input, shape index: {}]
  %s1 = inlined_call_operand.vmem [shape: bf16[2,144,16], index: 1, kind: input, shape index: {}]
  %s2 = inlined_call_operand.vmem [shape: f32[2,1,16], index: 2, kind: input, shape index: {}]
  %s3 = inlined_call_operand.vmem [shape: bf16[2,4,16], index: 3, kind: output, shape index: {}]
  %s4 = sld [smem:[#allocation0]]
  $region45: #{_lambda_.17} parent=0
    _
  %s6 = ssub.s32 1, %s4
  %s7 = scalar_select 0, %s6, %s4
  loop: start=0, step=1, limit=4
  $region2: #{_lambda_.17} parent=0 // loop_pre_header
    _
  $region3: #{_lambda_.17} parent=0 // loop_header
    %s9 = sphi 0, %s13
    %p10 = scmp.ge.s32.totalorder %s9, 4
    %s16 = sphi 0, %s28
    %s17 = sphi 0, %s24
    %s18 = sphi 0, %s16
    %s19 = sphi 0, %s17
    %s20 = sphi 0, %s18
    %s21 = sphi 0, %s19
    %s33 = sphi 0, %s35
    %s36 = sphi 0, %s33
    %s37 = sphi 0, %s36
    %s53 = sphi 0, %s37
    %s59 = sphi 0, %s61
    %s62 = sphi 0, %s59
    %s63 = sphi 0, %s62
    %s79 = sphi 0, %s63
    %s85 = sphi 0, %s87
    %s88 = sphi 0, %s85
    %s89 = sphi 0, %s88
    %s105 = sphi 0, %s89
    %s113 = sphi 0, %s115
    %s116 = sphi 0, %s113
    %s117 = sphi 0, %s116
    %s133 = sphi 0, %s117
  $region4: #{_lambda_.17} parent=0 // loop_header_branch
    %12 = sbr.rel (%p10) target = $region8
  $region5: #{_lambda_.17} parent=0 // loop_body
    %s14 = ssub.s32 %s9, 1
    %s15 = ssub.s32 %s9, 2
    %s22 = sadd.s32 1, %s17
    %p23 = scmp.ge.s32.totalorder %s22, 1
    %s24 = scalar_select %p23, 0, %s22
    %s25 = sadd.s32 1, %s16
    %s26 = scalar_select %p23, %s25, %s16
    %p27 = scmp.ge.s32.totalorder %s26, 2
    %s28 = scalar_select %p27, 0, %s26
    %s29 = ssub.s32 %s16, %s28
    %s30 = ssub.s32 %s17, %s24
    %s31 = sor.u32 %s29, %s30
    %p32 = scmp.eq.s32.totalorder %s31, 0
    %s34 = sadd.s32 %s33, 1
    %s35 = scalar_select %p32, %s33, %s34
    %p38 = pneg %p32
    %p39 = scmp.eq.s32.totalorder %s9, 1
    %p40 = por %p38, %p39
    %p41 = scmp.ne.s32.totalorder %s33, %s36
    %p42 = scmp.eq.s32.totalorder %s9, 0
    %p43 = por %p41, %p42
    %p44 = scmp.ne.s32.totalorder %s33, %s36
    %p45 = scmp.eq.s32.totalorder %s14, 1
    %p46 = por %p44, %p45
    %p47 = scmp.ne.s32.totalorder %s36, %s37
    %p48 = scmp.eq.s32.totalorder %s14, 0
    %p49 = por %p47, %p48
    %p50 = scmp.ne.s32.totalorder %s36, %s37
    %p51 = scmp.eq.s32.totalorder %s15, 1
    %p52 = por %p50, %p51
    %p54 = scmp.ne.s32.totalorder %s37, %s53
    %p55 = scmp.eq.s32.totalorder %s15, 0
    %p56 = por %p54, %p55
    %s57 = ssub.s32 %s16, %s28
    %p58 = scmp.eq.s32.totalorder %s57, 0
    %s60 = sadd.s32 %s59, 1
    %s61 = scalar_select %p58, %s59, %s60
    %p64 = pneg %p58
    %p65 = scmp.eq.s32.totalorder %s9, 1
    %p66 = por %p64, %p65
    %p67 = scmp.ne.s32.totalorder %s59, %s62
    %p68 = scmp.eq.s32.totalorder %s9, 0
    %p69 = por %p67, %p68
    %p70 = scmp.ne.s32.totalorder %s59, %s62
    %p71 = scmp.eq.s32.totalorder %s14, 1
    %p72 = por %p70, %p71
    %p73 = scmp.ne.s32.totalorder %s62, %s63
    %p74 = scmp.eq.s32.totalorder %s14, 0
    %p75 = por %p73, %p74
    %p76 = scmp.ne.s32.totalorder %s62, %s63
    %p77 = scmp.eq.s32.totalorder %s15, 1
    %p78 = por %p76, %p77
    %p80 = scmp.ne.s32.totalorder %s63, %s79
    %p81 = scmp.eq.s32.totalorder %s15, 0
    %p82 = por %p80, %p81
    %s83 = ssub.s32 %s16, %s28
    %p84 = scmp.eq.s32.totalorder %s83, 0
    %s86 = sadd.s32 %s85, 1
    %s87 = scalar_select %p84, %s85, %s86
    %p90 = pneg %p84
    %p91 = scmp.eq.s32.totalorder %s9, 1
    %p92 = por %p90, %p91
    %p93 = scmp.ne.s32.totalorder %s85, %s88
    %p94 = scmp.eq.s32.totalorder %s9, 0
    %p95 = por %p93, %p94
    %p96 = scmp.ne.s32.totalorder %s85, %s88
    %p97 = scmp.eq.s32.totalorder %s14, 1
    %p98 = por %p96, %p97
    %p99 = scmp.ne.s32.totalorder %s88, %s89
    %p100 = scmp.eq.s32.totalorder %s14, 0
    %p101 = por %p99, %p100
    %p102 = scmp.ne.s32.totalorder %s88, %s89
    %p103 = scmp.eq.s32.totalorder %s15, 1
    %p104 = por %p102, %p103
    %p106 = scmp.ne.s32.totalorder %s89, %s105
    %p107 = scmp.eq.s32.totalorder %s15, 0
    %p108 = por %p106, %p107
    %s109 = ssub.s32 %s16, %s28
    %s110 = ssub.s32 %s17, %s24
    %s111 = sor.u32 %s109, %s110
    %p112 = scmp.eq.s32.totalorder %s111, 0
    %s114 = sadd.s32 %s113, 1
    %s115 = scalar_select %p112, %s113, %s114
    %p118 = pneg %p112
    %p119 = scmp.eq.s32.totalorder %s9, 1
    %p120 = por %p118, %p119
    %p121 = scmp.ne.s32.totalorder %s113, %s116
    %p122 = scmp.eq.s32.totalorder %s9, 0
    %p123 = por %p121, %p122
    %p124 = scmp.ne.s32.totalorder %s113, %s116
    %p125 = scmp.eq.s32.totalorder %s14, 1
    %p126 = por %p124, %p125
    %p127 = scmp.ne.s32.totalorder %s116, %s117
    %p128 = scmp.eq.s32.totalorder %s14, 0
    %p129 = por %p127, %p128
    %p130 = scmp.ne.s32.totalorder %s116, %s117
    %p131 = scmp.eq.s32.totalorder %s15, 1
    %p132 = por %p130, %p131
    %p134 = scmp.ne.s32.totalorder %s117, %s133
    %p135 = scmp.eq.s32.totalorder %s15, 0
    %p136 = por %p134, %p135
    %p137 = scmp.le.s32.totalorder 1, %s9
    %p138 = scmp.lt.s32.totalorder %s9, 3
    %p139 = pnand %p137, %p138
    %p140 = pneg %p139
    // Predicated region
    $region9: #{_lambda_.17} parent=5 // pred_check
      _
    $region10: #{_lambda_.17} parent=5 // pred_check_branch
      %142 = sbr.rel (%p139) target = $region12
    $region11: #{_lambda_.17} parent=5 // pred_region
      %s143 = ssub.s32 %s9, 1
    $region12: #{_lambda_.17} parent=5 // pred_fallthru
      _
    %p144 = scmp.lt.s32.totalorder %s9, 2
    // Predicated region
    $region13: #{_lambda_.17} parent=5 // pred_check
      %p145 = pneg %p144
    $region14: #{_lambda_.17} parent=5 // pred_check_branch
      %147 = sbr.rel (%p145) target = $region16
    $region15: #{_lambda_.17} parent=5 // pred_region
      // Predicated region
      $region17: #{_lambda_.17} parent=15 // pred_check
        %p148 = pneg %p43
      $region18: #{_lambda_.17} parent=15 // pred_check_branch
        %150 = sbr.rel (%p148) target = $region20
      $region19: #{_lambda_.17} parent=15 // pred_region
        %p151 = scmp.lt.s32.totalorder %s16, 1
        %s152 = scalar_select %p151, %s16, 1
        %p153 = scmp.lt.s32.totalorder %s17, 0
        %s154 = scalar_select %p153, %s17, 0
        %s155 = smul.addr %s154, 2
        %s156 = smul.addr %s152, 2
        %s157 = sadd.s32 %s155, %s156
        %s158 = smul.addr %s157, 2
        %s159 = scalar_lea.vmem %s0, %s158
      $region20: #{_lambda_.17} parent=15 // pred_fallthru
        _
      // Predicated region
      $region21: #{_lambda_.17} parent=15 // pred_check
        %p160 = pneg %p69
      $region22: #{_lambda_.17} parent=15 // pred_check_branch
        %162 = sbr.rel (%p160) target = $region24
      $region23: #{_lambda_.17} parent=15 // pred_region
        %p163 = scmp.lt.s32.totalorder %s16, 1
        %s164 = scalar_select %p163, %s16, 1
        %s165 = smul.addr %s164, 18
        %s166 = smul.addr %s165, 4
        %s167 = scalar_lea.vmem %s1, %s166
      $region24: #{_lambda_.17} parent=15 // pred_fallthru
        _
      // Predicated region
      $region25: #{_lambda_.17} parent=15 // pred_check
        %p168 = pneg %p95
      $region26: #{_lambda_.17} parent=15 // pred_check_branch
        %170 = sbr.rel (%p168) target = $region28
      $region27: #{_lambda_.17} parent=15 // pred_region
        %p171 = scmp.lt.s32.totalorder %s16, 1
        %s172 = scalar_select %p171, %s16, 1
        %s173 = scalar_lea.vmem %s2, %s172
      $region28: #{_lambda_.17} parent=15 // pred_fallthru
        _
    $region16: #{_lambda_.17} parent=5 // pred_fallthru
      _
    %p174 = scmp.le.s32.totalorder 1, %s9
    %p175 = scmp.lt.s32.totalorder %s9, 3
    %p176 = pnand %p174, %p175
    %p177 = pneg %p176
    // Predicated region
    $region29: #{_lambda_.17} parent=5 // pred_check
      _
    $region30: #{_lambda_.17} parent=5 // pred_check_branch
      %179 = sbr.rel (%p176) target = $region32
    $region31: #{_lambda_.17} parent=5 // pred_region
      %s180 = ssub.s32 %s9, 1
      %p181 = scmp.lt.s32.totalorder %s18, 1
      %s182 = scalar_select %p181, %s18, 1
      %p183 = scmp.lt.s32.totalorder %s19, 0
      %s184 = scalar_select %p183, %s19, 0
      %s185 = smul.addr %s184, 2
      %s186 = smul.addr %s182, 2
      %s187 = sadd.s32 %s185, %s186
      %s188 = smul.addr %s187, 2
      %s189 = scalar_lea.vmem %s0, %s188
      %p190 = pneg %p49
      %p191 = pneg %p46
      %p192 = scmp.lt.s32.totalorder %s18, 1
      %s193 = scalar_select %p192, %s18, 1
      %s194 = smul.addr %s193, 18
      %s195 = smul.addr %s194, 4
      %s196 = scalar_lea.vmem %s1, %s195
      %p197 = pneg %p75
      %p198 = pneg %p72
      %p199 = scmp.lt.s32.totalorder %s18, 1
      %s200 = scalar_select %p199, %s18, 1
      %s201 = scalar_lea.vmem %s2, %s200
      %p202 = pneg %p101
      %p203 = pneg %p98
      %p204 = pneg %p129
      %p205 = pneg %p126
      %p206 = scmp.lt.s32.totalorder %s18, 1
      %s207 = scalar_select %p206, %s18, 1
      %p208 = scmp.lt.s32.totalorder %s19, 0
      %s209 = scalar_select %p208, %s19, 0
      %s210 = sadd.s32 %s209, %s207
      %s211 = smul.addr %s210, 2
      %s212 = scalar_lea.vmem %s3, %s211
      %p213 = scmp.lt.s32.totalorder %s18, 1
      %s214 = scalar_select %p213, %s18, 1
      %p215 = scmp.lt.s32.totalorder %s19, 0
      %s216 = scalar_select %p215, %s19, 0
      %s217 = smul.addr %s216, 2
      %s218 = smul.addr %s214, 2
      %s219 = sadd.s32 %s217, %s218
      %s220 = smul.addr %s219, 2
      %s221 = scalar_lea.vmem %s0, %s220
      %p222 = scmp.lt.s32.totalorder %s18, 1
      %s223 = scalar_select %p222, %s18, 1
      %s224 = smul.addr %s223, 18
      %s225 = smul.addr %s224, 4
      %s226 = scalar_lea.vmem %s1, %s225
      %p227 = scmp.lt.s32.totalorder %s18, 1
      %s228 = scalar_select %p227, %s18, 1
      %s229 = scalar_lea.vmem %s2, %s228
      %p230 = scmp.lt.s32.totalorder %s18, 1
      %s231 = scalar_select %p230, %s18, 1
      %p232 = scmp.lt.s32.totalorder %s19, 0
      %s233 = scalar_select %p232, %s19, 0
      %s234 = sadd.s32 %s233, %s231
      %s235 = smul.addr %s234, 2
      %s236 = scalar_lea.vmem %s3, %s235
      %v238 = vld [vmem:[%s221] sm:$0xf]
      %v239 = vld [vmem:[%s226] sm:$0xf]
      %v240 = vld [vmem:[%s226 + $0x4] sm:$0xf]
      %v241 = vld [vmem:[%s226 + $0x8] sm:$0xf]
      %v242 = vld [vmem:[%s226 + $0xc] sm:$0xf]
      %v243 = vld [vmem:[%s226 + $0x10] sm:$0xf]
      %v244 = vld [vmem:[%s226 + $0x14] sm:$0xf]
      %v245 = vld [vmem:[%s226 + $0x18] sm:$0xf]
      %v246 = vld [vmem:[%s226 + $0x1c] sm:$0xf]
      %v247 = vld [vmem:[%s226 + $0x20] sm:$0xf]
      %v248 = vld [vmem:[%s226 + $0x24] sm:$0xf]
      %v249 = vld [vmem:[%s226 + $0x28] sm:$0xf]
      %v250 = vld [vmem:[%s226 + $0x2c] sm:$0xf]
      %v251 = vld [vmem:[%s226 + $0x30] sm:$0xf]
      %v252 = vld [vmem:[%s226 + $0x34] sm:$0xf]
      %v253 = vld [vmem:[%s226 + $0x38] sm:$0xf]
      %v254 = vld [vmem:[%s226 + $0x3c] sm:$0xf]
      %v255 = vld [vmem:[%s226 + $0x40] sm:$0xf]
      %v256 = vld [vmem:[%s226 + $0x44] sm:$0xf]
      %v257 = vld [vmem:[%s229] sm:$0x1]
      %v259 = vlaneseq
      %v260 = vshrl.u32 %v259, 7
      %v261 = vsub.s32 0, %v260
      %v262 = vrot.slane %v257, %v261
      %v266 = vunpack.c.l.s4 1983009808
      %v267 = vunpack.c.0.s8 %v266
      %v268 = vlaneseq
      %v269 = vshrl.u32 %v268, 7
      %v270 = vsub.s32 %v267, %v269
      %v271 = vrot.slane %v238, %v270
      %v272 = vcombine.high %v271, %v271
      %v292 = vunpack.c.l.b16 %v239
      %v293 = vunpack.c.l.b16 %v240
      %v294 = vunpack.c.l.b16 %v241
      %v295 = vunpack.c.l.b16 %v242
      %v296 = vunpack.c.l.b16 %v243
      %v297 = vunpack.c.l.b16 %v244
      %v298 = vunpack.c.l.b16 %v245
      %v299 = vunpack.c.l.b16 %v246
      %v300 = vunpack.c.l.b16 %v247
      %v301 = vunpack.c.l.b16 %v248
      %v302 = vunpack.c.l.b16 %v249
      %v303 = vunpack.c.l.b16 %v250
      %v304 = vunpack.c.l.b16 %v251
      %v305 = vunpack.c.l.b16 %v252
      %v306 = vunpack.c.l.b16 %v253
      %v307 = vunpack.c.l.b16 %v254
      %v308 = vunpack.c.l.b16 %v255
      %v309 = vunpack.c.l.b16 %v256
      %v310 = vpack.c.b16 %v293, %v292
      %v311 = vpack.c.b16 %v295, %v294
      %v312 = vpack.c.b16 %v297, %v296
      %v313 = vpack.c.b16 %v299, %v298
      %v314 = vpack.c.b16 %v301, %v300
      %v315 = vpack.c.b16 %v303, %v302
      %v316 = vpack.c.b16 %v305, %v304
      %v317 = vpack.c.b16 %v307, %v306
      %v318 = vpack.c.b16 %v309, %v308
      %vm328 = vcmask 130048
      %v330 = vsel %vm328, %v272, 0
      %332 = vmatprep.subr.bf16.mxu0 0
      %333 = vmatpush1.bf16.msra.mxu0 %v310
      %334 = vmatprep.subr.bf16.mxu0 0
      %335 = vmatpush1.bf16.msra.mxu0 %v311
      %336 = vmatprep.subr.bf16.mxu0 0
      %337 = vmatpush1.bf16.msra.mxu0 %v312
      %338 = vmatprep.subr.bf16.mxu0 0
      %339 = vmatpush1.bf16.msra.mxu0 %v313
      %340 = vmatprep.subr.bf16.mxu0 0
      %341 = vmatpush1.bf16.msra.mxu0 %v314
      %342 = vmatprep.subr.bf16.mxu0 0
      %343 = vmatpush1.bf16.msra.mxu0 %v315
      %344 = vmatprep.subr.bf16.mxu0 0
      %345 = vmatpush1.bf16.msra.mxu0 %v316
      %346 = vmatprep.subr.bf16.mxu0 0
      %347 = vmatpush1.bf16.msra.mxu0 %v317
      %348 = vmatprep.subr.bf16.mxu0 0
      %349 = vmatpush1.bf16.msra.mxu0 %v318
      %350 = vmatprep.subr.bf16.mxu0 0
      %351 = vmatpush1.bf16.msra.mxu0 0
      %352 = vmatprep.subr.bf16.mxu0 0
      %353 = vmatpush1.bf16.msra.mxu0 0
      %354 = vmatprep.subr.bf16.mxu0 0
      %355 = vmatpush1.bf16.msra.mxu0 0
      %356 = vmatprep.subr.bf16.mxu0 0
      %357 = vmatpush1.bf16.msra.mxu0 0
      %358 = vmatprep.subr.bf16.mxu0 0
      %359 = vmatpush1.bf16.msra.mxu0 0
      %360 = vmatprep.subr.bf16.mxu0 0
      %361 = vmatpush1.bf16.msra.mxu0 0
      %362 = vmatprep.subr.bf16.mxu0 0
      %363 = vmatpush1.bf16.msra.mxu0 0
      %364 = vmatprep.mubr.bf16.mxu0 %v330
      %365 = vmatmul.mubr.bf16.gmra.mrb[0].mxu0 %v271
      %v366 = vpop.f32.mrb[0].mxu0
      %v367 = vadd.f32 %v262, %v366
      %v368 = vpop.f32.mrb[0].mxu0
      %v369 = vpop.f32.mrb[0].mxu0
      %v370 = vpop.f32.mrb[0].mxu0
      %371 = vdwg.mxu0
      %v372 = vmax.f32 %v367, 0.0
      %v373 = vpack.c.bf16 %v372, %v372
      %vm374 = vcmask 123904
      %375 = vst.msk [vmem:[%s236] sm:$0x3] %vm374, %v373
      %p376 = scmp.lt.s32.totalorder %s18, 1
      %s377 = scalar_select %p376, %s18, 1
      %p378 = scmp.lt.s32.totalorder %s19, 0
      %s379 = scalar_select %p378, %s19, 0
      %s380 = sadd.s32 %s379, %s377
      %s381 = smul.addr %s380, 2
      %s382 = scalar_lea.vmem %s3, %s381
      // Predicated region
      $region33: #{_lambda_.17} parent=31 // pred_check
        %p383 = pneg %p126
      $region34: #{_lambda_.17} parent=31 // pred_check_branch
        %385 = sbr.rel (%p383) target = $region36
      $region35: #{_lambda_.17} parent=31 // pred_region
        _
      $region36: #{_lambda_.17} parent=31 // pred_fallthru
        _
    $region32: #{_lambda_.17} parent=5 // pred_fallthru
      _
    %p386 = scmp.le.s32.totalorder 2, %s9
    // Predicated region
    $region37: #{_lambda_.17} parent=5 // pred_check
      %p387 = pneg %p386
    $region38: #{_lambda_.17} parent=5 // pred_check_branch
      %389 = sbr.rel (%p387) target = $region40
    $region39: #{_lambda_.17} parent=5 // pred_region
      %s390 = ssub.s32 %s9, 2
      // Predicated region
      $region41: #{_lambda_.17} parent=39 // pred_check
        %p391 = pneg %p132
      $region42: #{_lambda_.17} parent=39 // pred_check_branch
        %393 = sbr.rel (%p391) target = $region44
      $region43: #{_lambda_.17} parent=39 // pred_region
        %p394 = scmp.lt.s32.totalorder %s20, 1
        %s395 = scalar_select %p394, %s20, 1
        %p396 = scmp.lt.s32.totalorder %s21, 0
        %s397 = scalar_select %p396, %s21, 0
        %s398 = sadd.s32 %s397, %s395
        %s399 = smul.addr %s398, 2
        %s400 = scalar_lea.vmem %s3, %s399
      $region44: #{_lambda_.17} parent=39 // pred_fallthru
        _
    $region40: #{_lambda_.17} parent=5 // pred_fallthru
      _
  $region6: #{_lambda_.17} parent=0 // loop_footer
    %s13 = sadd.s32 1, %s9
  $region7: #{_lambda_.17} parent=0 // loop_footer_branch
    %8 = sbr.rel target = $region3
  $region8: #{_lambda_.17} parent=0 // loop_exit
    _

// kernel: _lambda_.15
$region0: #{_lambda_.15}
  #allocation0 [shape = 'u32[]', space=smem, size = 0x4, offset = 0x4, fixed_abs, tag = 'smem constant byte address 0x4 - core index']
  #allocation1 [shape = 'u32[144,128]{1,0:T(1,128)}', space=vmem, size = 0x12000, scoped, tag = 'internal scratch']
  %s0 = inlined_call_operand.vmem [shape: bf16[2,16,8], index: 0, kind: input, shape index: {}]
  %s1 = inlined_call_operand.vmem [shape: bf16[2,8,64], index: 1, kind: input, shape index: {}]
  %s2 = inlined_call_operand.vmem [shape: f32[2,1,64], index: 2, kind: input, shape index: {}]
  %s3 = inlined_call_operand.vmem [shape: bf16[2,16,64], index: 3, kind: output, shape index: {}]
  %s4 = sld [smem:[#allocation0]]
  $region45: #{_lambda_.15} parent=0
    _
  %s6 = ssub.s32 1, %s4
  %s7 = scalar_select 0, %s6, %s4
  loop: start=0, step=1, limit=4
  $region2: #{_lambda_.15} parent=0 // loop_pre_header
    _
  $region3: #{_lambda_.15} parent=0 // loop_header
    %s9 = sphi 0, %s13
    %p10 = scmp.ge.s32.totalorder %s9, 4
    %s16 = sphi 0, %s28
    %s17 = sphi 0, %s24
    %s18 = sphi 0, %s16
    %s19 = sphi 0, %s17
    %s20 = sphi 0, %s18
    %s21 = sphi 0, %s19
    %s33 = sphi 0, %s35
    %s36 = sphi 0, %s33
    %s37 = sphi 0, %s36
    %s53 = sphi 0, %s37
    %s59 = sphi 0, %s61
    %s62 = sphi 0, %s59
    %s63 = sphi 0, %s62
    %s79 = sphi 0, %s63
    %s85 = sphi 0, %s87
    %s88 = sphi 0, %s85
    %s89 = sphi 0, %s88
    %s105 = sphi 0, %s89
    %s113 = sphi 0, %s115
    %s116 = sphi 0, %s113
    %s117 = sphi 0, %s116
    %s133 = sphi 0, %s117
  $region4: #{_lambda_.15} parent=0 // loop_header_branch
    %12 = sbr.rel (%p10) target = $region8
  $region5: #{_lambda_.15} parent=0 // loop_body
    %s14 = ssub.s32 %s9, 1
    %s15 = ssub.s32 %s9, 2
    %s22 = sadd.s32 1, %s17
    %p23 = scmp.ge.s32.totalorder %s22, 1
    %s24 = scalar_select %p23, 0, %s22
    %s25 = sadd.s32 1, %s16
    %s26 = scalar_select %p23, %s25, %s16
    %p27 = scmp.ge.s32.totalorder %s26, 2
    %s28 = scalar_select %p27, 0, %s26
    %s29 = ssub.s32 %s16, %s28
    %s30 = ssub.s32 %s17, %s24
    %s31 = sor.u32 %s29, %s30
    %p32 = scmp.eq.s32.totalorder %s31, 0
    %s34 = sadd.s32 %s33, 1
    %s35 = scalar_select %p32, %s33, %s34
    %p38 = pneg %p32
    %p39 = scmp.eq.s32.totalorder %s9, 1
    %p40 = por %p38, %p39
    %p41 = scmp.ne.s32.totalorder %s33, %s36
    %p42 = scmp.eq.s32.totalorder %s9, 0
    %p43 = por %p41, %p42
    %p44 = scmp.ne.s32.totalorder %s33, %s36
    %p45 = scmp.eq.s32.totalorder %s14, 1
    %p46 = por %p44, %p45
    %p47 = scmp.ne.s32.totalorder %s36, %s37
    %p48 = scmp.eq.s32.totalorder %s14, 0
    %p49 = por %p47, %p48
    %p50 = scmp.ne.s32.totalorder %s36, %s37
    %p51 = scmp.eq.s32.totalorder %s15, 1
    %p52 = por %p50, %p51
    %p54 = scmp.ne.s32.totalorder %s37, %s53
    %p55 = scmp.eq.s32.totalorder %s15, 0
    %p56 = por %p54, %p55
    %s57 = ssub.s32 %s16, %s28
    %p58 = scmp.eq.s32.totalorder %s57, 0
    %s60 = sadd.s32 %s59, 1
    %s61 = scalar_select %p58, %s59, %s60
    %p64 = pneg %p58
    %p65 = scmp.eq.s32.totalorder %s9, 1
    %p66 = por %p64, %p65
    %p67 = scmp.ne.s32.totalorder %s59, %s62
    %p68 = scmp.eq.s32.totalorder %s9, 0
    %p69 = por %p67, %p68
    %p70 = scmp.ne.s32.totalorder %s59, %s62
    %p71 = scmp.eq.s32.totalorder %s14, 1
    %p72 = por %p70, %p71
    %p73 = scmp.ne.s32.totalorder %s62, %s63
    %p74 = scmp.eq.s32.totalorder %s14, 0
    %p75 = por %p73, %p74
    %p76 = scmp.ne.s32.totalorder %s62, %s63
    %p77 = scmp.eq.s32.totalorder %s15, 1
    %p78 = por %p76, %p77
    %p80 = scmp.ne.s32.totalorder %s63, %s79
    %p81 = scmp.eq.s32.totalorder %s15, 0
    %p82 = por %p80, %p81
    %s83 = ssub.s32 %s16, %s28
    %p84 = scmp.eq.s32.totalorder %s83, 0
    %s86 = sadd.s32 %s85, 1
    %s87 = scalar_select %p84, %s85, %s86
    %p90 = pneg %p84
    %p91 = scmp.eq.s32.totalorder %s9, 1
    %p92 = por %p90, %p91
    %p93 = scmp.ne.s32.totalorder %s85, %s88
    %p94 = scmp.eq.s32.totalorder %s9, 0
    %p95 = por %p93, %p94
    %p96 = scmp.ne.s32.totalorder %s85, %s88
    %p97 = scmp.eq.s32.totalorder %s14, 1
    %p98 = por %p96, %p97
    %p99 = scmp.ne.s32.totalorder %s88, %s89
    %p100 = scmp.eq.s32.totalorder %s14, 0
    %p101 = por %p99, %p100
    %p102 = scmp.ne.s32.totalorder %s88, %s89
    %p103 = scmp.eq.s32.totalorder %s15, 1
    %p104 = por %p102, %p103
    %p106 = scmp.ne.s32.totalorder %s89, %s105
    %p107 = scmp.eq.s32.totalorder %s15, 0
    %p108 = por %p106, %p107
    %s109 = ssub.s32 %s16, %s28
    %s110 = ssub.s32 %s17, %s24
    %s111 = sor.u32 %s109, %s110
    %p112 = scmp.eq.s32.totalorder %s111, 0
    %s114 = sadd.s32 %s113, 1
    %s115 = scalar_select %p112, %s113, %s114
    %p118 = pneg %p112
    %p119 = scmp.eq.s32.totalorder %s9, 1
    %p120 = por %p118, %p119
    %p121 = scmp.ne.s32.totalorder %s113, %s116
    %p122 = scmp.eq.s32.totalorder %s9, 0
    %p123 = por %p121, %p122
    %p124 = scmp.ne.s32.totalorder %s113, %s116
    %p125 = scmp.eq.s32.totalorder %s14, 1
    %p126 = por %p124, %p125
    %p127 = scmp.ne.s32.totalorder %s116, %s117
    %p128 = scmp.eq.s32.totalorder %s14, 0
    %p129 = por %p127, %p128
    %p130 = scmp.ne.s32.totalorder %s116, %s117
    %p131 = scmp.eq.s32.totalorder %s15, 1
    %p132 = por %p130, %p131
    %p134 = scmp.ne.s32.totalorder %s117, %s133
    %p135 = scmp.eq.s32.totalorder %s15, 0
    %p136 = por %p134, %p135
    %p137 = scmp.le.s32.totalorder 1, %s9
    %p138 = scmp.lt.s32.totalorder %s9, 3
    %p139 = pnand %p137, %p138
    %p140 = pneg %p139
    // Predicated region
    $region9: #{_lambda_.15} parent=5 // pred_check
      _
    $region10: #{_lambda_.15} parent=5 // pred_check_branch
      %142 = sbr.rel (%p139) target = $region12
    $region11: #{_lambda_.15} parent=5 // pred_region
      %s143 = ssub.s32 %s9, 1
    $region12: #{_lambda_.15} parent=5 // pred_fallthru
      _
    %p144 = scmp.lt.s32.totalorder %s9, 2
    // Predicated region
    $region13: #{_lambda_.15} parent=5 // pred_check
      %p145 = pneg %p144
    $region14: #{_lambda_.15} parent=5 // pred_check_branch
      %147 = sbr.rel (%p145) target = $region16
    $region15: #{_lambda_.15} parent=5 // pred_region
      // Predicated region
      $region17: #{_lambda_.15} parent=15 // pred_check
        %p148 = pneg %p43
      $region18: #{_lambda_.15} parent=15 // pred_check_branch
        %150 = sbr.rel (%p148) target = $region20
      $region19: #{_lambda_.15} parent=15 // pred_region
        %s151 = smul.u32 2, %s17
        %p152 = scmp.lt.s32.totalorder %s16, 1
        %s153 = scalar_select %p152, %s16, 1
        %p154 = scmp.lt.s32.totalorder %s151, 1
        %s155 = scalar_select %p154, %s151, 1
        %s156 = smul.addr %s153, 2
        %s157 = sadd.s32 %s155, %s156
        %s158 = smul.addr %s157, 4
        %s159 = scalar_lea.vmem %s0, %s158
        %s160 = smul.u32 2, %s17
      $region20: #{_lambda_.15} parent=15 // pred_fallthru
        _
      // Predicated region
      $region21: #{_lambda_.15} parent=15 // pred_check
        %p161 = pneg %p69
      $region22: #{_lambda_.15} parent=15 // pred_check_branch
        %163 = sbr.rel (%p161) target = $region24
      $region23: #{_lambda_.15} parent=15 // pred_region
        %p164 = scmp.lt.s32.totalorder %s16, 1
        %s165 = scalar_select %p164, %s16, 1
        %s166 = smul.addr %s165, 4
        %s167 = scalar_lea.vmem %s1, %s166
      $region24: #{_lambda_.15} parent=15 // pred_fallthru
        _
      // Predicated region
      $region25: #{_lambda_.15} parent=15 // pred_check
        %p168 = pneg %p95
      $region26: #{_lambda_.15} parent=15 // pred_check_branch
        %170 = sbr.rel (%p168) target = $region28
      $region27: #{_lambda_.15} parent=15 // pred_region
        %p171 = scmp.lt.s32.totalorder %s16, 1
        %s172 = scalar_select %p171, %s16, 1
        %s173 = scalar_lea.vmem %s2, %s172
      $region28: #{_lambda_.15} parent=15 // pred_fallthru
        _
    $region16: #{_lambda_.15} parent=5 // pred_fallthru
      _
    %p174 = scmp.le.s32.totalorder 1, %s9
    %p175 = scmp.lt.s32.totalorder %s9, 3
    %p176 = pnand %p174, %p175
    %p177 = pneg %p176
    // Predicated region
    $region29: #{_lambda_.15} parent=5 // pred_check
      _
    $region30: #{_lambda_.15} parent=5 // pred_check_branch
      %179 = sbr.rel (%p176) target = $region32
    $region31: #{_lambda_.15} parent=5 // pred_region
      %s180 = ssub.s32 %s9, 1
      %s181 = smul.u32 2, %s19
      %p182 = scmp.lt.s32.totalorder %s18, 1
      %s183 = scalar_select %p182, %s18, 1
      %p184 = scmp.lt.s32.totalorder %s181, 1
      %s185 = scalar_select %p184, %s181, 1
      %s186 = smul.addr %s183, 2
      %s187 = sadd.s32 %s185, %s186
      %s188 = smul.addr %s187, 4
      %s189 = scalar_lea.vmem %s0, %s188
      %p190 = pneg %p49
      %p191 = pneg %p46
      %p192 = scmp.lt.s32.totalorder %s18, 1
      %s193 = scalar_select %p192, %s18, 1
      %s194 = smul.addr %s193, 4
      %s195 = scalar_lea.vmem %s1, %s194
      %p196 = pneg %p75
      %p197 = pneg %p72
      %p198 = scmp.lt.s32.totalorder %s18, 1
      %s199 = scalar_select %p198, %s18, 1
      %s200 = scalar_lea.vmem %s2, %s199
      %p201 = pneg %p101
      %p202 = pneg %p98
      %p203 = pneg %p129
      %p204 = pneg %p126
      %s205 = smul.u32 2, %s19
      %p206 = scmp.lt.s32.totalorder %s18, 1
      %s207 = scalar_select %p206, %s18, 1
      %p208 = scmp.lt.s32.totalorder %s205, 1
      %s209 = scalar_select %p208, %s205, 1
      %s210 = smul.addr %s207, 2
      %s211 = sadd.s32 %s209, %s210
      %s212 = smul.addr %s211, 4
      %s213 = scalar_lea.vmem %s3, %s212
      %s214 = smul.u32 2, %s19
      %p215 = scmp.lt.s32.totalorder %s18, 1
      %s216 = scalar_select %p215, %s18, 1
      %p217 = scmp.lt.s32.totalorder %s214, 1
      %s218 = scalar_select %p217, %s214, 1
      %s219 = smul.addr %s216, 2
      %s220 = sadd.s32 %s218, %s219
      %s221 = smul.addr %s220, 4
      %s222 = scalar_lea.vmem %s0, %s221
      %s223 = smul.u32 2, %s19
      %p224 = scmp.lt.s32.totalorder %s18, 1
      %s225 = scalar_select %p224, %s18, 1
      %s226 = smul.addr %s225, 4
      %s227 = scalar_lea.vmem %s1, %s226
      %p228 = scmp.lt.s32.totalorder %s18, 1
      %s229 = scalar_select %p228, %s18, 1
      %s230 = scalar_lea.vmem %s2, %s229
      %s231 = smul.u32 2, %s19
      %p232 = scmp.lt.s32.totalorder %s18, 1
      %s233 = scalar_select %p232, %s18, 1
      %p234 = scmp.lt.s32.totalorder %s231, 1
      %s235 = scalar_select %p234, %s231, 1
      %s236 = smul.addr %s233, 2
      %s237 = sadd.s32 %s235, %s236
      %s238 = smul.addr %s237, 4
      %s239 = scalar_lea.vmem %s3, %s238
      %s240 = smul.u32 2, %s19
      %v242 = vld [vmem:[%s222] sm:$0xf]
      %v243 = vld [vmem:[%s222 + $0x4] sm:$0xf]
      %v244 = vld [vmem:[%s227] sm:$0xf]
      %v245 = vld [vmem:[%s230] sm:$0x1]
      %v247 = vlaneseq
      %v248 = vshrl.u32 %v247, 7
      %v249 = vsub.s32 0, %v248
      %v250 = vrot.slane %v245, %v249
      %v254 = vunpack.c.l.b16 %v242
      %v255 = vunpack.c.l.b16 %v243
      %v256 = vpack.c.b16 %v255, %v254
      %vm257 = vcmask 64512
      %v259 = vsel %vm257, %v256, 0
      %vm261 = vcmask 1043456
      %v263 = vsel %vm261, %v244, 0
      %265 = vmatprep.subr.bf16.mxu0 0
      %266 = vmatpush1.bf16.msra.mxu0 %v263
      %267 = vmatprep.subr.bf16.mxu0 0
      %268 = vmatpush1.bf16.msra.mxu0 0
      %269 = vmatprep.subr.bf16.mxu0 0
      %270 = vmatpush1.bf16.msra.mxu0 0
      %271 = vmatprep.subr.bf16.mxu0 0
      %272 = vmatpush1.bf16.msra.mxu0 0
      %273 = vmatprep.subr.bf16.mxu0 0
      %274 = vmatpush1.bf16.msra.mxu0 0
      %275 = vmatprep.subr.bf16.mxu0 0
      %276 = vmatpush1.bf16.msra.mxu0 0
      %277 = vmatprep.subr.bf16.mxu0 0
      %278 = vmatpush1.bf16.msra.mxu0 0
      %279 = vmatprep.subr.bf16.mxu0 0
      %280 = vmatpush1.bf16.msra.mxu0 0
      %281 = vmatprep.subr.bf16.mxu0 0
      %282 = vmatpush1.bf16.msra.mxu0 0
      %283 = vmatprep.subr.bf16.mxu0 0
      %284 = vmatpush1.bf16.msra.mxu0 0
      %285 = vmatprep.subr.bf16.mxu0 0
      %286 = vmatpush1.bf16.msra.mxu0 0
      %287 = vmatprep.subr.bf16.mxu0 0
      %288 = vmatpush1.bf16.msra.mxu0 0
      %289 = vmatprep.subr.bf16.mxu0 0
      %290 = vmatpush1.bf16.msra.mxu0 0
      %291 = vmatprep.subr.bf16.mxu0 0
      %292 = vmatpush1.bf16.msra.mxu0 0
      %293 = vmatprep.subr.bf16.mxu0 0
      %294 = vmatpush1.bf16.msra.mxu0 0
      %295 = vmatprep.subr.bf16.mxu0 0
      %296 = vmatpush1.bf16.msra.mxu0 0
      %297 = vmatprep.mubr.bf16.mxu0 0
      %298 = vmatmul.mubr.bf16.gmra.mrb[0].mxu0 %v259
      %v299 = vpop.f32.mrb[0].mxu0
      %v300 = vadd.f32 %v250, %v299
      %v301 = vpop.f32.mrb[0].mxu0
      %v302 = vpop.f32.mrb[0].mxu0
      %v303 = vadd.f32 %v250, %v302
      %v304 = vpop.f32.mrb[0].mxu0
      %305 = vdwg.mxu0
      %v306 = vmax.f32 %v300, 0.0
      %v307 = vmax.f32 %v303, 0.0
      %v308 = vpack.c.bf16 %v307, %v306
      %v310 = vunpack.c.l.b16 %v308
      %v311 = vunpack.c.h.b16 %v308
      %v312 = vpack.c.b16 %v310, %v310
      %v313 = vpack.c.b16 %v311, %v311
      %vm316 = vcmask 519168
      %317 = vst.msk [vmem:[%s239] sm:$0xf] %vm316, %v312
      %318 = vst.msk [vmem:[%s239 + $0x4] sm:$0xf] %vm316, %v313
      %s319 = smul.u32 2, %s19
      %p320 = scmp.lt.s32.totalorder %s18, 1
      %s321 = scalar_select %p320, %s18, 1
      %p322 = scmp.lt.s32.totalorder %s319, 1
      %s323 = scalar_select %p322, %s319, 1
      %s324 = smul.addr %s321, 2
      %s325 = sadd.s32 %s323, %s324
      %s326 = smul.addr %s325, 4
      %s327 = scalar_lea.vmem %s3, %s326
      // Predicated region
      $region33: #{_lambda_.15} parent=31 // pred_check
        %p328 = pneg %p126
      $region34: #{_lambda_.15} parent=31 // pred_check_branch
        %330 = sbr.rel (%p328) target = $region36
      $region35: #{_lambda_.15} parent=31 // pred_region
        %s331 = smul.u32 2, %s19
      $region36: #{_lambda_.15} parent=31 // pred_fallthru
        _
    $region32: #{_lambda_.15} parent=5 // pred_fallthru
      _
    %p332 = scmp.le.s32.totalorder 2, %s9
    // Predicated region
    $region37: #{_lambda_.15} parent=5 // pred_check
      %p333 = pneg %p332
    $region38: #{_lambda_.15} parent=5 // pred_check_branch
      %335 = sbr.rel (%p333) target = $region40
    $region39: #{_lambda_.15} parent=5 // pred_region
      %s336 = ssub.s32 %s9, 2
      // Predicated region
      $region41: #{_lambda_.15} parent=39 // pred_check
        %p337 = pneg %p132
      $region42: #{_lambda_.15} parent=39 // pred_check_branch
        %339 = sbr.rel (%p337) target = $region44
      $region43: #{_lambda_.15} parent=39 // pred_region
        %s340 = smul.u32 2, %s21
        %p341 = scmp.lt.s32.totalorder %s20, 1
        %s342 = scalar_select %p341, %s20, 1
        %p343 = scmp.lt.s32.totalorder %s340, 1
        %s344 = scalar_select %p343, %s340, 1
        %s345 = smul.addr %s342, 2
        %s346 = sadd.s32 %s344, %s345
        %s347 = smul.addr %s346, 4
        %s348 = scalar_lea.vmem %s3, %s347
      $region44: #{_lambda_.15} parent=39 // pred_fallthru
        _
    $region40: #{_lambda_.15} parent=5 // pred_fallthru
      _
  $region6: #{_lambda_.15} parent=0 // loop_footer
    %s13 = sadd.s32 1, %s9
  $region7: #{_lambda_.15} parent=0 // loop_footer_branch
    %8 = sbr.rel target = $region3
  $region8: #{_lambda_.15} parent=0 // loop_exit
    _

// kernel: _lambda_.12
$region0: #{_lambda_.12}
  #allocation0 [shape = 'u32[]', space=smem, size = 0x4, offset = 0x4, fixed_abs, tag = 'smem constant byte address 0x4 - core index']
  #allocation1 [shape = 'u32[144,128]{1,0:T(1,128)}', space=vmem, size = 0x12000, scoped, tag = 'internal scratch']
  %s0 = inlined_call_operand.vmem [shape: bf16[2,64,8], index: 0, kind: input, shape index: {}]
  %s1 = inlined_call_operand.vmem [shape: bf16[2,8,16], index: 1, kind: input, shape index: {}]
  %s2 = inlined_call_operand.vmem [shape: f32[2,1,16], index: 2, kind: input, shape index: {}]
  %s3 = inlined_call_operand.vmem [shape: bf16[2,64,16], index: 3, kind: output, shape index: {}]
  %s4 = sld [smem:[#allocation0]]
  $region45: #{_lambda_.12} parent=0
    _
  %s6 = ssub.s32 1, %s4
  %s7 = scalar_select 0, %s6, %s4
  loop: start=0, step=1, limit=4
  $region2: #{_lambda_.12} parent=0 // loop_pre_header
    _
  $region3: #{_lambda_.12} parent=0 // loop_header
    %s9 = sphi 0, %s13
    %p10 = scmp.ge.s32.totalorder %s9, 4
    %s16 = sphi 0, %s28
    %s17 = sphi 0, %s24
    %s18 = sphi 0, %s16
    %s19 = sphi 0, %s17
    %s20 = sphi 0, %s18
    %s21 = sphi 0, %s19
    %s33 = sphi 0, %s35
    %s36 = sphi 0, %s33
    %s37 = sphi 0, %s36
    %s53 = sphi 0, %s37
    %s59 = sphi 0, %s61
    %s62 = sphi 0, %s59
    %s63 = sphi 0, %s62
    %s79 = sphi 0, %s63
    %s85 = sphi 0, %s87
    %s88 = sphi 0, %s85
    %s89 = sphi 0, %s88
    %s105 = sphi 0, %s89
    %s113 = sphi 0, %s115
    %s116 = sphi 0, %s113
    %s117 = sphi 0, %s116
    %s133 = sphi 0, %s117
  $region4: #{_lambda_.12} parent=0 // loop_header_branch
    %12 = sbr.rel (%p10) target = $region8
  $region5: #{_lambda_.12} parent=0 // loop_body
    %s14 = ssub.s32 %s9, 1
    %s15 = ssub.s32 %s9, 2
    %s22 = sadd.s32 1, %s17
    %p23 = scmp.ge.s32.totalorder %s22, 1
    %s24 = scalar_select %p23, 0, %s22
    %s25 = sadd.s32 1, %s16
    %s26 = scalar_select %p23, %s25, %s16
    %p27 = scmp.ge.s32.totalorder %s26, 2
    %s28 = scalar_select %p27, 0, %s26
    %s29 = ssub.s32 %s16, %s28
    %s30 = ssub.s32 %s17, %s24
    %s31 = sor.u32 %s29, %s30
    %p32 = scmp.eq.s32.totalorder %s31, 0
    %s34 = sadd.s32 %s33, 1
    %s35 = scalar_select %p32, %s33, %s34
    %p38 = pneg %p32
    %p39 = scmp.eq.s32.totalorder %s9, 1
    %p40 = por %p38, %p39
    %p41 = scmp.ne.s32.totalorder %s33, %s36
    %p42 = scmp.eq.s32.totalorder %s9, 0
    %p43 = por %p41, %p42
    %p44 = scmp.ne.s32.totalorder %s33, %s36
    %p45 = scmp.eq.s32.totalorder %s14, 1
    %p46 = por %p44, %p45
    %p47 = scmp.ne.s32.totalorder %s36, %s37
    %p48 = scmp.eq.s32.totalorder %s14, 0
    %p49 = por %p47, %p48
    %p50 = scmp.ne.s32.totalorder %s36, %s37
    %p51 = scmp.eq.s32.totalorder %s15, 1
    %p52 = por %p50, %p51
    %p54 = scmp.ne.s32.totalorder %s37, %s53
    %p55 = scmp.eq.s32.totalorder %s15, 0
    %p56 = por %p54, %p55
    %s57 = ssub.s32 %s16, %s28
    %p58 = scmp.eq.s32.totalorder %s57, 0
    %s60 = sadd.s32 %s59, 1
    %s61 = scalar_select %p58, %s59, %s60
    %p64 = pneg %p58
    %p65 = scmp.eq.s32.totalorder %s9, 1
    %p66 = por %p64, %p65
    %p67 = scmp.ne.s32.totalorder %s59, %s62
    %p68 = scmp.eq.s32.totalorder %s9, 0
    %p69 = por %p67, %p68
    %p70 = scmp.ne.s32.totalorder %s59, %s62
    %p71 = scmp.eq.s32.totalorder %s14, 1
    %p72 = por %p70, %p71
    %p73 = scmp.ne.s32.totalorder %s62, %s63
    %p74 = scmp.eq.s32.totalorder %s14, 0
    %p75 = por %p73, %p74
    %p76 = scmp.ne.s32.totalorder %s62, %s63
    %p77 = scmp.eq.s32.totalorder %s15, 1
    %p78 = por %p76, %p77
    %p80 = scmp.ne.s32.totalorder %s63, %s79
    %p81 = scmp.eq.s32.totalorder %s15, 0
    %p82 = por %p80, %p81
    %s83 = ssub.s32 %s16, %s28
    %p84 = scmp.eq.s32.totalorder %s83, 0
    %s86 = sadd.s32 %s85, 1
    %s87 = scalar_select %p84, %s85, %s86
    %p90 = pneg %p84
    %p91 = scmp.eq.s32.totalorder %s9, 1
    %p92 = por %p90, %p91
    %p93 = scmp.ne.s32.totalorder %s85, %s88
    %p94 = scmp.eq.s32.totalorder %s9, 0
    %p95 = por %p93, %p94
    %p96 = scmp.ne.s32.totalorder %s85, %s88
    %p97 = scmp.eq.s32.totalorder %s14, 1
    %p98 = por %p96, %p97
    %p99 = scmp.ne.s32.totalorder %s88, %s89
    %p100 = scmp.eq.s32.totalorder %s14, 0
    %p101 = por %p99, %p100
    %p102 = scmp.ne.s32.totalorder %s88, %s89
    %p103 = scmp.eq.s32.totalorder %s15, 1
    %p104 = por %p102, %p103
    %p106 = scmp.ne.s32.totalorder %s89, %s105
    %p107 = scmp.eq.s32.totalorder %s15, 0
    %p108 = por %p106, %p107
    %s109 = ssub.s32 %s16, %s28
    %s110 = ssub.s32 %s17, %s24
    %s111 = sor.u32 %s109, %s110
    %p112 = scmp.eq.s32.totalorder %s111, 0
    %s114 = sadd.s32 %s113, 1
    %s115 = scalar_select %p112, %s113, %s114
    %p118 = pneg %p112
    %p119 = scmp.eq.s32.totalorder %s9, 1
    %p120 = por %p118, %p119
    %p121 = scmp.ne.s32.totalorder %s113, %s116
    %p122 = scmp.eq.s32.totalorder %s9, 0
    %p123 = por %p121, %p122
    %p124 = scmp.ne.s32.totalorder %s113, %s116
    %p125 = scmp.eq.s32.totalorder %s14, 1
    %p126 = por %p124, %p125
    %p127 = scmp.ne.s32.totalorder %s116, %s117
    %p128 = scmp.eq.s32.totalorder %s14, 0
    %p129 = por %p127, %p128
    %p130 = scmp.ne.s32.totalorder %s116, %s117
    %p131 = scmp.eq.s32.totalorder %s15, 1
    %p132 = por %p130, %p131
    %p134 = scmp.ne.s32.totalorder %s117, %s133
    %p135 = scmp.eq.s32.totalorder %s15, 0
    %p136 = por %p134, %p135
    %p137 = scmp.le.s32.totalorder 1, %s9
    %p138 = scmp.lt.s32.totalorder %s9, 3
    %p139 = pnand %p137, %p138
    %p140 = pneg %p139
    // Predicated region
    $region9: #{_lambda_.12} parent=5 // pred_check
      _
    $region10: #{_lambda_.12} parent=5 // pred_check_branch
      %142 = sbr.rel (%p139) target = $region12
    $region11: #{_lambda_.12} parent=5 // pred_region
      %s143 = ssub.s32 %s9, 1
    $region12: #{_lambda_.12} parent=5 // pred_fallthru
      _
    %p144 = scmp.lt.s32.totalorder %s9, 2
    // Predicated region
    $region13: #{_lambda_.12} parent=5 // pred_check
      %p145 = pneg %p144
    $region14: #{_lambda_.12} parent=5 // pred_check_branch
      %147 = sbr.rel (%p145) target = $region16
    $region15: #{_lambda_.12} parent=5 // pred_region
      // Predicated region
      $region17: #{_lambda_.12} parent=15 // pred_check
        %p148 = pneg %p43
      $region18: #{_lambda_.12} parent=15 // pred_check_branch
        %150 = sbr.rel (%p148) target = $region20
      $region19: #{_lambda_.12} parent=15 // pred_region
        %s151 = smul.u32 8, %s17
        %p152 = scmp.lt.s32.totalorder %s16, 1
        %s153 = scalar_select %p152, %s16, 1
        %p154 = scmp.lt.s32.totalorder %s151, 7
        %s155 = scalar_select %p154, %s151, 7
        %s156 = smul.addr %s153, 8
        %s157 = sadd.s32 %s155, %s156
        %s158 = smul.addr %s157, 4
        %s159 = scalar_lea.vmem %s0, %s158
        %s160 = smul.u32 8, %s17
      $region20: #{_lambda_.12} parent=15 // pred_fallthru
        _
      // Predicated region
      $region21: #{_lambda_.12} parent=15 // pred_check
        %p161 = pneg %p69
      $region22: #{_lambda_.12} parent=15 // pred_check_branch
        %163 = sbr.rel (%p161) target = $region24
      $region23: #{_lambda_.12} parent=15 // pred_region
        %p164 = scmp.lt.s32.totalorder %s16, 1
        %s165 = scalar_select %p164, %s16, 1
        %s166 = smul.addr %s165, 4
        %s167 = scalar_lea.vmem %s1, %s166
      $region24: #{_lambda_.12} parent=15 // pred_fallthru
        _
      // Predicated region
      $region25: #{_lambda_.12} parent=15 // pred_check
        %p168 = pneg %p95
      $region26: #{_lambda_.12} parent=15 // pred_check_branch
        %170 = sbr.rel (%p168) target = $region28
      $region27: #{_lambda_.12} parent=15 // pred_region
        %p171 = scmp.lt.s32.totalorder %s16, 1
        %s172 = scalar_select %p171, %s16, 1
        %s173 = scalar_lea.vmem %s2, %s172
      $region28: #{_lambda_.12} parent=15 // pred_fallthru
        _
    $region16: #{_lambda_.12} parent=5 // pred_fallthru
      _
    %p174 = scmp.le.s32.totalorder 1, %s9
    %p175 = scmp.lt.s32.totalorder %s9, 3
    %p176 = pnand %p174, %p175
    %p177 = pneg %p176
    // Predicated region
    $region29: #{_lambda_.12} parent=5 // pred_check
      _
    $region30: #{_lambda_.12} parent=5 // pred_check_branch
      %179 = sbr.rel (%p176) target = $region32
    $region31: #{_lambda_.12} parent=5 // pred_region
      %s180 = ssub.s32 %s9, 1
      %s181 = smul.u32 8, %s19
      %p182 = scmp.lt.s32.totalorder %s18, 1
      %s183 = scalar_select %p182, %s18, 1
      %p184 = scmp.lt.s32.totalorder %s181, 7
      %s185 = scalar_select %p184, %s181, 7
      %s186 = smul.addr %s183, 8
      %s187 = sadd.s32 %s185, %s186
      %s188 = smul.addr %s187, 4
      %s189 = scalar_lea.vmem %s0, %s188
      %p190 = pneg %p49
      %p191 = pneg %p46
      %p192 = scmp.lt.s32.totalorder %s18, 1
      %s193 = scalar_select %p192, %s18, 1
      %s194 = smul.addr %s193, 4
      %s195 = scalar_lea.vmem %s1, %s194
      %p196 = pneg %p75
      %p197 = pneg %p72
      %p198 = scmp.lt.s32.totalorder %s18, 1
      %s199 = scalar_select %p198, %s18, 1
      %s200 = scalar_lea.vmem %s2, %s199
      %p201 = pneg %p101
      %p202 = pneg %p98
      %p203 = pneg %p129
      %p204 = pneg %p126
      %s205 = smul.u32 8, %s19
      %p206 = scmp.lt.s32.totalorder %s18, 1
      %s207 = scalar_select %p206, %s18, 1
      %p208 = scmp.lt.s32.totalorder %s205, 7
      %s209 = scalar_select %p208, %s205, 7
      %s210 = smul.addr %s207, 8
      %s211 = sadd.s32 %s209, %s210
      %s212 = smul.addr %s211, 4
      %s213 = scalar_lea.vmem %s3, %s212
      %s214 = smul.u32 8, %s19
      %p215 = scmp.lt.s32.totalorder %s18, 1
      %s216 = scalar_select %p215, %s18, 1
      %p217 = scmp.lt.s32.totalorder %s214, 7
      %s218 = scalar_select %p217, %s214, 7
      %s219 = smul.addr %s216, 8
      %s220 = sadd.s32 %s218, %s219
      %s221 = smul.addr %s220, 4
      %s222 = scalar_lea.vmem %s0, %s221
      %s223 = smul.u32 8, %s19
      %p224 = scmp.lt.s32.totalorder %s18, 1
      %s225 = scalar_select %p224, %s18, 1
      %s226 = smul.addr %s225, 4
      %s227 = scalar_lea.vmem %s1, %s226
      %p228 = scmp.lt.s32.totalorder %s18, 1
      %s229 = scalar_select %p228, %s18, 1
      %s230 = scalar_lea.vmem %s2, %s229
      %s231 = smul.u32 8, %s19
      %p232 = scmp.lt.s32.totalorder %s18, 1
      %s233 = scalar_select %p232, %s18, 1
      %p234 = scmp.lt.s32.totalorder %s231, 7
      %s235 = scalar_select %p234, %s231, 7
      %s236 = smul.addr %s233, 8
      %s237 = sadd.s32 %s235, %s236
      %s238 = smul.addr %s237, 4
      %s239 = scalar_lea.vmem %s3, %s238
      %s240 = smul.u32 8, %s19
      %v242 = vld [vmem:[%s222] sm:$0xf]
      %v243 = vld [vmem:[%s222 + $0x4] sm:$0xf]
      %v244 = vld [vmem:[%s222 + $0x8] sm:$0xf]
      %v245 = vld [vmem:[%s222 + $0xc] sm:$0xf]
      %v246 = vld [vmem:[%s222 + $0x10] sm:$0xf]
      %v247 = vld [vmem:[%s222 + $0x14] sm:$0xf]
      %v248 = vld [vmem:[%s222 + $0x18] sm:$0xf]
      %v249 = vld [vmem:[%s222 + $0x1c] sm:$0xf]
      %v250 = vld [vmem:[%s227] sm:$0xf]
      %v251 = vld [vmem:[%s230] sm:$0x1]
      %v253 = vlaneseq
      %v254 = vshrl.u32 %v253, 7
      %v255 = vsub.s32 0, %v254
      %v256 = vrot.slane %v251, %v255
      %v266 = vunpack.c.l.b16 %v242
      %v267 = vunpack.c.l.b16 %v243
      %v268 = vunpack.c.l.b16 %v244
      %v269 = vunpack.c.l.b16 %v245
      %v270 = vunpack.c.l.b16 %v246
      %v271 = vunpack.c.l.b16 %v247
      %v272 = vunpack.c.l.b16 %v248
      %v273 = vunpack.c.l.b16 %v249
      %v274 = vpack.c.b16 %v267, %v266
      %v275 = vpack.c.b16 %v269, %v268
      %v276 = vpack.c.b16 %v271, %v270
      %v277 = vpack.c.b16 %v273, %v272
      %vm278 = vcmask 64512
      %v280 = vsel %vm278, %v274, 0
      %v283 = vsel %vm278, %v275, 0
      %v286 = vsel %vm278, %v276, 0
      %v289 = vsel %vm278, %v277, 0
      %vm291 = vcmask 1043456
      %v293 = vsel %vm291, %v250, 0
      %295 = vmatprep.subr.bf16.mxu0 0
      %296 = vmatpush1.bf16.msra.mxu0 %v293
      %297 = vmatprep.subr.bf16.mxu0 0
      %298 = vmatpush1.bf16.msra.mxu0 0
      %299 = vmatprep.subr.bf16.mxu0 0
      %300 = vmatpush1.bf16.msra.mxu0 0
      %301 = vmatprep.subr.bf16.mxu0 0
      %302 = vmatpush1.bf16.msra.mxu0 0
      %303 = vmatprep.subr.bf16.mxu0 0
      %304 = vmatpush1.bf16.msra.mxu0 0
      %305 = vmatprep.subr.bf16.mxu0 0
      %306 = vmatpush1.bf16.msra.mxu0 0
      %307 = vmatprep.subr.bf16.mxu0 0
      %308 = vmatpush1.bf16.msra.mxu0 0
      %309 = vmatprep.subr.bf16.mxu0 0
      %310 = vmatpush1.bf16.msra.mxu0 0
      %311 = vmatprep.subr.bf16.mxu0 0
      %312 = vmatpush1.bf16.msra.mxu0 0
      %313 = vmatprep.subr.bf16.mxu0 0
      %314 = vmatpush1.bf16.msra.mxu0 0
      %315 = vmatprep.subr.bf16.mxu0 0
      %316 = vmatpush1.bf16.msra.mxu0 0
      %317 = vmatprep.subr.bf16.mxu0 0
      %318 = vmatpush1.bf16.msra.mxu0 0
      %319 = vmatprep.subr.bf16.mxu0 0
      %320 = vmatpush1.bf16.msra.mxu0 0
      %321 = vmatprep.subr.bf16.mxu0 0
      %322 = vmatpush1.bf16.msra.mxu0 0
      %323 = vmatprep.subr.bf16.mxu0 0
      %324 = vmatpush1.bf16.msra.mxu0 0
      %325 = vmatprep.subr.bf16.mxu0 0
      %326 = vmatpush1.bf16.msra.mxu0 0
      %327 = vmatprep.mubr.bf16.mxu0 0
      %328 = vmatmul.mubr.bf16.gmra.mrb[0].mxu0 %v280
      %v329 = vpop.f32.mrb[0].mxu0
      %v330 = vadd.f32 %v256, %v329
      %v331 = vpop.f32.mrb[0].mxu0
      %v332 = vpop.f32.mrb[0].mxu0
      %v333 = vadd.f32 %v256, %v332
      %v334 = vpop.f32.mrb[0].mxu0
      %335 = vmatprep.mubr.bf16.mxu0 0
      %336 = vmatmul.mubr.bf16.gmra.mrb[0].mxu0 %v283
      %v337 = vpop.f32.mrb[0].mxu0
      %v338 = vadd.f32 %v256, %v337
      %v339 = vpop.f32.mrb[0].mxu0
      %v340 = vpop.f32.mrb[0].mxu0
      %v341 = vadd.f32 %v256, %v340
      %v342 = vpop.f32.mrb[0].mxu0
      %343 = vmatprep.mubr.bf16.mxu0 0
      %344 = vmatmul.mubr.bf16.gmra.mrb[0].mxu0 %v286
      %v345 = vpop.f32.mrb[0].mxu0
      %v346 = vadd.f32 %v256, %v345
      %v347 = vpop.f32.mrb[0].mxu0
      %v348 = vpop.f32.mrb[0].mxu0
      %v349 = vadd.f32 %v256, %v348
      %v350 = vpop.f32.mrb[0].mxu0
      %351 = vmatprep.mubr.bf16.mxu0 0
      %352 = vmatmul.mubr.bf16.gmra.mrb[0].mxu0 %v289
      %v353 = vpop.f32.mrb[0].mxu0
      %v354 = vadd.f32 %v256, %v353
      %v355 = vpop.f32.mrb[0].mxu0
      %v356 = vpop.f32.mrb[0].mxu0
      %v357 = vadd.f32 %v256, %v356
      %v358 = vpop.f32.mrb[0].mxu0
      %359 = vdwg.mxu0
      %v360 = vmax.f32 %v330, 0.0
      %v361 = vmax.f32 %v333, 0.0
      %v362 = vmax.f32 %v338, 0.0
      %v363 = vmax.f32 %v341, 0.0
      %v364 = vmax.f32 %v346, 0.0
      %v365 = vmax.f32 %v349, 0.0
      %v366 = vmax.f32 %v354, 0.0
      %v367 = vmax.f32 %v357, 0.0
      %v368 = vpack.c.bf16 %v361, %v360
      %v369 = vpack.c.bf16 %v363, %v362
      %v370 = vpack.c.bf16 %v365, %v364
      %v371 = vpack.c.bf16 %v367, %v366
      %v376 = vunpack.c.l.b16 %v368
      %v377 = vunpack.c.h.b16 %v368
      %v378 = vunpack.c.l.b16 %v369
      %v379 = vunpack.c.h.b16 %v369
      %v380 = vunpack.c.l.b16 %v370
      %v381 = vunpack.c.h.b16 %v370
      %v382 = vunpack.c.l.b16 %v371
      %v383 = vunpack.c.h.b16 %v371
      %v384 = vpack.c.b16 %v376, %v376
      %v385 = vpack.c.b16 %v377, %v377
      %v386 = vpack.c.b16 %v378, %v378
      %v387 = vpack.c.b16 %v379, %v379
      %v388 = vpack.c.b16 %v380, %v380
      %v389 = vpack.c.b16 %v381, %v381
      %v390 = vpack.c.b16 %v382, %v382
      %v391 = vpack.c.b16 %v383, %v383
      %vm400 = vcmask 125952
      %401 = vst.msk [vmem:[%s239] sm:$0xf] %vm400, %v384
      %402 = vst.msk [vmem:[%s239 + $0x4] sm:$0xf] %vm400, %v385
      %403 = vst.msk [vmem:[%s239 + $0x8] sm:$0xf] %vm400, %v386
      %404 = vst.msk [vmem:[%s239 + $0xc] sm:$0xf] %vm400, %v387
      %405 = vst.msk [vmem:[%s239 + $0x10] sm:$0xf] %vm400, %v388
      %406 = vst.msk [vmem:[%s239 + $0x14] sm:$0xf] %vm400, %v389
      %407 = vst.msk [vmem:[%s239 + $0x18] sm:$0xf] %vm400, %v390
      %408 = vst.msk [vmem:[%s239 + $0x1c] sm:$0xf] %vm400, %v391
      %s409 = smul.u32 8, %s19
      %p410 = scmp.lt.s32.totalorder %s18, 1
      %s411 = scalar_select %p410, %s18, 1
      %p412 = scmp.lt.s32.totalorder %s409, 7
      %s413 = scalar_select %p412, %s409, 7
      %s414 = smul.addr %s411, 8
      %s415 = sadd.s32 %s413, %s414
      %s416 = smul.addr %s415, 4
      %s417 = scalar_lea.vmem %s3, %s416
      // Predicated region
      $region33: #{_lambda_.12} parent=31 // pred_check
        %p418 = pneg %p126
      $region34: #{_lambda_.12} parent=31 // pred_check_branch
        %420 = sbr.rel (%p418) target = $region36
      $region35: #{_lambda_.12} parent=31 // pred_region
        %s421 = smul.u32 8, %s19
      $region36: #{_lambda_.12} parent=31 // pred_fallthru
        _
    $region32: #{_lambda_.12} parent=5 // pred_fallthru
      _
    %p422 = scmp.le.s32.totalorder 2, %s9
    // Predicated region
    $region37: #{_lambda_.12} parent=5 // pred_check
      %p423 = pneg %p422
    $region38: #{_lambda_.12} parent=5 // pred_check_branch
      %425 = sbr.rel (%p423) target = $region40
    $region39: #{_lambda_.12} parent=5 // pred_region
      %s426 = ssub.s32 %s9, 2
      // Predicated region
      $region41: #{_lambda_.12} parent=39 // pred_check
        %p427 = pneg %p132
      $region42: #{_lambda_.12} parent=39 // pred_check_branch
        %429 = sbr.rel (%p427) target = $region44
      $region43: #{_lambda_.12} parent=39 // pred_region
        %s430 = smul.u32 8, %s21
        %p431 = scmp.lt.s32.totalorder %s20, 1
        %s432 = scalar_select %p431, %s20, 1
        %p433 = scmp.lt.s32.totalorder %s430, 7
        %s434 = scalar_select %p433, %s430, 7
        %s435 = smul.addr %s432, 8
        %s436 = sadd.s32 %s434, %s435
        %s437 = smul.addr %s436, 4
        %s438 = scalar_lea.vmem %s3, %s437
      $region44: #{_lambda_.12} parent=39 // pred_fallthru
        _
    $region40: #{_lambda_.12} parent=5 // pred_fallthru
      _
  $region6: #{_lambda_.12} parent=0 // loop_footer
    %s13 = sadd.s32 1, %s9
  $region7: #{_lambda_.12} parent=0 // loop_footer_branch
    %8 = sbr.rel target = $region3
  $region8: #{_lambda_.12} parent=0 // loop_exit
    _

// kernel: _lambda_.19
$region0: #{_lambda_.19}
  #allocation0 [shape = 'u32[]', space=smem, size = 0x4, offset = 0x4, fixed_abs, tag = 'smem constant byte address 0x4 - core index']
  #allocation1 [shape = 'u32[144,128]{1,0:T(1,128)}', space=vmem, size = 0x12000, scoped, tag = 'internal scratch']
  %s0 = inlined_call_operand.vmem [shape: bf16[2,64,16], index: 0, kind: input, shape index: {}]
  %s1 = inlined_call_operand.vmem [shape: bf16[2,64,16], index: 1, kind: input, shape index: {}]
  %s2 = inlined_call_operand.vmem [shape: bf16[2,64,16], index: 2, kind: input, shape index: {}]
  %s3 = inlined_call_operand.vmem [shape: bf16[16,22], index: 3, kind: input, shape index: {}]
  %s4 = inlined_call_operand.vmem [shape: bf16[16,22], index: 4, kind: input, shape index: {}]
  %s5 = inlined_call_operand.vmem [shape: bf16[16,22], index: 5, kind: input, shape index: {}]
  %s6 = inlined_call_operand.vmem [shape: f32[1,22], index: 6, kind: input, shape index: {}]
  %s7 = inlined_call_operand.vmem [shape: f32[64,22], index: 7, kind: output, shape index: {}]
  %s8 = sld [smem:[#allocation0]]
  $region38: #{_lambda_.19} parent=0
    _
  %s10 = ssub.s32 1, %s8
  %s11 = scalar_select 0, %s10, %s8
  // Predicated region
  $region2: #{_lambda_.19} parent=0 // pred_check
    _
  $region3: #{_lambda_.19} parent=0 // pred_check_branch
    %13 = sbr.rel (0) target = $region5
  $region4: #{_lambda_.19} parent=0 // pred_region
    _
  $region5: #{_lambda_.19} parent=0 // pred_fallthru
    _
  // Predicated region
  $region6: #{_lambda_.19} parent=0 // pred_check
    _
  $region7: #{_lambda_.19} parent=0 // pred_check_branch
    %15 = sbr.rel (0) target = $region9
  $region8: #{_lambda_.19} parent=0 // pred_region
    _
  $region9: #{_lambda_.19} parent=0 // pred_fallthru
    _
  // Predicated region
  $region10: #{_lambda_.19} parent=0 // pred_check
    _
  $region11: #{_lambda_.19} parent=0 // pred_check_branch
    %17 = sbr.rel (0) target = $region13
  $region12: #{_lambda_.19} parent=0 // pred_region
    _
  $region13: #{_lambda_.19} parent=0 // pred_fallthru
    _
  // Predicated region
  $region14: #{_lambda_.19} parent=0 // pred_check
    _
  $region15: #{_lambda_.19} parent=0 // pred_check_branch
    %19 = sbr.rel (0) target = $region17
  $region16: #{_lambda_.19} parent=0 // pred_region
    _
  $region17: #{_lambda_.19} parent=0 // pred_fallthru
    _
  // Predicated region
  $region18: #{_lambda_.19} parent=0 // pred_check
    _
  $region19: #{_lambda_.19} parent=0 // pred_check_branch
    %21 = sbr.rel (0) target = $region21
  $region20: #{_lambda_.19} parent=0 // pred_region
    _
  $region21: #{_lambda_.19} parent=0 // pred_fallthru
    _
  // Predicated region
  $region22: #{_lambda_.19} parent=0 // pred_check
    _
  $region23: #{_lambda_.19} parent=0 // pred_check_branch
    %23 = sbr.rel (0) target = $region25
  $region24: #{_lambda_.19} parent=0 // pred_region
    _
  $region25: #{_lambda_.19} parent=0 // pred_fallthru
    _
  // Predicated region
  $region26: #{_lambda_.19} parent=0 // pred_check
    _
  $region27: #{_lambda_.19} parent=0 // pred_check_branch
    %25 = sbr.rel (0) target = $region29
  $region28: #{_lambda_.19} parent=0 // pred_region
    _
  $region29: #{_lambda_.19} parent=0 // pred_fallthru
    _
  %v27 = vld [vmem:[%s0] sm:$0xf]
  %v28 = vld [vmem:[%s0 + $0x4] sm:$0xf]
  %v29 = vld [vmem:[%s0 + $0x8] sm:$0xf]
  %v30 = vld [vmem:[%s0 + $0xc] sm:$0xf]
  %v31 = vld [vmem:[%s0 + $0x10] sm:$0xf]
  %v32 = vld [vmem:[%s0 + $0x14] sm:$0xf]
  %v33 = vld [vmem:[%s0 + $0x18] sm:$0xf]
  %v34 = vld [vmem:[%s0 + $0x1c] sm:$0xf]
  %s35 = scalar_lea.vmem %s0, 32
  %v36 = vld [vmem:[%s35] sm:$0xf]
  %v37 = vld [vmem:[%s35 + $0x4] sm:$0xf]
  %v38 = vld [vmem:[%s35 + $0x8] sm:$0xf]
  %v39 = vld [vmem:[%s35 + $0xc] sm:$0xf]
  %v40 = vld [vmem:[%s35 + $0x10] sm:$0xf]
  %v41 = vld [vmem:[%s35 + $0x14] sm:$0xf]
  %v42 = vld [vmem:[%s35 + $0x18] sm:$0xf]
  %v43 = vld [vmem:[%s35 + $0x1c] sm:$0xf]
  %v44 = vadd.bf16 %v27, %v36
  %v45 = vadd.bf16 %v28, %v37
  %v46 = vadd.bf16 %v29, %v38
  %v47 = vadd.bf16 %v30, %v39
  %v48 = vadd.bf16 %v31, %v40
  %v49 = vadd.bf16 %v32, %v41
  %v50 = vadd.bf16 %v33, %v42
  %v51 = vadd.bf16 %v34, %v43
  %v52 = vld [vmem:[%s3] sm:$0xf]
  %v53 = vld [vmem:[%s3 + $0x4] sm:$0xf]
  %v54 = vld [vmem:[%s1] sm:$0xf]
  %v55 = vld [vmem:[%s1 + $0x4] sm:$0xf]
  %v56 = vld [vmem:[%s1 + $0x8] sm:$0xf]
  %v57 = vld [vmem:[%s1 + $0xc] sm:$0xf]
  %v58 = vld [vmem:[%s1 + $0x10] sm:$0xf]
  %v59 = vld [vmem:[%s1 + $0x14] sm:$0xf]
  %v60 = vld [vmem:[%s1 + $0x18] sm:$0xf]
  %v61 = vld [vmem:[%s1 + $0x1c] sm:$0xf]
  %s62 = scalar_lea.vmem %s1, 32
  %v63 = vld [vmem:[%s62] sm:$0xf]
  %v64 = vld [vmem:[%s62 + $0x4] sm:$0xf]
  %v65 = vld [vmem:[%s62 + $0x8] sm:$0xf]
  %v66 = vld [vmem:[%s62 + $0xc] sm:$0xf]
  %v67 = vld [vmem:[%s62 + $0x10] sm:$0xf]
  %v68 = vld [vmem:[%s62 + $0x14] sm:$0xf]
  %v69 = vld [vmem:[%s62 + $0x18] sm:$0xf]
  %v70 = vld [vmem:[%s62 + $0x1c] sm:$0xf]
  %v71 = vadd.bf16 %v54, %v63
  %v72 = vadd.bf16 %v55, %v64
  %v73 = vadd.bf16 %v56, %v65
  %v74 = vadd.bf16 %v57, %v66
  %v75 = vadd.bf16 %v58, %v67
  %v76 = vadd.bf16 %v59, %v68
  %v77 = vadd.bf16 %v60, %v69
  %v78 = vadd.bf16 %v61, %v70
  %v79 = vld [vmem:[%s4] sm:$0xf]
  %v80 = vld [vmem:[%s4 + $0x4] sm:$0xf]
  %v89 = vunpack.c.l.b16 %v71
  %v90 = vunpack.c.l.b16 %v72
  %v91 = vunpack.c.l.b16 %v73
  %v92 = vunpack.c.l.b16 %v74
  %v93 = vunpack.c.l.b16 %v75
  %v94 = vunpack.c.l.b16 %v76
  %v95 = vunpack.c.l.b16 %v77
  %v96 = vunpack.c.l.b16 %v78
  %v97 = vpack.c.b16 %v90, %v89
  %v98 = vpack.c.b16 %v92, %v91
  %v99 = vpack.c.b16 %v94, %v93
  %v100 = vpack.c.b16 %v96, %v95
  %v103 = vunpack.c.l.b16 %v79
  %v104 = vunpack.c.l.b16 %v80
  %v105 = vpack.c.b16 %v104, %v103
  %vm107 = vcmask 130048
  %v109 = vsel %vm107, %v97, 0
  %v112 = vsel %vm107, %v98, 0
  %v115 = vsel %vm107, %v99, 0
  %v118 = vsel %vm107, %v100, 0
  %120 = vmatprep.subr.bf16.mxu0 0
  %121 = vmatpush1.bf16.msra.mxu0 %v105
  %122 = vmatprep.subr.bf16.mxu0 0
  %123 = vmatpush1.bf16.msra.mxu0 0
  %124 = vmatprep.subr.bf16.mxu0 0
  %125 = vmatpush1.bf16.msra.mxu0 0
  %126 = vmatprep.subr.bf16.mxu0 0
  %127 = vmatpush1.bf16.msra.mxu0 0
  %128 = vmatprep.subr.bf16.mxu0 0
  %129 = vmatpush1.bf16.msra.mxu0 0
  %130 = vmatprep.subr.bf16.mxu0 0
  %131 = vmatpush1.bf16.msra.mxu0 0
  %132 = vmatprep.subr.bf16.mxu0 0
  %133 = vmatpush1.bf16.msra.mxu0 0
  %134 = vmatprep.subr.bf16.mxu0 0
  %135 = vmatpush1.bf16.msra.mxu0 0
  %136 = vmatprep.subr.bf16.mxu0 0
  %137 = vmatpush1.bf16.msra.mxu0 0
  %138 = vmatprep.subr.bf16.mxu0 0
  %139 = vmatpush1.bf16.msra.mxu0 0
  %140 = vmatprep.subr.bf16.mxu0 0
  %141 = vmatpush1.bf16.msra.mxu0 0
  %142 = vmatprep.subr.bf16.mxu0 0
  %143 = vmatpush1.bf16.msra.mxu0 0
  %144 = vmatprep.subr.bf16.mxu0 0
  %145 = vmatpush1.bf16.msra.mxu0 0
  %146 = vmatprep.subr.bf16.mxu0 0
  %147 = vmatpush1.bf16.msra.mxu0 0
  %148 = vmatprep.subr.bf16.mxu0 0
  %149 = vmatpush1.bf16.msra.mxu0 0
  %150 = vmatprep.subr.bf16.mxu0 0
  %151 = vmatpush1.bf16.msra.mxu0 0
  %152 = vmatprep.mubr.bf16.mxu0 0
  %153 = vmatmul.mubr.bf16.gmra.mrb[0].mxu0 %v109
  %v154 = vpop.f32.mrb[0].mxu0
  %v155 = vadd.f32 0.0, %v154
  %v156 = vpop.f32.mrb[0].mxu0
  %v157 = vpop.f32.mrb[0].mxu0
  %v158 = vadd.f32 0.0, %v157
  %v159 = vpop.f32.mrb[0].mxu0
  %160 = vmatprep.mubr.bf16.mxu0 0
  %161 = vmatmul.mubr.bf16.gmra.mrb[0].mxu0 %v112
  %v162 = vpop.f32.mrb[0].mxu0
  %v163 = vadd.f32 0.0, %v162
  %v164 = vpop.f32.mrb[0].mxu0
  %v165 = vpop.f32.mrb[0].mxu0
  %v166 = vadd.f32 0.0, %v165
  %v167 = vpop.f32.mrb[0].mxu0
  %168 = vmatprep.mubr.bf16.mxu0 0
  %169 = vmatmul.mubr.bf16.gmra.mrb[0].mxu0 %v115
  %v170 = vpop.f32.mrb[0].mxu0
  %v171 = vadd.f32 0.0, %v170
  %v172 = vpop.f32.mrb[0].mxu0
  %v173 = vpop.f32.mrb[0].mxu0
  %v174 = vadd.f32 0.0, %v173
  %v175 = vpop.f32.mrb[0].mxu0
  %176 = vmatprep.mubr.bf16.mxu0 0
  %177 = vmatmul.mubr.bf16.gmra.mrb[0].mxu0 %v118
  %v178 = vpop.f32.mrb[0].mxu0
  %v179 = vadd.f32 0.0, %v178
  %v180 = vpop.f32.mrb[0].mxu0
  %v181 = vpop.f32.mrb[0].mxu0
  %v182 = vadd.f32 0.0, %v181
  %v183 = vpop.f32.mrb[0].mxu0
  %184 = vdwg.mxu0
  %v193 = vunpack.c.l.b16 %v44
  %v194 = vunpack.c.l.b16 %v45
  %v195 = vunpack.c.l.b16 %v46
  %v196 = vunpack.c.l.b16 %v47
  %v197 = vunpack.c.l.b16 %v48
  %v198 = vunpack.c.l.b16 %v49
  %v199 = vunpack.c.l.b16 %v50
  %v200 = vunpack.c.l.b16 %v51
  %v201 = vpack.c.b16 %v194, %v193
  %v202 = vpack.c.b16 %v196, %v195
  %v203 = vpack.c.b16 %v198, %v197
  %v204 = vpack.c.b16 %v200, %v199
  %v207 = vunpack.c.l.b16 %v52
  %v208 = vunpack.c.l.b16 %v53
  %v209 = vpack.c.b16 %v208, %v207
  %v212 = vsel %vm107, %v201, 0
  %v215 = vsel %vm107, %v202, 0
  %v218 = vsel %vm107, %v203, 0
  %v221 = vsel %vm107, %v204, 0
  %223 = vmatprep.subr.bf16.mxu0 0
  %224 = vmatpush1.bf16.msra.mxu0 %v209
  %225 = vmatprep.subr.bf16.mxu0 0
  %226 = vmatpush1.bf16.msra.mxu0 0
  %227 = vmatprep.subr.bf16.mxu0 0
  %228 = vmatpush1.bf16.msra.mxu0 0
  %229 = vmatprep.subr.bf16.mxu0 0
  %230 = vmatpush1.bf16.msra.mxu0 0
  %231 = vmatprep.subr.bf16.mxu0 0
  %232 = vmatpush1.bf16.msra.mxu0 0
  %233 = vmatprep.subr.bf16.mxu0 0
  %234 = vmatpush1.bf16.msra.mxu0 0
  %235 = vmatprep.subr.bf16.mxu0 0
  %236 = vmatpush1.bf16.msra.mxu0 0
  %237 = vmatprep.subr.bf16.mxu0 0
  %238 = vmatpush1.bf16.msra.mxu0 0
  %239 = vmatprep.subr.bf16.mxu0 0
  %240 = vmatpush1.bf16.msra.mxu0 0
  %241 = vmatprep.subr.bf16.mxu0 0
  %242 = vmatpush1.bf16.msra.mxu0 0
  %243 = vmatprep.subr.bf16.mxu0 0
  %244 = vmatpush1.bf16.msra.mxu0 0
  %245 = vmatprep.subr.bf16.mxu0 0
  %246 = vmatpush1.bf16.msra.mxu0 0
  %247 = vmatprep.subr.bf16.mxu0 0
  %248 = vmatpush1.bf16.msra.mxu0 0
  %249 = vmatprep.subr.bf16.mxu0 0
  %250 = vmatpush1.bf16.msra.mxu0 0
  %251 = vmatprep.subr.bf16.mxu0 0
  %252 = vmatpush1.bf16.msra.mxu0 0
  %253 = vmatprep.subr.bf16.mxu0 0
  %254 = vmatpush1.bf16.msra.mxu0 0
  %255 = vmatprep.mubr.bf16.mxu0 0
  %256 = vmatmul.mubr.bf16.gmra.mrb[0].mxu0 %v212
  %v257 = vpop.f32.mrb[0].mxu0
  %v258 = vadd.f32 %v155, %v257
  %v259 = vpop.f32.mrb[0].mxu0
  %v260 = vpop.f32.mrb[0].mxu0
  %v261 = vadd.f32 %v158, %v260
  %v262 = vpop.f32.mrb[0].mxu0
  %263 = vmatprep.mubr.bf16.mxu0 0
  %264 = vmatmul.mubr.bf16.gmra.mrb[0].mxu0 %v215
  %v265 = vpop.f32.mrb[0].mxu0
  %v266 = vadd.f32 %v163, %v265
  %v267 = vpop.f32.mrb[0].mxu0
  %v268 = vpop.f32.mrb[0].mxu0
  %v269 = vadd.f32 %v166, %v268
  %v270 = vpop.f32.mrb[0].mxu0
  %271 = vmatprep.mubr.bf16.mxu0 0
  %272 = vmatmul.mubr.bf16.gmra.mrb[0].mxu0 %v218
  %v273 = vpop.f32.mrb[0].mxu0
  %v274 = vadd.f32 %v171, %v273
  %v275 = vpop.f32.mrb[0].mxu0
  %v276 = vpop.f32.mrb[0].mxu0
  %v277 = vadd.f32 %v174, %v276
  %v278 = vpop.f32.mrb[0].mxu0
  %279 = vmatprep.mubr.bf16.mxu0 0
  %280 = vmatmul.mubr.bf16.gmra.mrb[0].mxu0 %v221
  %v281 = vpop.f32.mrb[0].mxu0
  %v282 = vadd.f32 %v179, %v281
  %v283 = vpop.f32.mrb[0].mxu0
  %v284 = vpop.f32.mrb[0].mxu0
  %v285 = vadd.f32 %v182, %v284
  %v286 = vpop.f32.mrb[0].mxu0
  %287 = vdwg.mxu0
  %v288 = vld [vmem:[%s2] sm:$0xf]
  %v289 = vld [vmem:[%s2 + $0x4] sm:$0xf]
  %v290 = vld [vmem:[%s2 + $0x8] sm:$0xf]
  %v291 = vld [vmem:[%s2 + $0xc] sm:$0xf]
  %v292 = vld [vmem:[%s2 + $0x10] sm:$0xf]
  %v293 = vld [vmem:[%s2 + $0x14] sm:$0xf]
  %v294 = vld [vmem:[%s2 + $0x18] sm:$0xf]
  %v295 = vld [vmem:[%s2 + $0x1c] sm:$0xf]
  %s296 = scalar_lea.vmem %s2, 32
  %v297 = vld [vmem:[%s296] sm:$0xf]
  %v298 = vld [vmem:[%s296 + $0x4] sm:$0xf]
  %v299 = vld [vmem:[%s296 + $0x8] sm:$0xf]
  %v300 = vld [vmem:[%s296 + $0xc] sm:$0xf]
  %v301 = vld [vmem:[%s296 + $0x10] sm:$0xf]
  %v302 = vld [vmem:[%s296 + $0x14] sm:$0xf]
  %v303 = vld [vmem:[%s296 + $0x18] sm:$0xf]
  %v304 = vld [vmem:[%s296 + $0x1c] sm:$0xf]
  %v305 = vadd.bf16 %v288, %v297
  %v306 = vadd.bf16 %v289, %v298
  %v307 = vadd.bf16 %v290, %v299
  %v308 = vadd.bf16 %v291, %v300
  %v309 = vadd.bf16 %v292, %v301
  %v310 = vadd.bf16 %v293, %v302
  %v311 = vadd.bf16 %v294, %v303
  %v312 = vadd.bf16 %v295, %v304
  %v313 = vld [vmem:[%s5] sm:$0xf]
  %v314 = vld [vmem:[%s5 + $0x4] sm:$0xf]
  %v323 = vunpack.c.l.b16 %v305
  %v324 = vunpack.c.l.b16 %v306
  %v325 = vunpack.c.l.b16 %v307
  %v326 = vunpack.c.l.b16 %v308
  %v327 = vunpack.c.l.b16 %v309
  %v328 = vunpack.c.l.b16 %v310
  %v329 = vunpack.c.l.b16 %v311
  %v330 = vunpack.c.l.b16 %v312
  %v331 = vpack.c.b16 %v324, %v323
  %v332 = vpack.c.b16 %v326, %v325
  %v333 = vpack.c.b16 %v328, %v327
  %v334 = vpack.c.b16 %v330, %v329
  %v337 = vunpack.c.l.b16 %v313
  %v338 = vunpack.c.l.b16 %v314
  %v339 = vpack.c.b16 %v338, %v337
  %v342 = vsel %vm107, %v331, 0
  %v345 = vsel %vm107, %v332, 0
  %v348 = vsel %vm107, %v333, 0
  %v351 = vsel %vm107, %v334, 0
  %353 = vmatprep.subr.bf16.mxu0 0
  %354 = vmatpush1.bf16.msra.mxu0 %v339
  %355 = vmatprep.subr.bf16.mxu0 0
  %356 = vmatpush1.bf16.msra.mxu0 0
  %357 = vmatprep.subr.bf16.mxu0 0
  %358 = vmatpush1.bf16.msra.mxu0 0
  %359 = vmatprep.subr.bf16.mxu0 0
  %360 = vmatpush1.bf16.msra.mxu0 0
  %361 = vmatprep.subr.bf16.mxu0 0
  %362 = vmatpush1.bf16.msra.mxu0 0
  %363 = vmatprep.subr.bf16.mxu0 0
  %364 = vmatpush1.bf16.msra.mxu0 0
  %365 = vmatprep.subr.bf16.mxu0 0
  %366 = vmatpush1.bf16.msra.mxu0 0
  %367 = vmatprep.subr.bf16.mxu0 0
  %368 = vmatpush1.bf16.msra.mxu0 0
  %369 = vmatprep.subr.bf16.mxu0 0
  %370 = vmatpush1.bf16.msra.mxu0 0
  %371 = vmatprep.subr.bf16.mxu0 0
  %372 = vmatpush1.bf16.msra.mxu0 0
  %373 = vmatprep.subr.bf16.mxu0 0
  %374 = vmatpush1.bf16.msra.mxu0 0
  %375 = vmatprep.subr.bf16.mxu0 0
  %376 = vmatpush1.bf16.msra.mxu0 0
  %377 = vmatprep.subr.bf16.mxu0 0
  %378 = vmatpush1.bf16.msra.mxu0 0
  %379 = vmatprep.subr.bf16.mxu0 0
  %380 = vmatpush1.bf16.msra.mxu0 0
  %381 = vmatprep.subr.bf16.mxu0 0
  %382 = vmatpush1.bf16.msra.mxu0 0
  %383 = vmatprep.subr.bf16.mxu0 0
  %384 = vmatpush1.bf16.msra.mxu0 0
  %385 = vmatprep.mubr.bf16.mxu0 0
  %386 = vmatmul.mubr.bf16.gmra.mrb[0].mxu0 %v342
  %v387 = vpop.f32.mrb[0].mxu0
  %v388 = vadd.f32 0.0, %v387
  %v389 = vpop.f32.mrb[0].mxu0
  %v390 = vpop.f32.mrb[0].mxu0
  %v391 = vadd.f32 0.0, %v390
  %v392 = vpop.f32.mrb[0].mxu0
  %393 = vmatprep.mubr.bf16.mxu0 0
  %394 = vmatmul.mubr.bf16.gmra.mrb[0].mxu0 %v345
  %v395 = vpop.f32.mrb[0].mxu0
  %v396 = vadd.f32 0.0, %v395
  %v397 = vpop.f32.mrb[0].mxu0
  %v398 = vpop.f32.mrb[0].mxu0
  %v399 = vadd.f32 0.0, %v398
  %v400 = vpop.f32.mrb[0].mxu0
  %401 = vmatprep.mubr.bf16.mxu0 0
  %402 = vmatmul.mubr.bf16.gmra.mrb[0].mxu0 %v348
  %v403 = vpop.f32.mrb[0].mxu0
  %v404 = vadd.f32 0.0, %v403
  %v405 = vpop.f32.mrb[0].mxu0
  %v406 = vpop.f32.mrb[0].mxu0
  %v407 = vadd.f32 0.0, %v406
  %v408 = vpop.f32.mrb[0].mxu0
  %409 = vmatprep.mubr.bf16.mxu0 0
  %410 = vmatmul.mubr.bf16.gmra.mrb[0].mxu0 %v351
  %v411 = vpop.f32.mrb[0].mxu0
  %v412 = vadd.f32 0.0, %v411
  %v413 = vpop.f32.mrb[0].mxu0
  %v414 = vpop.f32.mrb[0].mxu0
  %v415 = vadd.f32 0.0, %v414
  %v416 = vpop.f32.mrb[0].mxu0
  %417 = vdwg.mxu0
  %v418 = vadd.f32 %v258, %v388
  %v419 = vadd.f32 %v261, %v391
  %v420 = vadd.f32 %v266, %v396
  %v421 = vadd.f32 %v269, %v399
  %v422 = vadd.f32 %v274, %v404
  %v423 = vadd.f32 %v277, %v407
  %v424 = vadd.f32 %v282, %v412
  %v425 = vadd.f32 %v285, %v415
  %v426 = vld [vmem:[%s6] sm:$0x1]
  %v428 = vlaneseq
  %v429 = vshrl.u32 %v428, 7
  %v430 = vsub.s32 0, %v429
  %v431 = vrot.slane %v426, %v430
  %v433 = vadd.f32 %v418, %v431
  %v434 = vadd.f32 %v419, %v431
  %v435 = vadd.f32 %v420, %v431
  %v436 = vadd.f32 %v421, %v431
  %v437 = vadd.f32 %v422, %v431
  %v438 = vadd.f32 %v423, %v431
  %v439 = vadd.f32 %v424, %v431
  %v440 = vadd.f32 %v425, %v431
  %vm441 = vcmask 179200
  %442 = vst.msk [vmem:[%s7] sm:$0xff] %vm441, %v433
  %443 = vst.msk [vmem:[%s7 + $0x8] sm:$0xff] %vm441, %v434
  %444 = vst.msk [vmem:[%s7 + $0x10] sm:$0xff] %vm441, %v435
  %445 = vst.msk [vmem:[%s7 + $0x18] sm:$0xff] %vm441, %v436
  %446 = vst.msk [vmem:[%s7 + $0x20] sm:$0xff] %vm441, %v437
  %447 = vst.msk [vmem:[%s7 + $0x28] sm:$0xff] %vm441, %v438
  %448 = vst.msk [vmem:[%s7 + $0x30] sm:$0xff] %vm441, %v439
  %449 = vst.msk [vmem:[%s7 + $0x38] sm:$0xff] %vm441, %v440
  // Predicated region
  $region30: #{_lambda_.19} parent=0 // pred_check
    _
  $region31: #{_lambda_.19} parent=0 // pred_check_branch
    %451 = sbr.rel (0) target = $region33
  $region32: #{_lambda_.19} parent=0 // pred_region
    _
  $region33: #{_lambda_.19} parent=0 // pred_fallthru
    _
  // Predicated region
  $region34: #{_lambda_.19} parent=0 // pred_check
    _
  $region35: #{_lambda_.19} parent=0 // pred_check_branch
    %453 = sbr.rel (0) target = $region37
  $region36: #{_lambda_.19} parent=0 // pred_region
    _
  $region37: #{_lambda_.19} parent=0 // pred_fallthru
    _

</llo_original>
